<compile_context>
chip_gen: v5e
topology: v5e:2x2
jax: 0.10.0
libtpu: 0.0.40
codegen_flags: <defaults>
</compile_context>

<pallas_src>
import jax
import jax.numpy as jnp
from jax.experimental import pallas as pl
from jax.experimental.pallas import tpu as pltpu

INPUT_DIM = 140
HIDDEN = [512, 256, 128, 64]
BN_EPS = 1e-5
LEAKY_SLOPE = 0.1

K_PAD = 256        # input feature dim padded to a lane-aligned size
OUT_PAD = 128      # final layer padded from 1 -> 128 lanes (dense stores)
TILE_B = 256       # batch tile (multiple of 128; fills the 256-row MXU on v6e/v7x)


# --------------------------------------------------------------------------
# Kernel: one batch tile through the whole (BN-folded) MLP.
# --------------------------------------------------------------------------
def _mlp_kernel(x_ref, w1, b1, w2, b2, w3, b3, w4, b4, w5, b5, o_ref):
    h = x_ref[...]  # bf16 (TILE_B, K_PAD)
    for w, b in ((w1, b1), (w2, b2), (w3, b3), (w4, b4)):
        # Linear (+ folded BatchNorm): bf16 operands, f32 accumulator.
        z = jnp.dot(h, w[...], preferred_element_type=jnp.float32) + b[...]
        # LeakyReLU(0.1) in f32.
        z = jnp.where(z >= 0.0, z, LEAKY_SLOPE * z)
        # Dropout(0.4): identity in eval mode.
        h = z.astype(jnp.bfloat16)
    logits = jnp.dot(h, w5[...], preferred_element_type=jnp.float32) + b5[...]
    o_ref[...] = jax.nn.sigmoid(logits)  # (TILE_B, OUT_PAD) dense store


# --------------------------------------------------------------------------
# Host-side parameter preparation: fold BN, pad, cast matmul operands to bf16.
# --------------------------------------------------------------------------
def _fold_bn(w, b, gamma, beta, mean, var):
    scale = gamma * jax.lax.rsqrt(var + BN_EPS)      # (1, out)
    w_f = w * scale                                  # (in, out) * (1, out)
    b_f = (b - mean) * scale + beta
    return w_f, b_f


def _prepare_params(params):
    """params = ([w,b,g,be,m,v] * 4, w5, b5) -> flat (w1,b1,...,w5,b5)."""
    flat = []
    idx = 0
    for li in range(4):
        w, b, g, be, m, v = params[idx:idx + 6]
        idx += 6
        w_f, b_f = _fold_bn(w, b, g, be, m, v)
        if li == 0:  # pad K: 140 -> 256 (matching zero-padded x columns)
            w_f = jnp.pad(w_f, ((0, K_PAD - INPUT_DIM), (0, 0)))
        flat += [w_f.astype(jnp.bfloat16), b_f.astype(jnp.float32)]
    w5, b5 = params[idx], params[idx + 1]
    w5 = jnp.pad(w5, ((0, 0), (0, OUT_PAD - 1)))     # (64, 128), only col 0 live
    b5 = jnp.pad(b5, ((0, 0), (0, OUT_PAD - 1)))     # (1, 128)
    flat += [w5.astype(jnp.bfloat16), b5.astype(jnp.float32)]
    return tuple(flat)


@jax.jit
def improved_molecular_nn(x, params):
    b = x.shape[0]
    b_pad = pl.cdiv(b, TILE_B) * TILE_B
    x_pad = jnp.pad(x, ((0, b_pad - b), (0, K_PAD - INPUT_DIM)))
    x_pad = x_pad.astype(jnp.bfloat16)

    flat = _prepare_params(params)
    n_tiles = b_pad // TILE_B

    x_spec = pl.BlockSpec((TILE_B, K_PAD), lambda i: (i, 0))
    # Weights/biases: full-array blocks with a constant index map -> loaded
    # once, resident in VMEM across all batch tiles.
    w_specs = [pl.BlockSpec(p.shape, lambda i: (0, 0)) for p in flat]
    out_spec = pl.BlockSpec((TILE_B, OUT_PAD), lambda i: (i, 0))

    flops = 2 * b_pad * (K_PAD * 512 + 512 * 256 + 256 * 128 + 128 * 64
                         + 64 * OUT_PAD)
    bytes_accessed = (x_pad.size * 2
                      + sum(int(p.size) * p.dtype.itemsize for p in flat)
                      + b_pad * OUT_PAD * 4)

    out = pl.pallas_call(
        _mlp_kernel,
        out_shape=jax.ShapeDtypeStruct((b_pad, OUT_PAD), jnp.float32),
        grid_spec=pltpu.PrefetchScalarGridSpec(
            num_scalar_prefetch=0,
            grid=(n_tiles,),
            in_specs=[x_spec] + w_specs,
            out_specs=out_spec,
        ),
        compiler_params=pltpu.CompilerParams(
            dimension_semantics=("parallel",),
            vmem_limit_bytes=32 * 1024 * 1024,
        ),
        cost_estimate=pl.CostEstimate(
            flops=flops,
            transcendentals=b_pad * OUT_PAD,
            bytes_accessed=bytes_accessed,
        ),
    )(x_pad, *flat)

    return out[:b, 0:1]


# --------------------------------------------------------------------------
# Deterministic parameter init matching the PyTorch module's shapes.
# --------------------------------------------------------------------------
def init_params(key):
    dims = [INPUT_DIM] + HIDDEN + [1]
    params = []
    n_layers = len(dims) - 1  # 5 linear layers
    keys = jax.random.split(key, n_layers * 6)
    k = iter(keys)
    for li in range(n_layers):
        fan_in, fan_out = dims[li], dims[li + 1]
        bound = 1.0 / jnp.sqrt(fan_in)
        w = jax.random.uniform(next(k), (fan_in, fan_out), jnp.float32,
                               minval=-bound, maxval=bound)
        bias = jax.random.uniform(next(k), (1, fan_out), jnp.float32,
                                  minval=-bound, maxval=bound)
        params += [w, bias]
        if li < 4:  # BN after fc1..fc4 only
            gamma = 1.0 + 0.1 * jax.random.normal(next(k), (1, fan_out), jnp.float32)
            beta = 0.1 * jax.random.normal(next(k), (1, fan_out), jnp.float32)
            mean = 0.1 * jax.random.normal(next(k), (1, fan_out), jnp.float32)
            var = 0.5 + jax.random.uniform(next(k), (1, fan_out), jnp.float32)
            params += [gamma, beta, mean, var]
        else:
            next(k); next(k); next(k); next(k)  # burn keys for determinism
    return tuple(params)


def reference(x, params):
    """Pure-JAX f32 reference of the un-folded forward (correctness check)."""
    h = x.astype(jnp.float32)
    idx = 0
    for _ in range(4):
        w, b, g, be, m, v = params[idx:idx + 6]
        idx += 6
        h = h @ w + b
        h = (h - m) * jax.lax.rsqrt(v + BN_EPS) * g + be
        h = jnp.where(h >= 0.0, h, LEAKY_SLOPE * h)
    w5, b5 = params[idx], params[idx + 1]
    return jax.nn.sigmoid(h @ w5 + b5)


if __name__ == "__main__":
    key = jax.random.PRNGKey(0)
    kx, kp = jax.random.split(key)
    batch = 512  # 2 batch tiles of 256 -> exercises the grid + pipelining
    x = jax.random.normal(kx, (batch, INPUT_DIM), dtype=jnp.float32)
    params = init_params(kp)

    out = jax.block_until_ready(improved_molecular_nn(x, params))

    ref = reference(x, params)
    assert out.shape == (batch, 1), out.shape
    max_err = float(jnp.max(jnp.abs(out - ref)))
    # bf16 matmul operands (f32 accumulation) -> loosened tolerance vs f32 ref.
    assert max_err < 2e-2, max_err

    print("KERNEL_OK")
</pallas_src>

<mosaic_0001>
module attributes {stable_mosaic.version = 11 : i64} {
  func.func @_mlp_kernel(%arg0: i32, %arg1: memref<256x256xbf16, #tpu.memory_space<vmem>>, %arg2: memref<256x512xbf16, #tpu.memory_space<vmem>>, %arg3: memref<1x512xf32, #tpu.memory_space<vmem>>, %arg4: memref<512x256xbf16, #tpu.memory_space<vmem>>, %arg5: memref<1x256xf32, #tpu.memory_space<vmem>>, %arg6: memref<256x128xbf16, #tpu.memory_space<vmem>>, %arg7: memref<1x128xf32, #tpu.memory_space<vmem>>, %arg8: memref<128x64xbf16, #tpu.memory_space<vmem>>, %arg9: memref<1x64xf32, #tpu.memory_space<vmem>>, %arg10: memref<64x128xbf16, #tpu.memory_space<vmem>>, %arg11: memref<1x128xf32, #tpu.memory_space<vmem>>, %arg12: memref<256x128xf32, #tpu.memory_space<vmem>>) attributes {dimension_semantics = [#tpu.dimension_semantics<parallel>], iteration_bounds = array<i64: 2>, scalar_prefetch = 0 : i64, scratch_operands = 0 : i64, tpu.core_type = #tpu.core_type<tc>, window_params = [{transform_indices = @transform_0, window_bounds = array<i64: 256, 256>}, {pipeline_mode = #tpu.pipeline_mode<synchronous>, transform_indices = @transform_1, window_bounds = array<i64: 256, 512>}, {pipeline_mode = #tpu.pipeline_mode<synchronous>, transform_indices = @transform_2, window_bounds = array<i64: 1, 512>}, {pipeline_mode = #tpu.pipeline_mode<synchronous>, transform_indices = @transform_3, window_bounds = array<i64: 512, 256>}, {pipeline_mode = #tpu.pipeline_mode<synchronous>, transform_indices = @transform_4, window_bounds = array<i64: 1, 256>}, {pipeline_mode = #tpu.pipeline_mode<synchronous>, transform_indices = @transform_5, window_bounds = array<i64: 256, 128>}, {pipeline_mode = #tpu.pipeline_mode<synchronous>, transform_indices = @transform_6, window_bounds = array<i64: 1, 128>}, {pipeline_mode = #tpu.pipeline_mode<synchronous>, transform_indices = @transform_7, window_bounds = array<i64: 128, 64>}, {pipeline_mode = #tpu.pipeline_mode<synchronous>, transform_indices = @transform_8, window_bounds = array<i64: 1, 64>}, {pipeline_mode = #tpu.pipeline_mode<synchronous>, transform_indices = @transform_9, window_bounds = array<i64: 64, 128>}, {pipeline_mode = #tpu.pipeline_mode<synchronous>, transform_indices = @transform_10, window_bounds = array<i64: 1, 128>}, {transform_indices = @transform_11, window_bounds = array<i64: 256, 128>}]} {
    %c0 = arith.constant 0 : index
    %c0_0 = arith.constant 0 : index
    %0 = vector.load %arg1[%c0, %c0_0] : memref<256x256xbf16, #tpu.memory_space<vmem>>, vector<256x256xbf16>
    %c0_1 = arith.constant 0 : index
    %c0_2 = arith.constant 0 : index
    %1 = vector.load %arg2[%c0_1, %c0_2] : memref<256x512xbf16, #tpu.memory_space<vmem>>, vector<256x512xbf16>
    %cst = arith.constant dense<0.000000e+00> : vector<256x512xf32>
    %2 = tpu.matmul %0, %1, %cst {dimension_numbers = #tpu.dot_dimension_numbers<[1], [0], [0], [1], [0, 0, 1, 1], [], []>} : vector<256x256xbf16>, vector<256x512xbf16>, vector<256x512xf32> -> vector<256x512xf32>
    %c0_3 = arith.constant 0 : index
    %c0_4 = arith.constant 0 : index
    %3 = vector.load %arg3[%c0_3, %c0_4] : memref<1x512xf32, #tpu.memory_space<vmem>>, vector<1x512xf32>
    %4 = vector.broadcast %3 : vector<1x512xf32> to vector<256x512xf32>
    %5 = arith.addf %2, %4 : vector<256x512xf32>
    %cst_5 = arith.constant 0.000000e+00 : f32
    %6 = vector.broadcast %cst_5 : f32 to vector<256x512xf32>
    %7 = arith.cmpf oge, %5, %6 : vector<256x512xf32>
    %cst_6 = arith.constant 1.000000e-01 : f32
    %8 = vector.broadcast %cst_6 : f32 to vector<256x512xf32>
    %9 = arith.mulf %8, %5 : vector<256x512xf32>
    %10 = arith.select %7, %5, %9 : vector<256x512xi1>, vector<256x512xf32>
    %11 = arith.truncf %10 : vector<256x512xf32> to vector<256x512xbf16>
    %c0_7 = arith.constant 0 : index
    %c0_8 = arith.constant 0 : index
    %12 = vector.load %arg4[%c0_7, %c0_8] : memref<512x256xbf16, #tpu.memory_space<vmem>>, vector<512x256xbf16>
    %cst_9 = arith.constant dense<0.000000e+00> : vector<256x256xf32>
    %13 = tpu.matmul %11, %12, %cst_9 {dimension_numbers = #tpu.dot_dimension_numbers<[1], [0], [0], [1], [0, 0, 1, 1], [], []>} : vector<256x512xbf16>, vector<512x256xbf16>, vector<256x256xf32> -> vector<256x256xf32>
    %c0_10 = arith.constant 0 : index
    %c0_11 = arith.constant 0 : index
    %14 = vector.load %arg5[%c0_10, %c0_11] : memref<1x256xf32, #tpu.memory_space<vmem>>, vector<1x256xf32>
    %15 = vector.broadcast %14 : vector<1x256xf32> to vector<256x256xf32>
    %16 = arith.addf %13, %15 : vector<256x256xf32>
    %cst_12 = arith.constant 0.000000e+00 : f32
    %17 = vector.broadcast %cst_12 : f32 to vector<256x256xf32>
    %18 = arith.cmpf oge, %16, %17 : vector<256x256xf32>
    %cst_13 = arith.constant 1.000000e-01 : f32
    %19 = vector.broadcast %cst_13 : f32 to vector<256x256xf32>
    %20 = arith.mulf %19, %16 : vector<256x256xf32>
    %21 = arith.select %18, %16, %20 : vector<256x256xi1>, vector<256x256xf32>
    %22 = arith.truncf %21 : vector<256x256xf32> to vector<256x256xbf16>
    %c0_14 = arith.constant 0 : index
    %c0_15 = arith.constant 0 : index
    %23 = vector.load %arg6[%c0_14, %c0_15] : memref<256x128xbf16, #tpu.memory_space<vmem>>, vector<256x128xbf16>
    %cst_16 = arith.constant dense<0.000000e+00> : vector<256x128xf32>
    %24 = tpu.matmul %22, %23, %cst_16 {dimension_numbers = #tpu.dot_dimension_numbers<[1], [0], [0], [1], [0, 0, 1, 1], [], []>} : vector<256x256xbf16>, vector<256x128xbf16>, vector<256x128xf32> -> vector<256x128xf32>
    %c0_17 = arith.constant 0 : index
    %c0_18 = arith.constant 0 : index
    %25 = vector.load %arg7[%c0_17, %c0_18] : memref<1x128xf32, #tpu.memory_space<vmem>>, vector<1x128xf32>
    %26 = vector.broadcast %25 : vector<1x128xf32> to vector<256x128xf32>
    %27 = arith.addf %24, %26 : vector<256x128xf32>
    %cst_19 = arith.constant 0.000000e+00 : f32
    %28 = vector.broadcast %cst_19 : f32 to vector<256x128xf32>
    %29 = arith.cmpf oge, %27, %28 : vector<256x128xf32>
    %cst_20 = arith.constant 1.000000e-01 : f32
    %30 = vector.broadcast %cst_20 : f32 to vector<256x128xf32>
    %31 = arith.mulf %30, %27 : vector<256x128xf32>
    %32 = arith.select %29, %27, %31 : vector<256x128xi1>, vector<256x128xf32>
    %33 = arith.truncf %32 : vector<256x128xf32> to vector<256x128xbf16>
    %c0_21 = arith.constant 0 : index
    %c0_22 = arith.constant 0 : index
    %34 = vector.load %arg8[%c0_21, %c0_22] : memref<128x64xbf16, #tpu.memory_space<vmem>>, vector<128x64xbf16>
    %cst_23 = arith.constant dense<0.000000e+00> : vector<256x64xf32>
    %35 = tpu.matmul %33, %34, %cst_23 {dimension_numbers = #tpu.dot_dimension_numbers<[1], [0], [0], [1], [0, 0, 1, 1], [], []>} : vector<256x128xbf16>, vector<128x64xbf16>, vector<256x64xf32> -> vector<256x64xf32>
    %c0_24 = arith.constant 0 : index
    %c0_25 = arith.constant 0 : index
    %36 = vector.load %arg9[%c0_24, %c0_25] : memref<1x64xf32, #tpu.memory_space<vmem>>, vector<1x64xf32>
    %37 = vector.broadcast %36 : vector<1x64xf32> to vector<256x64xf32>
    %38 = arith.addf %35, %37 : vector<256x64xf32>
    %cst_26 = arith.constant 0.000000e+00 : f32
    %39 = vector.broadcast %cst_26 : f32 to vector<256x64xf32>
    %40 = arith.cmpf oge, %38, %39 : vector<256x64xf32>
    %cst_27 = arith.constant 1.000000e-01 : f32
    %41 = vector.broadcast %cst_27 : f32 to vector<256x64xf32>
    %42 = arith.mulf %41, %38 : vector<256x64xf32>
    %43 = arith.select %40, %38, %42 : vector<256x64xi1>, vector<256x64xf32>
    %44 = arith.truncf %43 : vector<256x64xf32> to vector<256x64xbf16>
    %c0_28 = arith.constant 0 : index
    %c0_29 = arith.constant 0 : index
    %45 = vector.load %arg10[%c0_28, %c0_29] : memref<64x128xbf16, #tpu.memory_space<vmem>>, vector<64x128xbf16>
    %cst_30 = arith.constant dense<0.000000e+00> : vector<256x128xf32>
    %46 = tpu.matmul %44, %45, %cst_30 {dimension_numbers = #tpu.dot_dimension_numbers<[1], [0], [0], [1], [0, 0, 1, 1], [], []>} : vector<256x64xbf16>, vector<64x128xbf16>, vector<256x128xf32> -> vector<256x128xf32>
    %c0_31 = arith.constant 0 : index
    %c0_32 = arith.constant 0 : index
    %47 = vector.load %arg11[%c0_31, %c0_32] : memref<1x128xf32, #tpu.memory_space<vmem>>, vector<1x128xf32>
    %48 = vector.broadcast %47 : vector<1x128xf32> to vector<256x128xf32>
    %49 = arith.addf %46, %48 : vector<256x128xf32>
    %50 = arith.negf %49 : vector<256x128xf32>
    %51 = math.exp %50 : vector<256x128xf32>
    %cst_33 = arith.constant 1.000000e+00 : f32
    %52 = vector.broadcast %cst_33 : f32 to vector<256x128xf32>
    %53 = arith.addf %52, %51 : vector<256x128xf32>
    %54 = arith.divf %52, %53 : vector<256x128xf32>
    %c0_34 = arith.constant 0 : index
    %c0_35 = arith.constant 0 : index
    %55 = vector.load %arg12[%c0_34, %c0_35] : memref<256x128xf32, #tpu.memory_space<vmem>>, vector<256x128xf32>
    tpu.vector_store %arg12[%c0_34, %c0_35], %54 {strides = array<i32>} : memref<256x128xf32, #tpu.memory_space<vmem>>, vector<256x128xf32>,
    return
  }
  func.func @transform_0(%arg0: i32) -> (i32, i32) {
    %c0_i32 = arith.constant 0 : i32
    %c0_i32_0 = arith.constant 0 : i32
    return %arg0, %c0_i32 : i32, i32
  }
  func.func @transform_1(%arg0: i32) -> (i32, i32) {
    %c0_i32 = arith.constant 0 : i32
    %c0_i32_0 = arith.constant 0 : i32
    %c0_i32_1 = arith.constant 0 : i32
    return %c0_i32, %c0_i32_0 : i32, i32
  }
  func.func @transform_2(%arg0: i32) -> (i32, i32) {
    %c0_i32 = arith.constant 0 : i32
    %c0_i32_0 = arith.constant 0 : i32
    %c0_i32_1 = arith.constant 0 : i32
    return %c0_i32, %c0_i32_0 : i32, i32
  }
  func.func @transform_3(%arg0: i32) -> (i32, i32) {
    %c0_i32 = arith.constant 0 : i32
    %c0_i32_0 = arith.constant 0 : i32
    %c0_i32_1 = arith.constant 0 : i32
    return %c0_i32, %c0_i32_0 : i32, i32
  }
  func.func @transform_4(%arg0: i32) -> (i32, i32) {
    %c0_i32 = arith.constant 0 : i32
    %c0_i32_0 = arith.constant 0 : i32
    %c0_i32_1 = arith.constant 0 : i32
    return %c0_i32, %c0_i32_0 : i32, i32
  }
  func.func @transform_5(%arg0: i32) -> (i32, i32) {
    %c0_i32 = arith.constant 0 : i32
    %c0_i32_0 = arith.constant 0 : i32
    %c0_i32_1 = arith.constant 0 : i32
    return %c0_i32, %c0_i32_0 : i32, i32
  }
  func.func @transform_6(%arg0: i32) -> (i32, i32) {
    %c0_i32 = arith.constant 0 : i32
    %c0_i32_0 = arith.constant 0 : i32
    %c0_i32_1 = arith.constant 0 : i32
    return %c0_i32, %c0_i32_0 : i32, i32
  }
  func.func @transform_7(%arg0: i32) -> (i32, i32) {
    %c0_i32 = arith.constant 0 : i32
    %c0_i32_0 = arith.constant 0 : i32
    %c0_i32_1 = arith.constant 0 : i32
    return %c0_i32, %c0_i32_0 : i32, i32
  }
  func.func @transform_8(%arg0: i32) -> (i32, i32) {
    %c0_i32 = arith.constant 0 : i32
    %c0_i32_0 = arith.constant 0 : i32
    %c0_i32_1 = arith.constant 0 : i32
    return %c0_i32, %c0_i32_0 : i32, i32
  }
  func.func @transform_9(%arg0: i32) -> (i32, i32) {
    %c0_i32 = arith.constant 0 : i32
    %c0_i32_0 = arith.constant 0 : i32
    %c0_i32_1 = arith.constant 0 : i32
    return %c0_i32, %c0_i32_0 : i32, i32
  }
  func.func @transform_10(%arg0: i32) -> (i32, i32) {
    %c0_i32 = arith.constant 0 : i32
    %c0_i32_0 = arith.constant 0 : i32
    %c0_i32_1 = arith.constant 0 : i32
    return %c0_i32, %c0_i32_0 : i32, i32
  }
  func.func @transform_11(%arg0: i32) -> (i32, i32) {
    %c0_i32 = arith.constant 0 : i32
    %c0_i32_0 = arith.constant 0 : i32
    return %arg0, %c0_i32 : i32, i32
  }
}

</mosaic_0001>

<llo_original>
// kernel: improved_molecular_nn.1
$region0: #{improved_molecular_nn.1}
  #allocation0 [shape = 'u32[]', space=smem, size = 0x4, offset = 0x4, fixed_abs, tag = 'smem constant byte address 0x4 - core index']
  #allocation1 [shape = 'u32[72,128]{1,0:T(1,128)}', space=vmem, size = 0x9000, scoped, tag = 'internal scratch']
  %s0 = inlined_call_operand.vmem [shape: bf16[512,256], index: 0, kind: input, shape index: {}]
  %s1 = inlined_call_operand.vmem [shape: bf16[256,512], index: 1, kind: input, shape index: {}]
  %s2 = inlined_call_operand.vmem [shape: f32[1,512], index: 2, kind: input, shape index: {}]
  %s3 = inlined_call_operand.vmem [shape: bf16[512,256], index: 3, kind: input, shape index: {}]
  %s4 = inlined_call_operand.vmem [shape: f32[1,256], index: 4, kind: input, shape index: {}]
  %s5 = inlined_call_operand.vmem [shape: bf16[256,128], index: 5, kind: input, shape index: {}]
  %s6 = inlined_call_operand.vmem [shape: f32[1,128], index: 6, kind: input, shape index: {}]
  %s7 = inlined_call_operand.vmem [shape: bf16[128,64], index: 7, kind: input, shape index: {}]
  %s8 = inlined_call_operand.vmem [shape: f32[1,64], index: 8, kind: input, shape index: {}]
  %s9 = inlined_call_operand.vmem [shape: bf16[64,128], index: 9, kind: input, shape index: {}]
  %s10 = inlined_call_operand.vmem [shape: f32[1,128], index: 10, kind: input, shape index: {}]
  %s11 = inlined_call_operand.vmem [shape: f32[512,128], index: 11, kind: output, shape index: {}]
  %s12 = sld [smem:[#allocation0]]
  $region77: #{improved_molecular_nn.1} parent=0
    _
  %s14 = ssub.s32 1, %s12
  %s15 = scalar_select 0, %s14, %s12
  loop: start=0, step=1, limit=4
  $region2: #{improved_molecular_nn.1} parent=0 // loop_pre_header
    _
  $region3: #{improved_molecular_nn.1} parent=0 // loop_header
    %s17 = sphi 0, %s21
    %p18 = scmp.ge.s32.totalorder %s17, 4
    %s27 = sphi 0, %s29
    %s30 = sphi 0, %s27
    %s31 = sphi 0, %s30
    %s47 = sphi 0, %s31
    %s51 = sphi 0, %s51
    %s53 = sphi 0, %s51
    %s54 = sphi 0, %s53
    %s68 = sphi 0, %s54
    %s72 = sphi 0, %s72
    %s74 = sphi 0, %s72
    %s75 = sphi 0, %s74
    %s89 = sphi 0, %s75
    %s93 = sphi 0, %s93
    %s95 = sphi 0, %s93
    %s96 = sphi 0, %s95
    %s110 = sphi 0, %s96
    %s114 = sphi 0, %s114
    %s116 = sphi 0, %s114
    %s117 = sphi 0, %s116
    %s131 = sphi 0, %s117
    %s135 = sphi 0, %s135
    %s137 = sphi 0, %s135
    %s138 = sphi 0, %s137
    %s152 = sphi 0, %s138
    %s156 = sphi 0, %s156
    %s158 = sphi 0, %s156
    %s159 = sphi 0, %s158
    %s173 = sphi 0, %s159
    %s177 = sphi 0, %s177
    %s179 = sphi 0, %s177
    %s180 = sphi 0, %s179
    %s194 = sphi 0, %s180
    %s198 = sphi 0, %s198
    %s200 = sphi 0, %s198
    %s201 = sphi 0, %s200
    %s215 = sphi 0, %s201
    %s219 = sphi 0, %s219
    %s221 = sphi 0, %s219
    %s222 = sphi 0, %s221
    %s236 = sphi 0, %s222
    %s240 = sphi 0, %s240
    %s242 = sphi 0, %s240
    %s243 = sphi 0, %s242
    %s257 = sphi 0, %s243
    %s263 = sphi 0, %s265
    %s266 = sphi 0, %s263
    %s267 = sphi 0, %s266
    %s283 = sphi 0, %s267
  $region4: #{improved_molecular_nn.1} parent=0 // loop_header_branch
    %20 = sbr.rel (%p18) target = $region8
  $region5: #{improved_molecular_nn.1} parent=0 // loop_body
    %s22 = ssub.s32 %s17, 1
    %s23 = ssub.s32 %s17, 2
    %s24 = sadd.s32 %s17, 1
    %s25 = ssub.s32 %s17, %s24
    %p26 = scmp.eq.s32.totalorder %s25, 0
    %s28 = sadd.s32 %s27, 1
    %s29 = scalar_select %p26, %s27, %s28
    %p32 = pneg %p26
    %p33 = scmp.eq.s32.totalorder %s17, 1
    %p34 = por %p32, %p33
    %p35 = scmp.ne.s32.totalorder %s27, %s30
    %p36 = scmp.eq.s32.totalorder %s17, 0
    %p37 = por %p35, %p36
    %p38 = scmp.ne.s32.totalorder %s27, %s30
    %p39 = scmp.eq.s32.totalorder %s22, 1
    %p40 = por %p38, %p39
    %p41 = scmp.ne.s32.totalorder %s30, %s31
    %p42 = scmp.eq.s32.totalorder %s22, 0
    %p43 = por %p41, %p42
    %p44 = scmp.ne.s32.totalorder %s30, %s31
    %p45 = scmp.eq.s32.totalorder %s23, 1
    %p46 = por %p44, %p45
    %p48 = scmp.ne.s32.totalorder %s31, %s47
    %p49 = scmp.eq.s32.totalorder %s23, 0
    %p50 = por %p48, %p49
    %s52 = sadd.s32 %s51, 1
    %p55 = scmp.eq.s32.totalorder %s17, 1
    %p56 = scmp.ne.s32.totalorder %s51, %s53
    %p57 = scmp.eq.s32.totalorder %s17, 0
    %p58 = por %p56, %p57
    %p59 = scmp.ne.s32.totalorder %s51, %s53
    %p60 = scmp.eq.s32.totalorder %s22, 1
    %p61 = por %p59, %p60
    %p62 = scmp.ne.s32.totalorder %s53, %s54
    %p63 = scmp.eq.s32.totalorder %s22, 0
    %p64 = por %p62, %p63
    %p65 = scmp.ne.s32.totalorder %s53, %s54
    %p66 = scmp.eq.s32.totalorder %s23, 1
    %p67 = por %p65, %p66
    %p69 = scmp.ne.s32.totalorder %s54, %s68
    %p70 = scmp.eq.s32.totalorder %s23, 0
    %p71 = por %p69, %p70
    %s73 = sadd.s32 %s72, 1
    %p76 = scmp.eq.s32.totalorder %s17, 1
    %p77 = scmp.ne.s32.totalorder %s72, %s74
    %p78 = scmp.eq.s32.totalorder %s17, 0
    %p79 = por %p77, %p78
    %p80 = scmp.ne.s32.totalorder %s72, %s74
    %p81 = scmp.eq.s32.totalorder %s22, 1
    %p82 = por %p80, %p81
    %p83 = scmp.ne.s32.totalorder %s74, %s75
    %p84 = scmp.eq.s32.totalorder %s22, 0
    %p85 = por %p83, %p84
    %p86 = scmp.ne.s32.totalorder %s74, %s75
    %p87 = scmp.eq.s32.totalorder %s23, 1
    %p88 = por %p86, %p87
    %p90 = scmp.ne.s32.totalorder %s75, %s89
    %p91 = scmp.eq.s32.totalorder %s23, 0
    %p92 = por %p90, %p91
    %s94 = sadd.s32 %s93, 1
    %p97 = scmp.eq.s32.totalorder %s17, 1
    %p98 = scmp.ne.s32.totalorder %s93, %s95
    %p99 = scmp.eq.s32.totalorder %s17, 0
    %p100 = por %p98, %p99
    %p101 = scmp.ne.s32.totalorder %s93, %s95
    %p102 = scmp.eq.s32.totalorder %s22, 1
    %p103 = por %p101, %p102
    %p104 = scmp.ne.s32.totalorder %s95, %s96
    %p105 = scmp.eq.s32.totalorder %s22, 0
    %p106 = por %p104, %p105
    %p107 = scmp.ne.s32.totalorder %s95, %s96
    %p108 = scmp.eq.s32.totalorder %s23, 1
    %p109 = por %p107, %p108
    %p111 = scmp.ne.s32.totalorder %s96, %s110
    %p112 = scmp.eq.s32.totalorder %s23, 0
    %p113 = por %p111, %p112
    %s115 = sadd.s32 %s114, 1
    %p118 = scmp.eq.s32.totalorder %s17, 1
    %p119 = scmp.ne.s32.totalorder %s114, %s116
    %p120 = scmp.eq.s32.totalorder %s17, 0
    %p121 = por %p119, %p120
    %p122 = scmp.ne.s32.totalorder %s114, %s116
    %p123 = scmp.eq.s32.totalorder %s22, 1
    %p124 = por %p122, %p123
    %p125 = scmp.ne.s32.totalorder %s116, %s117
    %p126 = scmp.eq.s32.totalorder %s22, 0
    %p127 = por %p125, %p126
    %p128 = scmp.ne.s32.totalorder %s116, %s117
    %p129 = scmp.eq.s32.totalorder %s23, 1
    %p130 = por %p128, %p129
    %p132 = scmp.ne.s32.totalorder %s117, %s131
    %p133 = scmp.eq.s32.totalorder %s23, 0
    %p134 = por %p132, %p133
    %s136 = sadd.s32 %s135, 1
    %p139 = scmp.eq.s32.totalorder %s17, 1
    %p140 = scmp.ne.s32.totalorder %s135, %s137
    %p141 = scmp.eq.s32.totalorder %s17, 0
    %p142 = por %p140, %p141
    %p143 = scmp.ne.s32.totalorder %s135, %s137
    %p144 = scmp.eq.s32.totalorder %s22, 1
    %p145 = por %p143, %p144
    %p146 = scmp.ne.s32.totalorder %s137, %s138
    %p147 = scmp.eq.s32.totalorder %s22, 0
    %p148 = por %p146, %p147
    %p149 = scmp.ne.s32.totalorder %s137, %s138
    %p150 = scmp.eq.s32.totalorder %s23, 1
    %p151 = por %p149, %p150
    %p153 = scmp.ne.s32.totalorder %s138, %s152
    %p154 = scmp.eq.s32.totalorder %s23, 0
    %p155 = por %p153, %p154
    %s157 = sadd.s32 %s156, 1
    %p160 = scmp.eq.s32.totalorder %s17, 1
    %p161 = scmp.ne.s32.totalorder %s156, %s158
    %p162 = scmp.eq.s32.totalorder %s17, 0
    %p163 = por %p161, %p162
    %p164 = scmp.ne.s32.totalorder %s156, %s158
    %p165 = scmp.eq.s32.totalorder %s22, 1
    %p166 = por %p164, %p165
    %p167 = scmp.ne.s32.totalorder %s158, %s159
    %p168 = scmp.eq.s32.totalorder %s22, 0
    %p169 = por %p167, %p168
    %p170 = scmp.ne.s32.totalorder %s158, %s159
    %p171 = scmp.eq.s32.totalorder %s23, 1
    %p172 = por %p170, %p171
    %p174 = scmp.ne.s32.totalorder %s159, %s173
    %p175 = scmp.eq.s32.totalorder %s23, 0
    %p176 = por %p174, %p175
    %s178 = sadd.s32 %s177, 1
    %p181 = scmp.eq.s32.totalorder %s17, 1
    %p182 = scmp.ne.s32.totalorder %s177, %s179
    %p183 = scmp.eq.s32.totalorder %s17, 0
    %p184 = por %p182, %p183
    %p185 = scmp.ne.s32.totalorder %s177, %s179
    %p186 = scmp.eq.s32.totalorder %s22, 1
    %p187 = por %p185, %p186
    %p188 = scmp.ne.s32.totalorder %s179, %s180
    %p189 = scmp.eq.s32.totalorder %s22, 0
    %p190 = por %p188, %p189
    %p191 = scmp.ne.s32.totalorder %s179, %s180
    %p192 = scmp.eq.s32.totalorder %s23, 1
    %p193 = por %p191, %p192
    %p195 = scmp.ne.s32.totalorder %s180, %s194
    %p196 = scmp.eq.s32.totalorder %s23, 0
    %p197 = por %p195, %p196
    %s199 = sadd.s32 %s198, 1
    %p202 = scmp.eq.s32.totalorder %s17, 1
    %p203 = scmp.ne.s32.totalorder %s198, %s200
    %p204 = scmp.eq.s32.totalorder %s17, 0
    %p205 = por %p203, %p204
    %p206 = scmp.ne.s32.totalorder %s198, %s200
    %p207 = scmp.eq.s32.totalorder %s22, 1
    %p208 = por %p206, %p207
    %p209 = scmp.ne.s32.totalorder %s200, %s201
    %p210 = scmp.eq.s32.totalorder %s22, 0
    %p211 = por %p209, %p210
    %p212 = scmp.ne.s32.totalorder %s200, %s201
    %p213 = scmp.eq.s32.totalorder %s23, 1
    %p214 = por %p212, %p213
    %p216 = scmp.ne.s32.totalorder %s201, %s215
    %p217 = scmp.eq.s32.totalorder %s23, 0
    %p218 = por %p216, %p217
    %s220 = sadd.s32 %s219, 1
    %p223 = scmp.eq.s32.totalorder %s17, 1
    %p224 = scmp.ne.s32.totalorder %s219, %s221
    %p225 = scmp.eq.s32.totalorder %s17, 0
    %p226 = por %p224, %p225
    %p227 = scmp.ne.s32.totalorder %s219, %s221
    %p228 = scmp.eq.s32.totalorder %s22, 1
    %p229 = por %p227, %p228
    %p230 = scmp.ne.s32.totalorder %s221, %s222
    %p231 = scmp.eq.s32.totalorder %s22, 0
    %p232 = por %p230, %p231
    %p233 = scmp.ne.s32.totalorder %s221, %s222
    %p234 = scmp.eq.s32.totalorder %s23, 1
    %p235 = por %p233, %p234
    %p237 = scmp.ne.s32.totalorder %s222, %s236
    %p238 = scmp.eq.s32.totalorder %s23, 0
    %p239 = por %p237, %p238
    %s241 = sadd.s32 %s240, 1
    %p244 = scmp.eq.s32.totalorder %s17, 1
    %p245 = scmp.ne.s32.totalorder %s240, %s242
    %p246 = scmp.eq.s32.totalorder %s17, 0
    %p247 = por %p245, %p246
    %p248 = scmp.ne.s32.totalorder %s240, %s242
    %p249 = scmp.eq.s32.totalorder %s22, 1
    %p250 = por %p248, %p249
    %p251 = scmp.ne.s32.totalorder %s242, %s243
    %p252 = scmp.eq.s32.totalorder %s22, 0
    %p253 = por %p251, %p252
    %p254 = scmp.ne.s32.totalorder %s242, %s243
    %p255 = scmp.eq.s32.totalorder %s23, 1
    %p256 = por %p254, %p255
    %p258 = scmp.ne.s32.totalorder %s243, %s257
    %p259 = scmp.eq.s32.totalorder %s23, 0
    %p260 = por %p258, %p259
    %s261 = ssub.s32 %s17, %s24
    %p262 = scmp.eq.s32.totalorder %s261, 0
    %s264 = sadd.s32 %s263, 1
    %s265 = scalar_select %p262, %s263, %s264
    %p268 = pneg %p262
    %p269 = scmp.eq.s32.totalorder %s17, 1
    %p270 = por %p268, %p269
    %p271 = scmp.ne.s32.totalorder %s263, %s266
    %p272 = scmp.eq.s32.totalorder %s17, 0
    %p273 = por %p271, %p272
    %p274 = scmp.ne.s32.totalorder %s263, %s266
    %p275 = scmp.eq.s32.totalorder %s22, 1
    %p276 = por %p274, %p275
    %p277 = scmp.ne.s32.totalorder %s266, %s267
    %p278 = scmp.eq.s32.totalorder %s22, 0
    %p279 = por %p277, %p278
    %p280 = scmp.ne.s32.totalorder %s266, %s267
    %p281 = scmp.eq.s32.totalorder %s23, 1
    %p282 = por %p280, %p281
    %p284 = scmp.ne.s32.totalorder %s267, %s283
    %p285 = scmp.eq.s32.totalorder %s23, 0
    %p286 = por %p284, %p285
    %p287 = scmp.le.s32.totalorder 1, %s17
    %p288 = scmp.lt.s32.totalorder %s17, 3
    %p289 = pnand %p287, %p288
    %p290 = pneg %p289
    // Predicated region
    $region9: #{improved_molecular_nn.1} parent=5 // pred_check
      _
    $region10: #{improved_molecular_nn.1} parent=5 // pred_check_branch
      %292 = sbr.rel (%p289) target = $region12
    $region11: #{improved_molecular_nn.1} parent=5 // pred_region
      %s293 = ssub.s32 %s17, 1
      // Predicated region
      $region13: #{improved_molecular_nn.1} parent=11 // pred_check
        %p294 = pneg %p64
      $region14: #{improved_molecular_nn.1} parent=11 // pred_check_branch
        %296 = sbr.rel (%p294) target = $region16
      $region15: #{improved_molecular_nn.1} parent=11 // pred_region
        _
      $region16: #{improved_molecular_nn.1} parent=11 // pred_fallthru
        _
      // Predicated region
      $region17: #{improved_molecular_nn.1} parent=11 // pred_check
        %p297 = pneg %p85
      $region18: #{improved_molecular_nn.1} parent=11 // pred_check_branch
        %299 = sbr.rel (%p297) target = $region20
      $region19: #{improved_molecular_nn.1} parent=11 // pred_region
        _
      $region20: #{improved_molecular_nn.1} parent=11 // pred_fallthru
        _
      // Predicated region
      $region21: #{improved_molecular_nn.1} parent=11 // pred_check
        %p300 = pneg %p106
      $region22: #{improved_molecular_nn.1} parent=11 // pred_check_branch
        %302 = sbr.rel (%p300) target = $region24
      $region23: #{improved_molecular_nn.1} parent=11 // pred_region
        _
      $region24: #{improved_molecular_nn.1} parent=11 // pred_fallthru
        _
      // Predicated region
      $region25: #{improved_molecular_nn.1} parent=11 // pred_check
        %p303 = pneg %p127
      $region26: #{improved_molecular_nn.1} parent=11 // pred_check_branch
        %305 = sbr.rel (%p303) target = $region28
      $region27: #{improved_molecular_nn.1} parent=11 // pred_region
        _
      $region28: #{improved_molecular_nn.1} parent=11 // pred_fallthru
        _
      // Predicated region
      $region29: #{improved_molecular_nn.1} parent=11 // pred_check
        %p306 = pneg %p148
      $region30: #{improved_molecular_nn.1} parent=11 // pred_check_branch
        %308 = sbr.rel (%p306) target = $region32
      $region31: #{improved_molecular_nn.1} parent=11 // pred_region
        _
      $region32: #{improved_molecular_nn.1} parent=11 // pred_fallthru
        _
      // Predicated region
      $region33: #{improved_molecular_nn.1} parent=11 // pred_check
        %p309 = pneg %p169
      $region34: #{improved_molecular_nn.1} parent=11 // pred_check_branch
        %311 = sbr.rel (%p309) target = $region36
      $region35: #{improved_molecular_nn.1} parent=11 // pred_region
        _
      $region36: #{improved_molecular_nn.1} parent=11 // pred_fallthru
        _
      // Predicated region
      $region37: #{improved_molecular_nn.1} parent=11 // pred_check
        %p312 = pneg %p190
      $region38: #{improved_molecular_nn.1} parent=11 // pred_check_branch
        %314 = sbr.rel (%p312) target = $region40
      $region39: #{improved_molecular_nn.1} parent=11 // pred_region
        _
      $region40: #{improved_molecular_nn.1} parent=11 // pred_fallthru
        _
      // Predicated region
      $region41: #{improved_molecular_nn.1} parent=11 // pred_check
        %p315 = pneg %p211
      $region42: #{improved_molecular_nn.1} parent=11 // pred_check_branch
        %317 = sbr.rel (%p315) target = $region44
      $region43: #{improved_molecular_nn.1} parent=11 // pred_region
        _
      $region44: #{improved_molecular_nn.1} parent=11 // pred_fallthru
        _
      // Predicated region
      $region45: #{improved_molecular_nn.1} parent=11 // pred_check
        %p318 = pneg %p232
      $region46: #{improved_molecular_nn.1} parent=11 // pred_check_branch
        %320 = sbr.rel (%p318) target = $region48
      $region47: #{improved_molecular_nn.1} parent=11 // pred_region
        _
      $region48: #{improved_molecular_nn.1} parent=11 // pred_fallthru
        _
      // Predicated region
      $region49: #{improved_molecular_nn.1} parent=11 // pred_check
        %p321 = pneg %p253
      $region50: #{improved_molecular_nn.1} parent=11 // pred_check_branch
        %323 = sbr.rel (%p321) target = $region52
      $region51: #{improved_molecular_nn.1} parent=11 // pred_region
        _
      $region52: #{improved_molecular_nn.1} parent=11 // pred_fallthru
        _
    $region12: #{improved_molecular_nn.1} parent=5 // pred_fallthru
      _
    %p324 = scmp.lt.s32.totalorder %s17, 2
    // Predicated region
    $region53: #{improved_molecular_nn.1} parent=5 // pred_check
      %p325 = pneg %p324
    $region54: #{improved_molecular_nn.1} parent=5 // pred_check_branch
      %327 = sbr.rel (%p325) target = $region56
    $region55: #{improved_molecular_nn.1} parent=5 // pred_region
      // Predicated region
      $region57: #{improved_molecular_nn.1} parent=55 // pred_check
        %p328 = pneg %p37
      $region58: #{improved_molecular_nn.1} parent=55 // pred_check_branch
        %330 = sbr.rel (%p328) target = $region60
      $region59: #{improved_molecular_nn.1} parent=55 // pred_region
        %s331 = smul.u32 32, %s17
        %p332 = scmp.lt.s32.totalorder %s331, 63
        %s333 = scalar_select %p332, %s331, 63
        %s334 = smul.addr %s333, 2
        %s335 = smul.addr %s334, 4
        %s336 = scalar_lea.vmem %s0, %s335
        %s337 = smul.u32 32, %s17
      $region60: #{improved_molecular_nn.1} parent=55 // pred_fallthru
        _
    $region56: #{improved_molecular_nn.1} parent=5 // pred_fallthru
      _
    %p338 = scmp.le.s32.totalorder 1, %s17
    %p339 = scmp.lt.s32.totalorder %s17, 3
    %p340 = pnand %p338, %p339
    %p341 = pneg %p340
    // Predicated region
    $region61: #{improved_molecular_nn.1} parent=5 // pred_check
      _
    $region62: #{improved_molecular_nn.1} parent=5 // pred_check_branch
      %343 = sbr.rel (%p340) target = $region64
    $region63: #{improved_molecular_nn.1} parent=5 // pred_region
      %s344 = ssub.s32 %s17, 1
      %s345 = smul.u32 32, %s22
      %p346 = scmp.lt.s32.totalorder %s345, 63
      %s347 = scalar_select %p346, %s345, 63
      %s348 = smul.addr %s347, 2
      %s349 = smul.addr %s348, 4
      %s350 = scalar_lea.vmem %s0, %s349
      %p351 = pneg %p43
      %p352 = pneg %p40
      %p353 = pneg %p64
      %p354 = pneg %p61
      %p355 = pneg %p85
      %p356 = pneg %p82
      %p357 = pneg %p106
      %p358 = pneg %p103
      %p359 = pneg %p127
      %p360 = pneg %p124
      %p361 = pneg %p148
      %p362 = pneg %p145
      %p363 = pneg %p169
      %p364 = pneg %p166
      %p365 = pneg %p190
      %p366 = pneg %p187
      %p367 = pneg %p211
      %p368 = pneg %p208
      %p369 = pneg %p232
      %p370 = pneg %p229
      %p371 = pneg %p253
      %p372 = pneg %p250
      %p373 = pneg %p279
      %p374 = pneg %p276
      %s375 = smul.u32 32, %s22
      %p376 = scmp.lt.s32.totalorder %s375, 63
      %s377 = scalar_select %p376, %s375, 63
      %s378 = smul.addr %s377, 8
      %s379 = scalar_lea.vmem %s11, %s378
      %s380 = smul.u32 32, %s22
      %p381 = scmp.lt.s32.totalorder %s380, 63
      %s382 = scalar_select %p381, %s380, 63
      %s383 = smul.addr %s382, 2
      %s384 = smul.addr %s383, 4
      %s385 = scalar_lea.vmem %s0, %s384
      %s386 = smul.u32 32, %s22
      %s387 = smul.u32 32, %s22
      %p388 = scmp.lt.s32.totalorder %s387, 63
      %s389 = scalar_select %p388, %s387, 63
      %s390 = smul.addr %s389, 8
      %s391 = scalar_lea.vmem %s11, %s390
      %s392 = smul.u32 32, %s22
      %v394 = vld [vmem:[%s385] sm:$0xff]
      %v395 = vld [vmem:[%s385 + $0x8] sm:$0xff]
      %v396 = vld [vmem:[%s385 + $0x10] sm:$0xff]
      %v397 = vld [vmem:[%s385 + $0x18] sm:$0xff]
      %v398 = vld [vmem:[%s385 + $0x20] sm:$0xff]
      %v399 = vld [vmem:[%s385 + $0x28] sm:$0xff]
      %v400 = vld [vmem:[%s385 + $0x30] sm:$0xff]
      %v401 = vld [vmem:[%s385 + $0x38] sm:$0xff]
      %v402 = vld [vmem:[%s385 + $0x40] sm:$0xff]
      %v403 = vld [vmem:[%s385 + $0x48] sm:$0xff]
      %v404 = vld [vmem:[%s385 + $0x50] sm:$0xff]
      %v405 = vld [vmem:[%s385 + $0x58] sm:$0xff]
      %v406 = vld [vmem:[%s385 + $0x60] sm:$0xff]
      %v407 = vld [vmem:[%s385 + $0x68] sm:$0xff]
      %v408 = vld [vmem:[%s385 + $0x70] sm:$0xff]
      %v409 = vld [vmem:[%s385 + $0x78] sm:$0xff]
      %v410 = vld [vmem:[%s385 + $0x80] sm:$0xff]
      %v411 = vld [vmem:[%s385 + $0x88] sm:$0xff]
      %v412 = vld [vmem:[%s385 + $0x90] sm:$0xff]
      %v413 = vld [vmem:[%s385 + $0x98] sm:$0xff]
      %v414 = vld [vmem:[%s385 + $0xa0] sm:$0xff]
      %v415 = vld [vmem:[%s385 + $0xa8] sm:$0xff]
      %v416 = vld [vmem:[%s385 + $0xb0] sm:$0xff]
      %v417 = vld [vmem:[%s385 + $0xb8] sm:$0xff]
      %v418 = vld [vmem:[%s385 + $0xc0] sm:$0xff]
      %v419 = vld [vmem:[%s385 + $0xc8] sm:$0xff]
      %v420 = vld [vmem:[%s385 + $0xd0] sm:$0xff]
      %v421 = vld [vmem:[%s385 + $0xd8] sm:$0xff]
      %v422 = vld [vmem:[%s385 + $0xe0] sm:$0xff]
      %v423 = vld [vmem:[%s385 + $0xe8] sm:$0xff]
      %v424 = vld [vmem:[%s385 + $0xf0] sm:$0xff]
      %v425 = vld [vmem:[%s385 + $0xf8] sm:$0xff]
      %v426 = vld [vmem:[%s1] sm:$0xff]
      %v427 = vld [vmem:[%s1 + $0x8] sm:$0xff]
      %v428 = vld [vmem:[%s1 + $0x10] sm:$0xff]
      %v429 = vld [vmem:[%s1 + $0x18] sm:$0xff]
      %v430 = vld [vmem:[%s1 + $0x20] sm:$0xff]
      %v431 = vld [vmem:[%s1 + $0x28] sm:$0xff]
      %v432 = vld [vmem:[%s1 + $0x30] sm:$0xff]
      %v433 = vld [vmem:[%s1 + $0x38] sm:$0xff]
      %v434 = vld [vmem:[%s1 + $0x40] sm:$0xff]
      %v435 = vld [vmem:[%s1 + $0x48] sm:$0xff]
      %v436 = vld [vmem:[%s1 + $0x50] sm:$0xff]
      %v437 = vld [vmem:[%s1 + $0x58] sm:$0xff]
      %v438 = vld [vmem:[%s1 + $0x60] sm:$0xff]
      %v439 = vld [vmem:[%s1 + $0x68] sm:$0xff]
      %v440 = vld [vmem:[%s1 + $0x70] sm:$0xff]
      %v441 = vld [vmem:[%s1 + $0x78] sm:$0xff]
      %v442 = vld [vmem:[%s1 + $0x80] sm:$0xff]
      %v443 = vld [vmem:[%s1 + $0x88] sm:$0xff]
      %v444 = vld [vmem:[%s1 + $0x90] sm:$0xff]
      %v445 = vld [vmem:[%s1 + $0x98] sm:$0xff]
      %v446 = vld [vmem:[%s1 + $0xa0] sm:$0xff]
      %v447 = vld [vmem:[%s1 + $0xa8] sm:$0xff]
      %v448 = vld [vmem:[%s1 + $0xb0] sm:$0xff]
      %v449 = vld [vmem:[%s1 + $0xb8] sm:$0xff]
      %v450 = vld [vmem:[%s1 + $0xc0] sm:$0xff]
      %v451 = vld [vmem:[%s1 + $0xc8] sm:$0xff]
      %v452 = vld [vmem:[%s1 + $0xd0] sm:$0xff]
      %v453 = vld [vmem:[%s1 + $0xd8] sm:$0xff]
      %v454 = vld [vmem:[%s1 + $0xe0] sm:$0xff]
      %v455 = vld [vmem:[%s1 + $0xe8] sm:$0xff]
      %v456 = vld [vmem:[%s1 + $0xf0] sm:$0xff]
      %v457 = vld [vmem:[%s1 + $0xf8] sm:$0xff]
      %v458 = vld [vmem:[%s1 + $0x100] sm:$0xff]
      %v459 = vld [vmem:[%s1 + $0x108] sm:$0xff]
      %v460 = vld [vmem:[%s1 + $0x110] sm:$0xff]
      %v461 = vld [vmem:[%s1 + $0x118] sm:$0xff]
      %v462 = vld [vmem:[%s1 + $0x120] sm:$0xff]
      %v463 = vld [vmem:[%s1 + $0x128] sm:$0xff]
      %v464 = vld [vmem:[%s1 + $0x130] sm:$0xff]
      %v465 = vld [vmem:[%s1 + $0x138] sm:$0xff]
      %v466 = vld [vmem:[%s1 + $0x140] sm:$0xff]
      %v467 = vld [vmem:[%s1 + $0x148] sm:$0xff]
      %v468 = vld [vmem:[%s1 + $0x150] sm:$0xff]
      %v469 = vld [vmem:[%s1 + $0x158] sm:$0xff]
      %v470 = vld [vmem:[%s1 + $0x160] sm:$0xff]
      %v471 = vld [vmem:[%s1 + $0x168] sm:$0xff]
      %v472 = vld [vmem:[%s1 + $0x170] sm:$0xff]
      %v473 = vld [vmem:[%s1 + $0x178] sm:$0xff]
      %v474 = vld [vmem:[%s1 + $0x180] sm:$0xff]
      %v475 = vld [vmem:[%s1 + $0x188] sm:$0xff]
      %v476 = vld [vmem:[%s1 + $0x190] sm:$0xff]
      %v477 = vld [vmem:[%s1 + $0x198] sm:$0xff]
      %v478 = vld [vmem:[%s1 + $0x1a0] sm:$0xff]
      %v479 = vld [vmem:[%s1 + $0x1a8] sm:$0xff]
      %v480 = vld [vmem:[%s1 + $0x1b0] sm:$0xff]
      %v481 = vld [vmem:[%s1 + $0x1b8] sm:$0xff]
      %v482 = vld [vmem:[%s1 + $0x1c0] sm:$0xff]
      %v483 = vld [vmem:[%s1 + $0x1c8] sm:$0xff]
      %v484 = vld [vmem:[%s1 + $0x1d0] sm:$0xff]
      %v485 = vld [vmem:[%s1 + $0x1d8] sm:$0xff]
      %v486 = vld [vmem:[%s1 + $0x1e0] sm:$0xff]
      %v487 = vld [vmem:[%s1 + $0x1e8] sm:$0xff]
      %v488 = vld [vmem:[%s1 + $0x1f0] sm:$0xff]
      %v489 = vld [vmem:[%s1 + $0x1f8] sm:$0xff]
      %v490 = vld [vmem:[%s2] sm:$0xf]
      %v492 = vperm.slane %v490, 0
      %v493 = vperm.slane %v490, 1
      %v494 = vperm.slane %v490, 2
      %v495 = vperm.slane %v490, 3
      %v532 = vunpack.c.l.b16 %v394
      %v533 = vunpack.c.h.b16 %v394
      %v534 = vunpack.c.l.b16 %v395
      %v535 = vunpack.c.h.b16 %v395
      %v536 = vunpack.c.l.b16 %v396
      %v537 = vunpack.c.h.b16 %v396
      %v538 = vunpack.c.l.b16 %v397
      %v539 = vunpack.c.h.b16 %v397
      %v540 = vunpack.c.l.b16 %v398
      %v541 = vunpack.c.h.b16 %v398
      %v542 = vunpack.c.l.b16 %v399
      %v543 = vunpack.c.h.b16 %v399
      %v544 = vunpack.c.l.b16 %v400
      %v545 = vunpack.c.h.b16 %v400
      %v546 = vunpack.c.l.b16 %v401
      %v547 = vunpack.c.h.b16 %v401
      %v548 = vunpack.c.l.b16 %v402
      %v549 = vunpack.c.h.b16 %v402
      %v550 = vunpack.c.l.b16 %v403
      %v551 = vunpack.c.h.b16 %v403
      %v552 = vunpack.c.l.b16 %v404
      %v553 = vunpack.c.h.b16 %v404
      %v554 = vunpack.c.l.b16 %v405
      %v555 = vunpack.c.h.b16 %v405
      %v556 = vunpack.c.l.b16 %v406
      %v557 = vunpack.c.h.b16 %v406
      %v558 = vunpack.c.l.b16 %v407
      %v559 = vunpack.c.h.b16 %v407
      %v560 = vunpack.c.l.b16 %v408
      %v561 = vunpack.c.h.b16 %v408
      %v562 = vunpack.c.l.b16 %v409
      %v563 = vunpack.c.h.b16 %v409
      %v564 = vunpack.c.l.b16 %v410
      %v565 = vunpack.c.h.b16 %v410
      %v566 = vunpack.c.l.b16 %v411
      %v567 = vunpack.c.h.b16 %v411
      %v568 = vunpack.c.l.b16 %v412
      %v569 = vunpack.c.h.b16 %v412
      %v570 = vunpack.c.l.b16 %v413
      %v571 = vunpack.c.h.b16 %v413
      %v572 = vunpack.c.l.b16 %v414
      %v573 = vunpack.c.h.b16 %v414
      %v574 = vunpack.c.l.b16 %v415
      %v575 = vunpack.c.h.b16 %v415
      %v576 = vunpack.c.l.b16 %v416
      %v577 = vunpack.c.h.b16 %v416
      %v578 = vunpack.c.l.b16 %v417
      %v579 = vunpack.c.h.b16 %v417
      %v580 = vunpack.c.l.b16 %v418
      %v581 = vunpack.c.h.b16 %v418
      %v582 = vunpack.c.l.b16 %v419
      %v583 = vunpack.c.h.b16 %v419
      %v584 = vunpack.c.l.b16 %v420
      %v585 = vunpack.c.h.b16 %v420
      %v586 = vunpack.c.l.b16 %v421
      %v587 = vunpack.c.h.b16 %v421
      %v588 = vunpack.c.l.b16 %v422
      %v589 = vunpack.c.h.b16 %v422
      %v590 = vunpack.c.l.b16 %v423
      %v591 = vunpack.c.h.b16 %v423
      %v592 = vunpack.c.l.b16 %v424
      %v593 = vunpack.c.h.b16 %v424
      %v594 = vunpack.c.l.b16 %v425
      %v595 = vunpack.c.h.b16 %v425
      %v596 = vpack.c.b16 %v534, %v532
      %v597 = vpack.c.b16 %v535, %v533
      %v598 = vpack.c.b16 %v538, %v536
      %v599 = vpack.c.b16 %v539, %v537
      %v600 = vpack.c.b16 %v542, %v540
      %v601 = vpack.c.b16 %v543, %v541
      %v602 = vpack.c.b16 %v546, %v544
      %v603 = vpack.c.b16 %v547, %v545
      %v604 = vpack.c.b16 %v550, %v548
      %v605 = vpack.c.b16 %v551, %v549
      %v606 = vpack.c.b16 %v554, %v552
      %v607 = vpack.c.b16 %v555, %v553
      %v608 = vpack.c.b16 %v558, %v556
      %v609 = vpack.c.b16 %v559, %v557
      %v610 = vpack.c.b16 %v562, %v560
      %v611 = vpack.c.b16 %v563, %v561
      %v612 = vpack.c.b16 %v566, %v564
      %v613 = vpack.c.b16 %v567, %v565
      %v614 = vpack.c.b16 %v570, %v568
      %v615 = vpack.c.b16 %v571, %v569
      %v616 = vpack.c.b16 %v574, %v572
      %v617 = vpack.c.b16 %v575, %v573
      %v618 = vpack.c.b16 %v578, %v576
      %v619 = vpack.c.b16 %v579, %v577
      %v620 = vpack.c.b16 %v582, %v580
      %v621 = vpack.c.b16 %v583, %v581
      %v622 = vpack.c.b16 %v586, %v584
      %v623 = vpack.c.b16 %v587, %v585
      %v624 = vpack.c.b16 %v590, %v588
      %v625 = vpack.c.b16 %v591, %v589
      %v626 = vpack.c.b16 %v594, %v592
      %v627 = vpack.c.b16 %v595, %v593
      %v724 = vunpack.c.l.b16 %v426
      %v725 = vunpack.c.h.b16 %v426
      %v726 = vunpack.c.l.b16 %v427
      %v727 = vunpack.c.h.b16 %v427
      %v728 = vunpack.c.l.b16 %v428
      %v729 = vunpack.c.h.b16 %v428
      %v730 = vunpack.c.l.b16 %v429
      %v731 = vunpack.c.h.b16 %v429
      %v732 = vunpack.c.l.b16 %v430
      %v733 = vunpack.c.h.b16 %v430
      %v734 = vunpack.c.l.b16 %v431
      %v735 = vunpack.c.h.b16 %v431
      %v736 = vunpack.c.l.b16 %v432
      %v737 = vunpack.c.h.b16 %v432
      %v738 = vunpack.c.l.b16 %v433
      %v739 = vunpack.c.h.b16 %v433
      %v740 = vunpack.c.l.b16 %v434
      %v741 = vunpack.c.h.b16 %v434
      %v742 = vunpack.c.l.b16 %v435
      %v743 = vunpack.c.h.b16 %v435
      %v744 = vunpack.c.l.b16 %v436
      %v745 = vunpack.c.h.b16 %v436
      %v746 = vunpack.c.l.b16 %v437
      %v747 = vunpack.c.h.b16 %v437
      %v748 = vunpack.c.l.b16 %v438
      %v749 = vunpack.c.h.b16 %v438
      %v750 = vunpack.c.l.b16 %v439
      %v751 = vunpack.c.h.b16 %v439
      %v752 = vunpack.c.l.b16 %v440
      %v753 = vunpack.c.h.b16 %v440
      %v754 = vunpack.c.l.b16 %v441
      %v755 = vunpack.c.h.b16 %v441
      %v756 = vunpack.c.l.b16 %v442
      %v757 = vunpack.c.h.b16 %v442
      %v758 = vunpack.c.l.b16 %v443
      %v759 = vunpack.c.h.b16 %v443
      %v760 = vunpack.c.l.b16 %v444
      %v761 = vunpack.c.h.b16 %v444
      %v762 = vunpack.c.l.b16 %v445
      %v763 = vunpack.c.h.b16 %v445
      %v764 = vunpack.c.l.b16 %v446
      %v765 = vunpack.c.h.b16 %v446
      %v766 = vunpack.c.l.b16 %v447
      %v767 = vunpack.c.h.b16 %v447
      %v768 = vunpack.c.l.b16 %v448
      %v769 = vunpack.c.h.b16 %v448
      %v770 = vunpack.c.l.b16 %v449
      %v771 = vunpack.c.h.b16 %v449
      %v772 = vunpack.c.l.b16 %v450
      %v773 = vunpack.c.h.b16 %v450
      %v774 = vunpack.c.l.b16 %v451
      %v775 = vunpack.c.h.b16 %v451
      %v776 = vunpack.c.l.b16 %v452
      %v777 = vunpack.c.h.b16 %v452
      %v778 = vunpack.c.l.b16 %v453
      %v779 = vunpack.c.h.b16 %v453
      %v780 = vunpack.c.l.b16 %v454
      %v781 = vunpack.c.h.b16 %v454
      %v782 = vunpack.c.l.b16 %v455
      %v783 = vunpack.c.h.b16 %v455
      %v784 = vunpack.c.l.b16 %v456
      %v785 = vunpack.c.h.b16 %v456
      %v786 = vunpack.c.l.b16 %v457
      %v787 = vunpack.c.h.b16 %v457
      %v788 = vunpack.c.l.b16 %v458
      %v789 = vunpack.c.h.b16 %v458
      %v790 = vunpack.c.l.b16 %v459
      %v791 = vunpack.c.h.b16 %v459
      %v792 = vunpack.c.l.b16 %v460
      %v793 = vunpack.c.h.b16 %v460
      %v794 = vunpack.c.l.b16 %v461
      %v795 = vunpack.c.h.b16 %v461
      %v796 = vunpack.c.l.b16 %v462
      %v797 = vunpack.c.h.b16 %v462
      %v798 = vunpack.c.l.b16 %v463
      %v799 = vunpack.c.h.b16 %v463
      %v800 = vunpack.c.l.b16 %v464
      %v801 = vunpack.c.h.b16 %v464
      %v802 = vunpack.c.l.b16 %v465
      %v803 = vunpack.c.h.b16 %v465
      %v804 = vunpack.c.l.b16 %v466
      %v805 = vunpack.c.h.b16 %v466
      %v806 = vunpack.c.l.b16 %v467
      %v807 = vunpack.c.h.b16 %v467
      %v808 = vunpack.c.l.b16 %v468
      %v809 = vunpack.c.h.b16 %v468
      %v810 = vunpack.c.l.b16 %v469
      %v811 = vunpack.c.h.b16 %v469
      %v812 = vunpack.c.l.b16 %v470
      %v813 = vunpack.c.h.b16 %v470
      %v814 = vunpack.c.l.b16 %v471
      %v815 = vunpack.c.h.b16 %v471
      %v816 = vunpack.c.l.b16 %v472
      %v817 = vunpack.c.h.b16 %v472
      %v818 = vunpack.c.l.b16 %v473
      %v819 = vunpack.c.h.b16 %v473
      %v820 = vunpack.c.l.b16 %v474
      %v821 = vunpack.c.h.b16 %v474
      %v822 = vunpack.c.l.b16 %v475
      %v823 = vunpack.c.h.b16 %v475
      %v824 = vunpack.c.l.b16 %v476
      %v825 = vunpack.c.h.b16 %v476
      %v826 = vunpack.c.l.b16 %v477
      %v827 = vunpack.c.h.b16 %v477
      %v828 = vunpack.c.l.b16 %v478
      %v829 = vunpack.c.h.b16 %v478
      %v830 = vunpack.c.l.b16 %v479
      %v831 = vunpack.c.h.b16 %v479
      %v832 = vunpack.c.l.b16 %v480
      %v833 = vunpack.c.h.b16 %v480
      %v834 = vunpack.c.l.b16 %v481
      %v835 = vunpack.c.h.b16 %v481
      %v836 = vunpack.c.l.b16 %v482
      %v837 = vunpack.c.h.b16 %v482
      %v838 = vunpack.c.l.b16 %v483
      %v839 = vunpack.c.h.b16 %v483
      %v840 = vunpack.c.l.b16 %v484
      %v841 = vunpack.c.h.b16 %v484
      %v842 = vunpack.c.l.b16 %v485
      %v843 = vunpack.c.h.b16 %v485
      %v844 = vunpack.c.l.b16 %v486
      %v845 = vunpack.c.h.b16 %v486
      %v846 = vunpack.c.l.b16 %v487
      %v847 = vunpack.c.h.b16 %v487
      %v848 = vunpack.c.l.b16 %v488
      %v849 = vunpack.c.h.b16 %v488
      %v850 = vunpack.c.l.b16 %v489
      %v851 = vunpack.c.h.b16 %v489
      %v852 = vpack.c.b16 %v728, %v724
      %v853 = vpack.c.b16 %v729, %v725
      %v854 = vpack.c.b16 %v730, %v726
      %v855 = vpack.c.b16 %v731, %v727
      %v856 = vpack.c.b16 %v736, %v732
      %v857 = vpack.c.b16 %v737, %v733
      %v858 = vpack.c.b16 %v738, %v734
      %v859 = vpack.c.b16 %v739, %v735
      %v860 = vpack.c.b16 %v744, %v740
      %v861 = vpack.c.b16 %v745, %v741
      %v862 = vpack.c.b16 %v746, %v742
      %v863 = vpack.c.b16 %v747, %v743
      %v864 = vpack.c.b16 %v752, %v748
      %v865 = vpack.c.b16 %v753, %v749
      %v866 = vpack.c.b16 %v754, %v750
      %v867 = vpack.c.b16 %v755, %v751
      %v868 = vpack.c.b16 %v760, %v756
      %v869 = vpack.c.b16 %v761, %v757
      %v870 = vpack.c.b16 %v762, %v758
      %v871 = vpack.c.b16 %v763, %v759
      %v872 = vpack.c.b16 %v768, %v764
      %v873 = vpack.c.b16 %v769, %v765
      %v874 = vpack.c.b16 %v770, %v766
      %v875 = vpack.c.b16 %v771, %v767
      %v876 = vpack.c.b16 %v776, %v772
      %v877 = vpack.c.b16 %v777, %v773
      %v878 = vpack.c.b16 %v778, %v774
      %v879 = vpack.c.b16 %v779, %v775
      %v880 = vpack.c.b16 %v784, %v780
      %v881 = vpack.c.b16 %v785, %v781
      %v882 = vpack.c.b16 %v786, %v782
      %v883 = vpack.c.b16 %v787, %v783
      %v884 = vpack.c.b16 %v792, %v788
      %v885 = vpack.c.b16 %v793, %v789
      %v886 = vpack.c.b16 %v794, %v790
      %v887 = vpack.c.b16 %v795, %v791
      %v888 = vpack.c.b16 %v800, %v796
      %v889 = vpack.c.b16 %v801, %v797
      %v890 = vpack.c.b16 %v802, %v798
      %v891 = vpack.c.b16 %v803, %v799
      %v892 = vpack.c.b16 %v808, %v804
      %v893 = vpack.c.b16 %v809, %v805
      %v894 = vpack.c.b16 %v810, %v806
      %v895 = vpack.c.b16 %v811, %v807
      %v896 = vpack.c.b16 %v816, %v812
      %v897 = vpack.c.b16 %v817, %v813
      %v898 = vpack.c.b16 %v818, %v814
      %v899 = vpack.c.b16 %v819, %v815
      %v900 = vpack.c.b16 %v824, %v820
      %v901 = vpack.c.b16 %v825, %v821
      %v902 = vpack.c.b16 %v826, %v822
      %v903 = vpack.c.b16 %v827, %v823
      %v904 = vpack.c.b16 %v832, %v828
      %v905 = vpack.c.b16 %v833, %v829
      %v906 = vpack.c.b16 %v834, %v830
      %v907 = vpack.c.b16 %v835, %v831
      %v908 = vpack.c.b16 %v840, %v836
      %v909 = vpack.c.b16 %v841, %v837
      %v910 = vpack.c.b16 %v842, %v838
      %v911 = vpack.c.b16 %v843, %v839
      %v912 = vpack.c.b16 %v848, %v844
      %v913 = vpack.c.b16 %v849, %v845
      %v914 = vpack.c.b16 %v850, %v846
      %v915 = vpack.c.b16 %v851, %v847
      %980 = vmatpush.bf16.msra.mxu0 %v880
      %981 = vmatpush.bf16.msra.mxu0 %v876
      %982 = vmatpush.bf16.msra.mxu0 %v872
      %983 = vmatpush.bf16.msra.mxu0 %v868
      %984 = vmatpush.bf16.msra.mxu0 %v864
      %985 = vmatpush.bf16.msra.mxu0 %v860
      %986 = vmatpush.bf16.msra.mxu0 %v856
      %987 = vmatpush.bf16.msra.mxu0 %v852
      %988 = vmatmul.bf16.gmra.mxu0 %v596
      %v989 = vpop.f32.mrf.mxu0
      %v990 = vadd.f32 %v492, %v989
      %v991 = vpop.f32.mrf.mxu0
      %v992 = vadd.f32 %v492, %v991
      %993 = vmatmul.bf16.gmra.mxu0 %v598
      %v994 = vpop.f32.mrf.mxu0
      %v995 = vadd.f32 %v492, %v994
      %v996 = vpop.f32.mrf.mxu0
      %v997 = vadd.f32 %v492, %v996
      %998 = vmatmul.bf16.gmra.mxu0 %v600
      %v999 = vpop.f32.mrf.mxu0
      %v1000 = vadd.f32 %v492, %v999
      %v1001 = vpop.f32.mrf.mxu0
      %v1002 = vadd.f32 %v492, %v1001
      %1003 = vmatmul.bf16.gmra.mxu0 %v602
      %v1004 = vpop.f32.mrf.mxu0
      %v1005 = vadd.f32 %v492, %v1004
      %v1006 = vpop.f32.mrf.mxu0
      %v1007 = vadd.f32 %v492, %v1006
      %1008 = vmatmul.bf16.gmra.mxu0 %v604
      %v1009 = vpop.f32.mrf.mxu0
      %v1010 = vadd.f32 %v492, %v1009
      %v1011 = vpop.f32.mrf.mxu0
      %v1012 = vadd.f32 %v492, %v1011
      %1013 = vmatmul.bf16.gmra.mxu0 %v606
      %v1014 = vpop.f32.mrf.mxu0
      %v1015 = vadd.f32 %v492, %v1014
      %v1016 = vpop.f32.mrf.mxu0
      %v1017 = vadd.f32 %v492, %v1016
      %1018 = vmatmul.bf16.gmra.mxu0 %v608
      %v1019 = vpop.f32.mrf.mxu0
      %v1020 = vadd.f32 %v492, %v1019
      %v1021 = vpop.f32.mrf.mxu0
      %v1022 = vadd.f32 %v492, %v1021
      %1023 = vmatmul.bf16.gmra.mxu0 %v610
      %v1024 = vpop.f32.mrf.mxu0
      %v1025 = vadd.f32 %v492, %v1024
      %v1026 = vpop.f32.mrf.mxu0
      %v1027 = vadd.f32 %v492, %v1026
      %1028 = vmatmul.bf16.gmra.mxu0 %v612
      %v1029 = vpop.f32.mrf.mxu0
      %v1030 = vadd.f32 %v492, %v1029
      %v1031 = vpop.f32.mrf.mxu0
      %v1032 = vadd.f32 %v492, %v1031
      %1033 = vmatmul.bf16.gmra.mxu0 %v614
      %v1034 = vpop.f32.mrf.mxu0
      %v1035 = vadd.f32 %v492, %v1034
      %v1036 = vpop.f32.mrf.mxu0
      %v1037 = vadd.f32 %v492, %v1036
      %1038 = vmatmul.bf16.gmra.mxu0 %v616
      %v1039 = vpop.f32.mrf.mxu0
      %v1040 = vadd.f32 %v492, %v1039
      %v1041 = vpop.f32.mrf.mxu0
      %v1042 = vadd.f32 %v492, %v1041
      %1043 = vmatmul.bf16.gmra.mxu0 %v618
      %v1044 = vpop.f32.mrf.mxu0
      %v1045 = vadd.f32 %v492, %v1044
      %v1046 = vpop.f32.mrf.mxu0
      %v1047 = vadd.f32 %v492, %v1046
      %1048 = vmatmul.bf16.gmra.mxu0 %v620
      %v1049 = vpop.f32.mrf.mxu0
      %v1050 = vadd.f32 %v492, %v1049
      %v1051 = vpop.f32.mrf.mxu0
      %v1052 = vadd.f32 %v492, %v1051
      %1053 = vmatmul.bf16.gmra.mxu0 %v622
      %v1054 = vpop.f32.mrf.mxu0
      %v1055 = vadd.f32 %v492, %v1054
      %v1056 = vpop.f32.mrf.mxu0
      %v1057 = vadd.f32 %v492, %v1056
      %1058 = vmatmul.bf16.gmra.mxu0 %v624
      %v1059 = vpop.f32.mrf.mxu0
      %v1060 = vadd.f32 %v492, %v1059
      %v1061 = vpop.f32.mrf.mxu0
      %v1062 = vadd.f32 %v492, %v1061
      %1063 = vmatmul.bf16.gmra.mxu0 %v626
      %v1064 = vpop.f32.mrf.mxu0
      %v1065 = vadd.f32 %v492, %v1064
      %v1066 = vpop.f32.mrf.mxu0
      %v1067 = vadd.f32 %v492, %v1066
      %1068 = vdwg.mxu0
      %1069 = vmatpush.bf16.msra.mxu0 %v912
      %1070 = vmatpush.bf16.msra.mxu0 %v908
      %1071 = vmatpush.bf16.msra.mxu0 %v904
      %1072 = vmatpush.bf16.msra.mxu0 %v900
      %1073 = vmatpush.bf16.msra.mxu0 %v896
      %1074 = vmatpush.bf16.msra.mxu0 %v892
      %1075 = vmatpush.bf16.msra.mxu0 %v888
      %1076 = vmatpush.bf16.msra.mxu0 %v884
      %1077 = vmatmul.bf16.gmra.mxu0 %v597
      %v1078 = vpop.f32.mrf.mxu0
      %v1079 = vadd.f32 %v990, %v1078
      %v1080 = vpop.f32.mrf.mxu0
      %v1081 = vadd.f32 %v992, %v1080
      %1082 = vmatmul.bf16.gmra.mxu0 %v599
      %v1083 = vpop.f32.mrf.mxu0
      %v1084 = vadd.f32 %v995, %v1083
      %v1085 = vpop.f32.mrf.mxu0
      %v1086 = vadd.f32 %v997, %v1085
      %1087 = vmatmul.bf16.gmra.mxu0 %v601
      %v1088 = vpop.f32.mrf.mxu0
      %v1089 = vadd.f32 %v1000, %v1088
      %v1090 = vpop.f32.mrf.mxu0
      %v1091 = vadd.f32 %v1002, %v1090
      %1092 = vmatmul.bf16.gmra.mxu0 %v603
      %v1093 = vpop.f32.mrf.mxu0
      %v1094 = vadd.f32 %v1005, %v1093
      %v1095 = vpop.f32.mrf.mxu0
      %v1096 = vadd.f32 %v1007, %v1095
      %1097 = vmatmul.bf16.gmra.mxu0 %v605
      %v1098 = vpop.f32.mrf.mxu0
      %v1099 = vadd.f32 %v1010, %v1098
      %v1100 = vpop.f32.mrf.mxu0
      %v1101 = vadd.f32 %v1012, %v1100
      %1102 = vmatmul.bf16.gmra.mxu0 %v607
      %v1103 = vpop.f32.mrf.mxu0
      %v1104 = vadd.f32 %v1015, %v1103
      %v1105 = vpop.f32.mrf.mxu0
      %v1106 = vadd.f32 %v1017, %v1105
      %1107 = vmatmul.bf16.gmra.mxu0 %v609
      %v1108 = vpop.f32.mrf.mxu0
      %v1109 = vadd.f32 %v1020, %v1108
      %v1110 = vpop.f32.mrf.mxu0
      %v1111 = vadd.f32 %v1022, %v1110
      %1112 = vmatmul.bf16.gmra.mxu0 %v611
      %v1113 = vpop.f32.mrf.mxu0
      %v1114 = vadd.f32 %v1025, %v1113
      %v1115 = vpop.f32.mrf.mxu0
      %v1116 = vadd.f32 %v1027, %v1115
      %1117 = vmatmul.bf16.gmra.mxu0 %v613
      %v1118 = vpop.f32.mrf.mxu0
      %v1119 = vadd.f32 %v1030, %v1118
      %v1120 = vpop.f32.mrf.mxu0
      %v1121 = vadd.f32 %v1032, %v1120
      %1122 = vmatmul.bf16.gmra.mxu0 %v615
      %v1123 = vpop.f32.mrf.mxu0
      %v1124 = vadd.f32 %v1035, %v1123
      %v1125 = vpop.f32.mrf.mxu0
      %v1126 = vadd.f32 %v1037, %v1125
      %1127 = vmatmul.bf16.gmra.mxu0 %v617
      %v1128 = vpop.f32.mrf.mxu0
      %v1129 = vadd.f32 %v1040, %v1128
      %v1130 = vpop.f32.mrf.mxu0
      %v1131 = vadd.f32 %v1042, %v1130
      %1132 = vmatmul.bf16.gmra.mxu0 %v619
      %v1133 = vpop.f32.mrf.mxu0
      %v1134 = vadd.f32 %v1045, %v1133
      %v1135 = vpop.f32.mrf.mxu0
      %v1136 = vadd.f32 %v1047, %v1135
      %1137 = vmatmul.bf16.gmra.mxu0 %v621
      %v1138 = vpop.f32.mrf.mxu0
      %v1139 = vadd.f32 %v1050, %v1138
      %v1140 = vpop.f32.mrf.mxu0
      %v1141 = vadd.f32 %v1052, %v1140
      %1142 = vmatmul.bf16.gmra.mxu0 %v623
      %v1143 = vpop.f32.mrf.mxu0
      %v1144 = vadd.f32 %v1055, %v1143
      %v1145 = vpop.f32.mrf.mxu0
      %v1146 = vadd.f32 %v1057, %v1145
      %1147 = vmatmul.bf16.gmra.mxu0 %v625
      %v1148 = vpop.f32.mrf.mxu0
      %v1149 = vadd.f32 %v1060, %v1148
      %v1150 = vpop.f32.mrf.mxu0
      %v1151 = vadd.f32 %v1062, %v1150
      %1152 = vmatmul.bf16.gmra.mxu0 %v627
      %v1153 = vpop.f32.mrf.mxu0
      %v1154 = vadd.f32 %v1065, %v1153
      %v1155 = vpop.f32.mrf.mxu0
      %v1156 = vadd.f32 %v1067, %v1155
      %1157 = vdwg.mxu0
      %1158 = vmatpush.bf16.msra.mxu0 %v881
      %1159 = vmatpush.bf16.msra.mxu0 %v877
      %1160 = vmatpush.bf16.msra.mxu0 %v873
      %1161 = vmatpush.bf16.msra.mxu0 %v869
      %1162 = vmatpush.bf16.msra.mxu0 %v865
      %1163 = vmatpush.bf16.msra.mxu0 %v861
      %1164 = vmatpush.bf16.msra.mxu0 %v857
      %1165 = vmatpush.bf16.msra.mxu0 %v853
      %1166 = vmatmul.bf16.gmra.mxu0 %v596
      %v1167 = vpop.f32.mrf.mxu0
      %v1168 = vadd.f32 %v493, %v1167
      %v1169 = vpop.f32.mrf.mxu0
      %v1170 = vadd.f32 %v493, %v1169
      %1171 = vmatmul.bf16.gmra.mxu0 %v598
      %v1172 = vpop.f32.mrf.mxu0
      %v1173 = vadd.f32 %v493, %v1172
      %v1174 = vpop.f32.mrf.mxu0
      %v1175 = vadd.f32 %v493, %v1174
      %1176 = vmatmul.bf16.gmra.mxu0 %v600
      %v1177 = vpop.f32.mrf.mxu0
      %v1178 = vadd.f32 %v493, %v1177
      %v1179 = vpop.f32.mrf.mxu0
      %v1180 = vadd.f32 %v493, %v1179
      %1181 = vmatmul.bf16.gmra.mxu0 %v602
      %v1182 = vpop.f32.mrf.mxu0
      %v1183 = vadd.f32 %v493, %v1182
      %v1184 = vpop.f32.mrf.mxu0
      %v1185 = vadd.f32 %v493, %v1184
      %1186 = vmatmul.bf16.gmra.mxu0 %v604
      %v1187 = vpop.f32.mrf.mxu0
      %v1188 = vadd.f32 %v493, %v1187
      %v1189 = vpop.f32.mrf.mxu0
      %v1190 = vadd.f32 %v493, %v1189
      %1191 = vmatmul.bf16.gmra.mxu0 %v606
      %v1192 = vpop.f32.mrf.mxu0
      %v1193 = vadd.f32 %v493, %v1192
      %v1194 = vpop.f32.mrf.mxu0
      %v1195 = vadd.f32 %v493, %v1194
      %1196 = vmatmul.bf16.gmra.mxu0 %v608
      %v1197 = vpop.f32.mrf.mxu0
      %v1198 = vadd.f32 %v493, %v1197
      %v1199 = vpop.f32.mrf.mxu0
      %v1200 = vadd.f32 %v493, %v1199
      %1201 = vmatmul.bf16.gmra.mxu0 %v610
      %v1202 = vpop.f32.mrf.mxu0
      %v1203 = vadd.f32 %v493, %v1202
      %v1204 = vpop.f32.mrf.mxu0
      %v1205 = vadd.f32 %v493, %v1204
      %1206 = vmatmul.bf16.gmra.mxu0 %v612
      %v1207 = vpop.f32.mrf.mxu0
      %v1208 = vadd.f32 %v493, %v1207
      %v1209 = vpop.f32.mrf.mxu0
      %v1210 = vadd.f32 %v493, %v1209
      %1211 = vmatmul.bf16.gmra.mxu0 %v614
      %v1212 = vpop.f32.mrf.mxu0
      %v1213 = vadd.f32 %v493, %v1212
      %v1214 = vpop.f32.mrf.mxu0
      %v1215 = vadd.f32 %v493, %v1214
      %1216 = vmatmul.bf16.gmra.mxu0 %v616
      %v1217 = vpop.f32.mrf.mxu0
      %v1218 = vadd.f32 %v493, %v1217
      %v1219 = vpop.f32.mrf.mxu0
      %v1220 = vadd.f32 %v493, %v1219
      %1221 = vmatmul.bf16.gmra.mxu0 %v618
      %v1222 = vpop.f32.mrf.mxu0
      %v1223 = vadd.f32 %v493, %v1222
      %v1224 = vpop.f32.mrf.mxu0
      %v1225 = vadd.f32 %v493, %v1224
      %1226 = vmatmul.bf16.gmra.mxu0 %v620
      %v1227 = vpop.f32.mrf.mxu0
      %v1228 = vadd.f32 %v493, %v1227
      %v1229 = vpop.f32.mrf.mxu0
      %v1230 = vadd.f32 %v493, %v1229
      %1231 = vmatmul.bf16.gmra.mxu0 %v622
      %v1232 = vpop.f32.mrf.mxu0
      %v1233 = vadd.f32 %v493, %v1232
      %v1234 = vpop.f32.mrf.mxu0
      %v1235 = vadd.f32 %v493, %v1234
      %1236 = vmatmul.bf16.gmra.mxu0 %v624
      %v1237 = vpop.f32.mrf.mxu0
      %v1238 = vadd.f32 %v493, %v1237
      %v1239 = vpop.f32.mrf.mxu0
      %v1240 = vadd.f32 %v493, %v1239
      %1241 = vmatmul.bf16.gmra.mxu0 %v626
      %v1242 = vpop.f32.mrf.mxu0
      %v1243 = vadd.f32 %v493, %v1242
      %v1244 = vpop.f32.mrf.mxu0
      %v1245 = vadd.f32 %v493, %v1244
      %1246 = vdwg.mxu0
      %1247 = vmatpush.bf16.msra.mxu0 %v913
      %1248 = vmatpush.bf16.msra.mxu0 %v909
      %1249 = vmatpush.bf16.msra.mxu0 %v905
      %1250 = vmatpush.bf16.msra.mxu0 %v901
      %1251 = vmatpush.bf16.msra.mxu0 %v897
      %1252 = vmatpush.bf16.msra.mxu0 %v893
      %1253 = vmatpush.bf16.msra.mxu0 %v889
      %1254 = vmatpush.bf16.msra.mxu0 %v885
      %1255 = vmatmul.bf16.gmra.mxu0 %v597
      %v1256 = vpop.f32.mrf.mxu0
      %v1257 = vadd.f32 %v1168, %v1256
      %v1258 = vpop.f32.mrf.mxu0
      %v1259 = vadd.f32 %v1170, %v1258
      %1260 = vmatmul.bf16.gmra.mxu0 %v599
      %v1261 = vpop.f32.mrf.mxu0
      %v1262 = vadd.f32 %v1173, %v1261
      %v1263 = vpop.f32.mrf.mxu0
      %v1264 = vadd.f32 %v1175, %v1263
      %1265 = vmatmul.bf16.gmra.mxu0 %v601
      %v1266 = vpop.f32.mrf.mxu0
      %v1267 = vadd.f32 %v1178, %v1266
      %v1268 = vpop.f32.mrf.mxu0
      %v1269 = vadd.f32 %v1180, %v1268
      %1270 = vmatmul.bf16.gmra.mxu0 %v603
      %v1271 = vpop.f32.mrf.mxu0
      %v1272 = vadd.f32 %v1183, %v1271
      %v1273 = vpop.f32.mrf.mxu0
      %v1274 = vadd.f32 %v1185, %v1273
      %1275 = vmatmul.bf16.gmra.mxu0 %v605
      %v1276 = vpop.f32.mrf.mxu0
      %v1277 = vadd.f32 %v1188, %v1276
      %v1278 = vpop.f32.mrf.mxu0
      %v1279 = vadd.f32 %v1190, %v1278
      %1280 = vmatmul.bf16.gmra.mxu0 %v607
      %v1281 = vpop.f32.mrf.mxu0
      %v1282 = vadd.f32 %v1193, %v1281
      %v1283 = vpop.f32.mrf.mxu0
      %v1284 = vadd.f32 %v1195, %v1283
      %1285 = vmatmul.bf16.gmra.mxu0 %v609
      %v1286 = vpop.f32.mrf.mxu0
      %v1287 = vadd.f32 %v1198, %v1286
      %v1288 = vpop.f32.mrf.mxu0
      %v1289 = vadd.f32 %v1200, %v1288
      %1290 = vmatmul.bf16.gmra.mxu0 %v611
      %v1291 = vpop.f32.mrf.mxu0
      %v1292 = vadd.f32 %v1203, %v1291
      %v1293 = vpop.f32.mrf.mxu0
      %v1294 = vadd.f32 %v1205, %v1293
      %1295 = vmatmul.bf16.gmra.mxu0 %v613
      %v1296 = vpop.f32.mrf.mxu0
      %v1297 = vadd.f32 %v1208, %v1296
      %v1298 = vpop.f32.mrf.mxu0
      %v1299 = vadd.f32 %v1210, %v1298
      %1300 = vmatmul.bf16.gmra.mxu0 %v615
      %v1301 = vpop.f32.mrf.mxu0
      %v1302 = vadd.f32 %v1213, %v1301
      %v1303 = vpop.f32.mrf.mxu0
      %v1304 = vadd.f32 %v1215, %v1303
      %1305 = vmatmul.bf16.gmra.mxu0 %v617
      %v1306 = vpop.f32.mrf.mxu0
      %v1307 = vadd.f32 %v1218, %v1306
      %v1308 = vpop.f32.mrf.mxu0
      %v1309 = vadd.f32 %v1220, %v1308
      %1310 = vmatmul.bf16.gmra.mxu0 %v619
      %v1311 = vpop.f32.mrf.mxu0
      %v1312 = vadd.f32 %v1223, %v1311
      %v1313 = vpop.f32.mrf.mxu0
      %v1314 = vadd.f32 %v1225, %v1313
      %1315 = vmatmul.bf16.gmra.mxu0 %v621
      %v1316 = vpop.f32.mrf.mxu0
      %v1317 = vadd.f32 %v1228, %v1316
      %v1318 = vpop.f32.mrf.mxu0
      %v1319 = vadd.f32 %v1230, %v1318
      %1320 = vmatmul.bf16.gmra.mxu0 %v623
      %v1321 = vpop.f32.mrf.mxu0
      %v1322 = vadd.f32 %v1233, %v1321
      %v1323 = vpop.f32.mrf.mxu0
      %v1324 = vadd.f32 %v1235, %v1323
      %1325 = vmatmul.bf16.gmra.mxu0 %v625
      %v1326 = vpop.f32.mrf.mxu0
      %v1327 = vadd.f32 %v1238, %v1326
      %v1328 = vpop.f32.mrf.mxu0
      %v1329 = vadd.f32 %v1240, %v1328
      %1330 = vmatmul.bf16.gmra.mxu0 %v627
      %v1331 = vpop.f32.mrf.mxu0
      %v1332 = vadd.f32 %v1243, %v1331
      %v1333 = vpop.f32.mrf.mxu0
      %v1334 = vadd.f32 %v1245, %v1333
      %1335 = vdwg.mxu0
      %1336 = vmatpush.bf16.msra.mxu0 %v882
      %1337 = vmatpush.bf16.msra.mxu0 %v878
      %1338 = vmatpush.bf16.msra.mxu0 %v874
      %1339 = vmatpush.bf16.msra.mxu0 %v870
      %1340 = vmatpush.bf16.msra.mxu0 %v866
      %1341 = vmatpush.bf16.msra.mxu0 %v862
      %1342 = vmatpush.bf16.msra.mxu0 %v858
      %1343 = vmatpush.bf16.msra.mxu0 %v854
      %1344 = vmatmul.bf16.gmra.mxu0 %v596
      %v1345 = vpop.f32.mrf.mxu0
      %v1346 = vadd.f32 %v494, %v1345
      %v1347 = vpop.f32.mrf.mxu0
      %v1348 = vadd.f32 %v494, %v1347
      %1349 = vmatmul.bf16.gmra.mxu0 %v598
      %v1350 = vpop.f32.mrf.mxu0
      %v1351 = vadd.f32 %v494, %v1350
      %v1352 = vpop.f32.mrf.mxu0
      %v1353 = vadd.f32 %v494, %v1352
      %1354 = vmatmul.bf16.gmra.mxu0 %v600
      %v1355 = vpop.f32.mrf.mxu0
      %v1356 = vadd.f32 %v494, %v1355
      %v1357 = vpop.f32.mrf.mxu0
      %v1358 = vadd.f32 %v494, %v1357
      %1359 = vmatmul.bf16.gmra.mxu0 %v602
      %v1360 = vpop.f32.mrf.mxu0
      %v1361 = vadd.f32 %v494, %v1360
      %v1362 = vpop.f32.mrf.mxu0
      %v1363 = vadd.f32 %v494, %v1362
      %1364 = vmatmul.bf16.gmra.mxu0 %v604
      %v1365 = vpop.f32.mrf.mxu0
      %v1366 = vadd.f32 %v494, %v1365
      %v1367 = vpop.f32.mrf.mxu0
      %v1368 = vadd.f32 %v494, %v1367
      %1369 = vmatmul.bf16.gmra.mxu0 %v606
      %v1370 = vpop.f32.mrf.mxu0
      %v1371 = vadd.f32 %v494, %v1370
      %v1372 = vpop.f32.mrf.mxu0
      %v1373 = vadd.f32 %v494, %v1372
      %1374 = vmatmul.bf16.gmra.mxu0 %v608
      %v1375 = vpop.f32.mrf.mxu0
      %v1376 = vadd.f32 %v494, %v1375
      %v1377 = vpop.f32.mrf.mxu0
      %v1378 = vadd.f32 %v494, %v1377
      %1379 = vmatmul.bf16.gmra.mxu0 %v610
      %v1380 = vpop.f32.mrf.mxu0
      %v1381 = vadd.f32 %v494, %v1380
      %v1382 = vpop.f32.mrf.mxu0
      %v1383 = vadd.f32 %v494, %v1382
      %1384 = vmatmul.bf16.gmra.mxu0 %v612
      %v1385 = vpop.f32.mrf.mxu0
      %v1386 = vadd.f32 %v494, %v1385
      %v1387 = vpop.f32.mrf.mxu0
      %v1388 = vadd.f32 %v494, %v1387
      %1389 = vmatmul.bf16.gmra.mxu0 %v614
      %v1390 = vpop.f32.mrf.mxu0
      %v1391 = vadd.f32 %v494, %v1390
      %v1392 = vpop.f32.mrf.mxu0
      %v1393 = vadd.f32 %v494, %v1392
      %1394 = vmatmul.bf16.gmra.mxu0 %v616
      %v1395 = vpop.f32.mrf.mxu0
      %v1396 = vadd.f32 %v494, %v1395
      %v1397 = vpop.f32.mrf.mxu0
      %v1398 = vadd.f32 %v494, %v1397
      %1399 = vmatmul.bf16.gmra.mxu0 %v618
      %v1400 = vpop.f32.mrf.mxu0
      %v1401 = vadd.f32 %v494, %v1400
      %v1402 = vpop.f32.mrf.mxu0
      %v1403 = vadd.f32 %v494, %v1402
      %1404 = vmatmul.bf16.gmra.mxu0 %v620
      %v1405 = vpop.f32.mrf.mxu0
      %v1406 = vadd.f32 %v494, %v1405
      %v1407 = vpop.f32.mrf.mxu0
      %v1408 = vadd.f32 %v494, %v1407
      %1409 = vmatmul.bf16.gmra.mxu0 %v622
      %v1410 = vpop.f32.mrf.mxu0
      %v1411 = vadd.f32 %v494, %v1410
      %v1412 = vpop.f32.mrf.mxu0
      %v1413 = vadd.f32 %v494, %v1412
      %1414 = vmatmul.bf16.gmra.mxu0 %v624
      %v1415 = vpop.f32.mrf.mxu0
      %v1416 = vadd.f32 %v494, %v1415
      %v1417 = vpop.f32.mrf.mxu0
      %v1418 = vadd.f32 %v494, %v1417
      %1419 = vmatmul.bf16.gmra.mxu0 %v626
      %v1420 = vpop.f32.mrf.mxu0
      %v1421 = vadd.f32 %v494, %v1420
      %v1422 = vpop.f32.mrf.mxu0
      %v1423 = vadd.f32 %v494, %v1422
      %1424 = vdwg.mxu0
      %1425 = vmatpush.bf16.msra.mxu0 %v914
      %1426 = vmatpush.bf16.msra.mxu0 %v910
      %1427 = vmatpush.bf16.msra.mxu0 %v906
      %1428 = vmatpush.bf16.msra.mxu0 %v902
      %1429 = vmatpush.bf16.msra.mxu0 %v898
      %1430 = vmatpush.bf16.msra.mxu0 %v894
      %1431 = vmatpush.bf16.msra.mxu0 %v890
      %1432 = vmatpush.bf16.msra.mxu0 %v886
      %1433 = vmatmul.bf16.gmra.mxu0 %v597
      %v1434 = vpop.f32.mrf.mxu0
      %v1435 = vadd.f32 %v1346, %v1434
      %v1436 = vpop.f32.mrf.mxu0
      %v1437 = vadd.f32 %v1348, %v1436
      %1438 = vmatmul.bf16.gmra.mxu0 %v599
      %v1439 = vpop.f32.mrf.mxu0
      %v1440 = vadd.f32 %v1351, %v1439
      %v1441 = vpop.f32.mrf.mxu0
      %v1442 = vadd.f32 %v1353, %v1441
      %1443 = vmatmul.bf16.gmra.mxu0 %v601
      %v1444 = vpop.f32.mrf.mxu0
      %v1445 = vadd.f32 %v1356, %v1444
      %v1446 = vpop.f32.mrf.mxu0
      %v1447 = vadd.f32 %v1358, %v1446
      %1448 = vmatmul.bf16.gmra.mxu0 %v603
      %v1449 = vpop.f32.mrf.mxu0
      %v1450 = vadd.f32 %v1361, %v1449
      %v1451 = vpop.f32.mrf.mxu0
      %v1452 = vadd.f32 %v1363, %v1451
      %1453 = vmatmul.bf16.gmra.mxu0 %v605
      %v1454 = vpop.f32.mrf.mxu0
      %v1455 = vadd.f32 %v1366, %v1454
      %v1456 = vpop.f32.mrf.mxu0
      %v1457 = vadd.f32 %v1368, %v1456
      %1458 = vmatmul.bf16.gmra.mxu0 %v607
      %v1459 = vpop.f32.mrf.mxu0
      %v1460 = vadd.f32 %v1371, %v1459
      %v1461 = vpop.f32.mrf.mxu0
      %v1462 = vadd.f32 %v1373, %v1461
      %1463 = vmatmul.bf16.gmra.mxu0 %v609
      %v1464 = vpop.f32.mrf.mxu0
      %v1465 = vadd.f32 %v1376, %v1464
      %v1466 = vpop.f32.mrf.mxu0
      %v1467 = vadd.f32 %v1378, %v1466
      %1468 = vmatmul.bf16.gmra.mxu0 %v611
      %v1469 = vpop.f32.mrf.mxu0
      %v1470 = vadd.f32 %v1381, %v1469
      %v1471 = vpop.f32.mrf.mxu0
      %v1472 = vadd.f32 %v1383, %v1471
      %1473 = vmatmul.bf16.gmra.mxu0 %v613
      %v1474 = vpop.f32.mrf.mxu0
      %v1475 = vadd.f32 %v1386, %v1474
      %v1476 = vpop.f32.mrf.mxu0
      %v1477 = vadd.f32 %v1388, %v1476
      %1478 = vmatmul.bf16.gmra.mxu0 %v615
      %v1479 = vpop.f32.mrf.mxu0
      %v1480 = vadd.f32 %v1391, %v1479
      %v1481 = vpop.f32.mrf.mxu0
      %v1482 = vadd.f32 %v1393, %v1481
      %1483 = vmatmul.bf16.gmra.mxu0 %v617
      %v1484 = vpop.f32.mrf.mxu0
      %v1485 = vadd.f32 %v1396, %v1484
      %v1486 = vpop.f32.mrf.mxu0
      %v1487 = vadd.f32 %v1398, %v1486
      %1488 = vmatmul.bf16.gmra.mxu0 %v619
      %v1489 = vpop.f32.mrf.mxu0
      %v1490 = vadd.f32 %v1401, %v1489
      %v1491 = vpop.f32.mrf.mxu0
      %v1492 = vadd.f32 %v1403, %v1491
      %1493 = vmatmul.bf16.gmra.mxu0 %v621
      %v1494 = vpop.f32.mrf.mxu0
      %v1495 = vadd.f32 %v1406, %v1494
      %v1496 = vpop.f32.mrf.mxu0
      %v1497 = vadd.f32 %v1408, %v1496
      %1498 = vmatmul.bf16.gmra.mxu0 %v623
      %v1499 = vpop.f32.mrf.mxu0
      %v1500 = vadd.f32 %v1411, %v1499
      %v1501 = vpop.f32.mrf.mxu0
      %v1502 = vadd.f32 %v1413, %v1501
      %1503 = vmatmul.bf16.gmra.mxu0 %v625
      %v1504 = vpop.f32.mrf.mxu0
      %v1505 = vadd.f32 %v1416, %v1504
      %v1506 = vpop.f32.mrf.mxu0
      %v1507 = vadd.f32 %v1418, %v1506
      %1508 = vmatmul.bf16.gmra.mxu0 %v627
      %v1509 = vpop.f32.mrf.mxu0
      %v1510 = vadd.f32 %v1421, %v1509
      %v1511 = vpop.f32.mrf.mxu0
      %v1512 = vadd.f32 %v1423, %v1511
      %1513 = vdwg.mxu0
      %1514 = vmatpush.bf16.msra.mxu0 %v883
      %1515 = vmatpush.bf16.msra.mxu0 %v879
      %1516 = vmatpush.bf16.msra.mxu0 %v875
      %1517 = vmatpush.bf16.msra.mxu0 %v871
      %1518 = vmatpush.bf16.msra.mxu0 %v867
      %1519 = vmatpush.bf16.msra.mxu0 %v863
      %1520 = vmatpush.bf16.msra.mxu0 %v859
      %1521 = vmatpush.bf16.msra.mxu0 %v855
      %1522 = vmatmul.bf16.gmra.mxu0 %v596
      %v1523 = vpop.f32.mrf.mxu0
      %v1524 = vadd.f32 %v495, %v1523
      %v1525 = vpop.f32.mrf.mxu0
      %v1526 = vadd.f32 %v495, %v1525
      %1527 = vmatmul.bf16.gmra.mxu0 %v598
      %v1528 = vpop.f32.mrf.mxu0
      %v1529 = vadd.f32 %v495, %v1528
      %v1530 = vpop.f32.mrf.mxu0
      %v1531 = vadd.f32 %v495, %v1530
      %1532 = vmatmul.bf16.gmra.mxu0 %v600
      %v1533 = vpop.f32.mrf.mxu0
      %v1534 = vadd.f32 %v495, %v1533
      %v1535 = vpop.f32.mrf.mxu0
      %v1536 = vadd.f32 %v495, %v1535
      %1537 = vmatmul.bf16.gmra.mxu0 %v602
      %v1538 = vpop.f32.mrf.mxu0
      %v1539 = vadd.f32 %v495, %v1538
      %v1540 = vpop.f32.mrf.mxu0
      %v1541 = vadd.f32 %v495, %v1540
      %1542 = vmatmul.bf16.gmra.mxu0 %v604
      %v1543 = vpop.f32.mrf.mxu0
      %v1544 = vadd.f32 %v495, %v1543
      %v1545 = vpop.f32.mrf.mxu0
      %v1546 = vadd.f32 %v495, %v1545
      %1547 = vmatmul.bf16.gmra.mxu0 %v606
      %v1548 = vpop.f32.mrf.mxu0
      %v1549 = vadd.f32 %v495, %v1548
      %v1550 = vpop.f32.mrf.mxu0
      %v1551 = vadd.f32 %v495, %v1550
      %1552 = vmatmul.bf16.gmra.mxu0 %v608
      %v1553 = vpop.f32.mrf.mxu0
      %v1554 = vadd.f32 %v495, %v1553
      %v1555 = vpop.f32.mrf.mxu0
      %v1556 = vadd.f32 %v495, %v1555
      %1557 = vmatmul.bf16.gmra.mxu0 %v610
      %v1558 = vpop.f32.mrf.mxu0
      %v1559 = vadd.f32 %v495, %v1558
      %v1560 = vpop.f32.mrf.mxu0
      %v1561 = vadd.f32 %v495, %v1560
      %1562 = vmatmul.bf16.gmra.mxu0 %v612
      %v1563 = vpop.f32.mrf.mxu0
      %v1564 = vadd.f32 %v495, %v1563
      %v1565 = vpop.f32.mrf.mxu0
      %v1566 = vadd.f32 %v495, %v1565
      %1567 = vmatmul.bf16.gmra.mxu0 %v614
      %v1568 = vpop.f32.mrf.mxu0
      %v1569 = vadd.f32 %v495, %v1568
      %v1570 = vpop.f32.mrf.mxu0
      %v1571 = vadd.f32 %v495, %v1570
      %1572 = vmatmul.bf16.gmra.mxu0 %v616
      %v1573 = vpop.f32.mrf.mxu0
      %v1574 = vadd.f32 %v495, %v1573
      %v1575 = vpop.f32.mrf.mxu0
      %v1576 = vadd.f32 %v495, %v1575
      %1577 = vmatmul.bf16.gmra.mxu0 %v618
      %v1578 = vpop.f32.mrf.mxu0
      %v1579 = vadd.f32 %v495, %v1578
      %v1580 = vpop.f32.mrf.mxu0
      %v1581 = vadd.f32 %v495, %v1580
      %1582 = vmatmul.bf16.gmra.mxu0 %v620
      %v1583 = vpop.f32.mrf.mxu0
      %v1584 = vadd.f32 %v495, %v1583
      %v1585 = vpop.f32.mrf.mxu0
      %v1586 = vadd.f32 %v495, %v1585
      %1587 = vmatmul.bf16.gmra.mxu0 %v622
      %v1588 = vpop.f32.mrf.mxu0
      %v1589 = vadd.f32 %v495, %v1588
      %v1590 = vpop.f32.mrf.mxu0
      %v1591 = vadd.f32 %v495, %v1590
      %1592 = vmatmul.bf16.gmra.mxu0 %v624
      %v1593 = vpop.f32.mrf.mxu0
      %v1594 = vadd.f32 %v495, %v1593
      %v1595 = vpop.f32.mrf.mxu0
      %v1596 = vadd.f32 %v495, %v1595
      %1597 = vmatmul.bf16.gmra.mxu0 %v626
      %v1598 = vpop.f32.mrf.mxu0
      %v1599 = vadd.f32 %v495, %v1598
      %v1600 = vpop.f32.mrf.mxu0
      %v1601 = vadd.f32 %v495, %v1600
      %1602 = vdwg.mxu0
      %1603 = vmatpush.bf16.msra.mxu0 %v915
      %1604 = vmatpush.bf16.msra.mxu0 %v911
      %1605 = vmatpush.bf16.msra.mxu0 %v907
      %1606 = vmatpush.bf16.msra.mxu0 %v903
      %1607 = vmatpush.bf16.msra.mxu0 %v899
      %1608 = vmatpush.bf16.msra.mxu0 %v895
      %1609 = vmatpush.bf16.msra.mxu0 %v891
      %1610 = vmatpush.bf16.msra.mxu0 %v887
      %1611 = vmatmul.bf16.gmra.mxu0 %v597
      %v1612 = vpop.f32.mrf.mxu0
      %v1613 = vadd.f32 %v1524, %v1612
      %v1614 = vpop.f32.mrf.mxu0
      %v1615 = vadd.f32 %v1526, %v1614
      %1616 = vmatmul.bf16.gmra.mxu0 %v599
      %v1617 = vpop.f32.mrf.mxu0
      %v1618 = vadd.f32 %v1529, %v1617
      %v1619 = vpop.f32.mrf.mxu0
      %v1620 = vadd.f32 %v1531, %v1619
      %1621 = vmatmul.bf16.gmra.mxu0 %v601
      %v1622 = vpop.f32.mrf.mxu0
      %v1623 = vadd.f32 %v1534, %v1622
      %v1624 = vpop.f32.mrf.mxu0
      %v1625 = vadd.f32 %v1536, %v1624
      %1626 = vmatmul.bf16.gmra.mxu0 %v603
      %v1627 = vpop.f32.mrf.mxu0
      %v1628 = vadd.f32 %v1539, %v1627
      %v1629 = vpop.f32.mrf.mxu0
      %v1630 = vadd.f32 %v1541, %v1629
      %1631 = vmatmul.bf16.gmra.mxu0 %v605
      %v1632 = vpop.f32.mrf.mxu0
      %v1633 = vadd.f32 %v1544, %v1632
      %v1634 = vpop.f32.mrf.mxu0
      %v1635 = vadd.f32 %v1546, %v1634
      %1636 = vmatmul.bf16.gmra.mxu0 %v607
      %v1637 = vpop.f32.mrf.mxu0
      %v1638 = vadd.f32 %v1549, %v1637
      %v1639 = vpop.f32.mrf.mxu0
      %v1640 = vadd.f32 %v1551, %v1639
      %1641 = vmatmul.bf16.gmra.mxu0 %v609
      %v1642 = vpop.f32.mrf.mxu0
      %v1643 = vadd.f32 %v1554, %v1642
      %v1644 = vpop.f32.mrf.mxu0
      %v1645 = vadd.f32 %v1556, %v1644
      %1646 = vmatmul.bf16.gmra.mxu0 %v611
      %v1647 = vpop.f32.mrf.mxu0
      %v1648 = vadd.f32 %v1559, %v1647
      %v1649 = vpop.f32.mrf.mxu0
      %v1650 = vadd.f32 %v1561, %v1649
      %1651 = vmatmul.bf16.gmra.mxu0 %v613
      %v1652 = vpop.f32.mrf.mxu0
      %v1653 = vadd.f32 %v1564, %v1652
      %v1654 = vpop.f32.mrf.mxu0
      %v1655 = vadd.f32 %v1566, %v1654
      %1656 = vmatmul.bf16.gmra.mxu0 %v615
      %v1657 = vpop.f32.mrf.mxu0
      %v1658 = vadd.f32 %v1569, %v1657
      %v1659 = vpop.f32.mrf.mxu0
      %v1660 = vadd.f32 %v1571, %v1659
      %1661 = vmatmul.bf16.gmra.mxu0 %v617
      %v1662 = vpop.f32.mrf.mxu0
      %v1663 = vadd.f32 %v1574, %v1662
      %v1664 = vpop.f32.mrf.mxu0
      %v1665 = vadd.f32 %v1576, %v1664
      %1666 = vmatmul.bf16.gmra.mxu0 %v619
      %v1667 = vpop.f32.mrf.mxu0
      %v1668 = vadd.f32 %v1579, %v1667
      %v1669 = vpop.f32.mrf.mxu0
      %v1670 = vadd.f32 %v1581, %v1669
      %1671 = vmatmul.bf16.gmra.mxu0 %v621
      %v1672 = vpop.f32.mrf.mxu0
      %v1673 = vadd.f32 %v1584, %v1672
      %v1674 = vpop.f32.mrf.mxu0
      %v1675 = vadd.f32 %v1586, %v1674
      %1676 = vmatmul.bf16.gmra.mxu0 %v623
      %v1677 = vpop.f32.mrf.mxu0
      %v1678 = vadd.f32 %v1589, %v1677
      %v1679 = vpop.f32.mrf.mxu0
      %v1680 = vadd.f32 %v1591, %v1679
      %1681 = vmatmul.bf16.gmra.mxu0 %v625
      %v1682 = vpop.f32.mrf.mxu0
      %v1683 = vadd.f32 %v1594, %v1682
      %v1684 = vpop.f32.mrf.mxu0
      %v1685 = vadd.f32 %v1596, %v1684
      %1686 = vmatmul.bf16.gmra.mxu0 %v627
      %v1687 = vpop.f32.mrf.mxu0
      %v1688 = vadd.f32 %v1599, %v1687
      %v1689 = vpop.f32.mrf.mxu0
      %v1690 = vadd.f32 %v1601, %v1689
      %1691 = vdwg.mxu0
      %vm1692 = vcmp.ge.f32.partialorder %v1079, 0.0
      %vm1693 = vcmp.ge.f32.partialorder %v1257, 0.0
      %vm1694 = vcmp.ge.f32.partialorder %v1435, 0.0
      %vm1695 = vcmp.ge.f32.partialorder %v1613, 0.0
      %vm1696 = vcmp.ge.f32.partialorder %v1081, 0.0
      %vm1697 = vcmp.ge.f32.partialorder %v1259, 0.0
      %vm1698 = vcmp.ge.f32.partialorder %v1437, 0.0
      %vm1699 = vcmp.ge.f32.partialorder %v1615, 0.0
      %vm1700 = vcmp.ge.f32.partialorder %v1084, 0.0
      %vm1701 = vcmp.ge.f32.partialorder %v1262, 0.0
      %vm1702 = vcmp.ge.f32.partialorder %v1440, 0.0
      %vm1703 = vcmp.ge.f32.partialorder %v1618, 0.0
      %vm1704 = vcmp.ge.f32.partialorder %v1086, 0.0
      %vm1705 = vcmp.ge.f32.partialorder %v1264, 0.0
      %vm1706 = vcmp.ge.f32.partialorder %v1442, 0.0
      %vm1707 = vcmp.ge.f32.partialorder %v1620, 0.0
      %vm1708 = vcmp.ge.f32.partialorder %v1089, 0.0
      %vm1709 = vcmp.ge.f32.partialorder %v1267, 0.0
      %vm1710 = vcmp.ge.f32.partialorder %v1445, 0.0
      %vm1711 = vcmp.ge.f32.partialorder %v1623, 0.0
      %vm1712 = vcmp.ge.f32.partialorder %v1091, 0.0
      %vm1713 = vcmp.ge.f32.partialorder %v1269, 0.0
      %vm1714 = vcmp.ge.f32.partialorder %v1447, 0.0
      %vm1715 = vcmp.ge.f32.partialorder %v1625, 0.0
      %vm1716 = vcmp.ge.f32.partialorder %v1094, 0.0
      %vm1717 = vcmp.ge.f32.partialorder %v1272, 0.0
      %vm1718 = vcmp.ge.f32.partialorder %v1450, 0.0
      %vm1719 = vcmp.ge.f32.partialorder %v1628, 0.0
      %vm1720 = vcmp.ge.f32.partialorder %v1096, 0.0
      %vm1721 = vcmp.ge.f32.partialorder %v1274, 0.0
      %vm1722 = vcmp.ge.f32.partialorder %v1452, 0.0
      %vm1723 = vcmp.ge.f32.partialorder %v1630, 0.0
      %vm1724 = vcmp.ge.f32.partialorder %v1099, 0.0
      %vm1725 = vcmp.ge.f32.partialorder %v1277, 0.0
      %vm1726 = vcmp.ge.f32.partialorder %v1455, 0.0
      %vm1727 = vcmp.ge.f32.partialorder %v1633, 0.0
      %vm1728 = vcmp.ge.f32.partialorder %v1101, 0.0
      %vm1729 = vcmp.ge.f32.partialorder %v1279, 0.0
      %vm1730 = vcmp.ge.f32.partialorder %v1457, 0.0
      %vm1731 = vcmp.ge.f32.partialorder %v1635, 0.0
      %vm1732 = vcmp.ge.f32.partialorder %v1104, 0.0
      %vm1733 = vcmp.ge.f32.partialorder %v1282, 0.0
      %vm1734 = vcmp.ge.f32.partialorder %v1460, 0.0
      %vm1735 = vcmp.ge.f32.partialorder %v1638, 0.0
      %vm1736 = vcmp.ge.f32.partialorder %v1106, 0.0
      %vm1737 = vcmp.ge.f32.partialorder %v1284, 0.0
      %vm1738 = vcmp.ge.f32.partialorder %v1462, 0.0
      %vm1739 = vcmp.ge.f32.partialorder %v1640, 0.0
      %vm1740 = vcmp.ge.f32.partialorder %v1109, 0.0
      %vm1741 = vcmp.ge.f32.partialorder %v1287, 0.0
      %vm1742 = vcmp.ge.f32.partialorder %v1465, 0.0
      %vm1743 = vcmp.ge.f32.partialorder %v1643, 0.0
      %vm1744 = vcmp.ge.f32.partialorder %v1111, 0.0
      %vm1745 = vcmp.ge.f32.partialorder %v1289, 0.0
      %vm1746 = vcmp.ge.f32.partialorder %v1467, 0.0
      %vm1747 = vcmp.ge.f32.partialorder %v1645, 0.0
      %vm1748 = vcmp.ge.f32.partialorder %v1114, 0.0
      %vm1749 = vcmp.ge.f32.partialorder %v1292, 0.0
      %vm1750 = vcmp.ge.f32.partialorder %v1470, 0.0
      %vm1751 = vcmp.ge.f32.partialorder %v1648, 0.0
      %vm1752 = vcmp.ge.f32.partialorder %v1116, 0.0
      %vm1753 = vcmp.ge.f32.partialorder %v1294, 0.0
      %vm1754 = vcmp.ge.f32.partialorder %v1472, 0.0
      %vm1755 = vcmp.ge.f32.partialorder %v1650, 0.0
      %vm1756 = vcmp.ge.f32.partialorder %v1119, 0.0
      %vm1757 = vcmp.ge.f32.partialorder %v1297, 0.0
      %vm1758 = vcmp.ge.f32.partialorder %v1475, 0.0
      %vm1759 = vcmp.ge.f32.partialorder %v1653, 0.0
      %vm1760 = vcmp.ge.f32.partialorder %v1121, 0.0
      %vm1761 = vcmp.ge.f32.partialorder %v1299, 0.0
      %vm1762 = vcmp.ge.f32.partialorder %v1477, 0.0
      %vm1763 = vcmp.ge.f32.partialorder %v1655, 0.0
      %vm1764 = vcmp.ge.f32.partialorder %v1124, 0.0
      %vm1765 = vcmp.ge.f32.partialorder %v1302, 0.0
      %vm1766 = vcmp.ge.f32.partialorder %v1480, 0.0
      %vm1767 = vcmp.ge.f32.partialorder %v1658, 0.0
      %vm1768 = vcmp.ge.f32.partialorder %v1126, 0.0
      %vm1769 = vcmp.ge.f32.partialorder %v1304, 0.0
      %vm1770 = vcmp.ge.f32.partialorder %v1482, 0.0
      %vm1771 = vcmp.ge.f32.partialorder %v1660, 0.0
      %vm1772 = vcmp.ge.f32.partialorder %v1129, 0.0
      %vm1773 = vcmp.ge.f32.partialorder %v1307, 0.0
      %vm1774 = vcmp.ge.f32.partialorder %v1485, 0.0
      %vm1775 = vcmp.ge.f32.partialorder %v1663, 0.0
      %vm1776 = vcmp.ge.f32.partialorder %v1131, 0.0
      %vm1777 = vcmp.ge.f32.partialorder %v1309, 0.0
      %vm1778 = vcmp.ge.f32.partialorder %v1487, 0.0
      %vm1779 = vcmp.ge.f32.partialorder %v1665, 0.0
      %vm1780 = vcmp.ge.f32.partialorder %v1134, 0.0
      %vm1781 = vcmp.ge.f32.partialorder %v1312, 0.0
      %vm1782 = vcmp.ge.f32.partialorder %v1490, 0.0
      %vm1783 = vcmp.ge.f32.partialorder %v1668, 0.0
      %vm1784 = vcmp.ge.f32.partialorder %v1136, 0.0
      %vm1785 = vcmp.ge.f32.partialorder %v1314, 0.0
      %vm1786 = vcmp.ge.f32.partialorder %v1492, 0.0
      %vm1787 = vcmp.ge.f32.partialorder %v1670, 0.0
      %vm1788 = vcmp.ge.f32.partialorder %v1139, 0.0
      %vm1789 = vcmp.ge.f32.partialorder %v1317, 0.0
      %vm1790 = vcmp.ge.f32.partialorder %v1495, 0.0
      %vm1791 = vcmp.ge.f32.partialorder %v1673, 0.0
      %vm1792 = vcmp.ge.f32.partialorder %v1141, 0.0
      %vm1793 = vcmp.ge.f32.partialorder %v1319, 0.0
      %vm1794 = vcmp.ge.f32.partialorder %v1497, 0.0
      %vm1795 = vcmp.ge.f32.partialorder %v1675, 0.0
      %vm1796 = vcmp.ge.f32.partialorder %v1144, 0.0
      %vm1797 = vcmp.ge.f32.partialorder %v1322, 0.0
      %vm1798 = vcmp.ge.f32.partialorder %v1500, 0.0
      %vm1799 = vcmp.ge.f32.partialorder %v1678, 0.0
      %vm1800 = vcmp.ge.f32.partialorder %v1146, 0.0
      %vm1801 = vcmp.ge.f32.partialorder %v1324, 0.0
      %vm1802 = vcmp.ge.f32.partialorder %v1502, 0.0
      %vm1803 = vcmp.ge.f32.partialorder %v1680, 0.0
      %vm1804 = vcmp.ge.f32.partialorder %v1149, 0.0
      %vm1805 = vcmp.ge.f32.partialorder %v1327, 0.0
      %vm1806 = vcmp.ge.f32.partialorder %v1505, 0.0
      %vm1807 = vcmp.ge.f32.partialorder %v1683, 0.0
      %vm1808 = vcmp.ge.f32.partialorder %v1151, 0.0
      %vm1809 = vcmp.ge.f32.partialorder %v1329, 0.0
      %vm1810 = vcmp.ge.f32.partialorder %v1507, 0.0
      %vm1811 = vcmp.ge.f32.partialorder %v1685, 0.0
      %vm1812 = vcmp.ge.f32.partialorder %v1154, 0.0
      %vm1813 = vcmp.ge.f32.partialorder %v1332, 0.0
      %vm1814 = vcmp.ge.f32.partialorder %v1510, 0.0
      %vm1815 = vcmp.ge.f32.partialorder %v1688, 0.0
      %vm1816 = vcmp.ge.f32.partialorder %v1156, 0.0
      %vm1817 = vcmp.ge.f32.partialorder %v1334, 0.0
      %vm1818 = vcmp.ge.f32.partialorder %v1512, 0.0
      %vm1819 = vcmp.ge.f32.partialorder %v1690, 0.0
      %v1820 = vmul.f32 %v1079, 0.1
      %v1821 = vmul.f32 %v1257, 0.1
      %v1822 = vmul.f32 %v1435, 0.1
      %v1823 = vmul.f32 %v1613, 0.1
      %v1824 = vmul.f32 %v1081, 0.1
      %v1825 = vmul.f32 %v1259, 0.1
      %v1826 = vmul.f32 %v1437, 0.1
      %v1827 = vmul.f32 %v1615, 0.1
      %v1828 = vmul.f32 %v1084, 0.1
      %v1829 = vmul.f32 %v1262, 0.1
      %v1830 = vmul.f32 %v1440, 0.1
      %v1831 = vmul.f32 %v1618, 0.1
      %v1832 = vmul.f32 %v1086, 0.1
      %v1833 = vmul.f32 %v1264, 0.1
      %v1834 = vmul.f32 %v1442, 0.1
      %v1835 = vmul.f32 %v1620, 0.1
      %v1836 = vmul.f32 %v1089, 0.1
      %v1837 = vmul.f32 %v1267, 0.1
      %v1838 = vmul.f32 %v1445, 0.1
      %v1839 = vmul.f32 %v1623, 0.1
      %v1840 = vmul.f32 %v1091, 0.1
      %v1841 = vmul.f32 %v1269, 0.1
      %v1842 = vmul.f32 %v1447, 0.1
      %v1843 = vmul.f32 %v1625, 0.1
      %v1844 = vmul.f32 %v1094, 0.1
      %v1845 = vmul.f32 %v1272, 0.1
      %v1846 = vmul.f32 %v1450, 0.1
      %v1847 = vmul.f32 %v1628, 0.1
      %v1848 = vmul.f32 %v1096, 0.1
      %v1849 = vmul.f32 %v1274, 0.1
      %v1850 = vmul.f32 %v1452, 0.1
      %v1851 = vmul.f32 %v1630, 0.1
      %v1852 = vmul.f32 %v1099, 0.1
      %v1853 = vmul.f32 %v1277, 0.1
      %v1854 = vmul.f32 %v1455, 0.1
      %v1855 = vmul.f32 %v1633, 0.1
      %v1856 = vmul.f32 %v1101, 0.1
      %v1857 = vmul.f32 %v1279, 0.1
      %v1858 = vmul.f32 %v1457, 0.1
      %v1859 = vmul.f32 %v1635, 0.1
      %v1860 = vmul.f32 %v1104, 0.1
      %v1861 = vmul.f32 %v1282, 0.1
      %v1862 = vmul.f32 %v1460, 0.1
      %v1863 = vmul.f32 %v1638, 0.1
      %v1864 = vmul.f32 %v1106, 0.1
      %v1865 = vmul.f32 %v1284, 0.1
      %v1866 = vmul.f32 %v1462, 0.1
      %v1867 = vmul.f32 %v1640, 0.1
      %v1868 = vmul.f32 %v1109, 0.1
      %v1869 = vmul.f32 %v1287, 0.1
      %v1870 = vmul.f32 %v1465, 0.1
      %v1871 = vmul.f32 %v1643, 0.1
      %v1872 = vmul.f32 %v1111, 0.1
      %v1873 = vmul.f32 %v1289, 0.1
      %v1874 = vmul.f32 %v1467, 0.1
      %v1875 = vmul.f32 %v1645, 0.1
      %v1876 = vmul.f32 %v1114, 0.1
      %v1877 = vmul.f32 %v1292, 0.1
      %v1878 = vmul.f32 %v1470, 0.1
      %v1879 = vmul.f32 %v1648, 0.1
      %v1880 = vmul.f32 %v1116, 0.1
      %v1881 = vmul.f32 %v1294, 0.1
      %v1882 = vmul.f32 %v1472, 0.1
      %v1883 = vmul.f32 %v1650, 0.1
      %v1884 = vmul.f32 %v1119, 0.1
      %v1885 = vmul.f32 %v1297, 0.1
      %v1886 = vmul.f32 %v1475, 0.1
      %v1887 = vmul.f32 %v1653, 0.1
      %v1888 = vmul.f32 %v1121, 0.1
      %v1889 = vmul.f32 %v1299, 0.1
      %v1890 = vmul.f32 %v1477, 0.1
      %v1891 = vmul.f32 %v1655, 0.1
      %v1892 = vmul.f32 %v1124, 0.1
      %v1893 = vmul.f32 %v1302, 0.1
      %v1894 = vmul.f32 %v1480, 0.1
      %v1895 = vmul.f32 %v1658, 0.1
      %v1896 = vmul.f32 %v1126, 0.1
      %v1897 = vmul.f32 %v1304, 0.1
      %v1898 = vmul.f32 %v1482, 0.1
      %v1899 = vmul.f32 %v1660, 0.1
      %v1900 = vmul.f32 %v1129, 0.1
      %v1901 = vmul.f32 %v1307, 0.1
      %v1902 = vmul.f32 %v1485, 0.1
      %v1903 = vmul.f32 %v1663, 0.1
      %v1904 = vmul.f32 %v1131, 0.1
      %v1905 = vmul.f32 %v1309, 0.1
      %v1906 = vmul.f32 %v1487, 0.1
      %v1907 = vmul.f32 %v1665, 0.1
      %v1908 = vmul.f32 %v1134, 0.1
      %v1909 = vmul.f32 %v1312, 0.1
      %v1910 = vmul.f32 %v1490, 0.1
      %v1911 = vmul.f32 %v1668, 0.1
      %v1912 = vmul.f32 %v1136, 0.1
      %v1913 = vmul.f32 %v1314, 0.1
      %v1914 = vmul.f32 %v1492, 0.1
      %v1915 = vmul.f32 %v1670, 0.1
      %v1916 = vmul.f32 %v1139, 0.1
      %v1917 = vmul.f32 %v1317, 0.1
      %v1918 = vmul.f32 %v1495, 0.1
      %v1919 = vmul.f32 %v1673, 0.1
      %v1920 = vmul.f32 %v1141, 0.1
      %v1921 = vmul.f32 %v1319, 0.1
      %v1922 = vmul.f32 %v1497, 0.1
      %v1923 = vmul.f32 %v1675, 0.1
      %v1924 = vmul.f32 %v1144, 0.1
      %v1925 = vmul.f32 %v1322, 0.1
      %v1926 = vmul.f32 %v1500, 0.1
      %v1927 = vmul.f32 %v1678, 0.1
      %v1928 = vmul.f32 %v1146, 0.1
      %v1929 = vmul.f32 %v1324, 0.1
      %v1930 = vmul.f32 %v1502, 0.1
      %v1931 = vmul.f32 %v1680, 0.1
      %v1932 = vmul.f32 %v1149, 0.1
      %v1933 = vmul.f32 %v1327, 0.1
      %v1934 = vmul.f32 %v1505, 0.1
      %v1935 = vmul.f32 %v1683, 0.1
      %v1936 = vmul.f32 %v1151, 0.1
      %v1937 = vmul.f32 %v1329, 0.1
      %v1938 = vmul.f32 %v1507, 0.1
      %v1939 = vmul.f32 %v1685, 0.1
      %v1940 = vmul.f32 %v1154, 0.1
      %v1941 = vmul.f32 %v1332, 0.1
      %v1942 = vmul.f32 %v1510, 0.1
      %v1943 = vmul.f32 %v1688, 0.1
      %v1944 = vmul.f32 %v1156, 0.1
      %v1945 = vmul.f32 %v1334, 0.1
      %v1946 = vmul.f32 %v1512, 0.1
      %v1947 = vmul.f32 %v1690, 0.1
      %v1948 = vsel %vm1692, %v1079, %v1820
      %v1949 = vsel %vm1693, %v1257, %v1821
      %v1950 = vsel %vm1694, %v1435, %v1822
      %v1951 = vsel %vm1695, %v1613, %v1823
      %v1952 = vsel %vm1696, %v1081, %v1824
      %v1953 = vsel %vm1697, %v1259, %v1825
      %v1954 = vsel %vm1698, %v1437, %v1826
      %v1955 = vsel %vm1699, %v1615, %v1827
      %v1956 = vsel %vm1700, %v1084, %v1828
      %v1957 = vsel %vm1701, %v1262, %v1829
      %v1958 = vsel %vm1702, %v1440, %v1830
      %v1959 = vsel %vm1703, %v1618, %v1831
      %v1960 = vsel %vm1704, %v1086, %v1832
      %v1961 = vsel %vm1705, %v1264, %v1833
      %v1962 = vsel %vm1706, %v1442, %v1834
      %v1963 = vsel %vm1707, %v1620, %v1835
      %v1964 = vsel %vm1708, %v1089, %v1836
      %v1965 = vsel %vm1709, %v1267, %v1837
      %v1966 = vsel %vm1710, %v1445, %v1838
      %v1967 = vsel %vm1711, %v1623, %v1839
      %v1968 = vsel %vm1712, %v1091, %v1840
      %v1969 = vsel %vm1713, %v1269, %v1841
      %v1970 = vsel %vm1714, %v1447, %v1842
      %v1971 = vsel %vm1715, %v1625, %v1843
      %v1972 = vsel %vm1716, %v1094, %v1844
      %v1973 = vsel %vm1717, %v1272, %v1845
      %v1974 = vsel %vm1718, %v1450, %v1846
      %v1975 = vsel %vm1719, %v1628, %v1847
      %v1976 = vsel %vm1720, %v1096, %v1848
      %v1977 = vsel %vm1721, %v1274, %v1849
      %v1978 = vsel %vm1722, %v1452, %v1850
      %v1979 = vsel %vm1723, %v1630, %v1851
      %v1980 = vsel %vm1724, %v1099, %v1852
      %v1981 = vsel %vm1725, %v1277, %v1853
      %v1982 = vsel %vm1726, %v1455, %v1854
      %v1983 = vsel %vm1727, %v1633, %v1855
      %v1984 = vsel %vm1728, %v1101, %v1856
      %v1985 = vsel %vm1729, %v1279, %v1857
      %v1986 = vsel %vm1730, %v1457, %v1858
      %v1987 = vsel %vm1731, %v1635, %v1859
      %v1988 = vsel %vm1732, %v1104, %v1860
      %v1989 = vsel %vm1733, %v1282, %v1861
      %v1990 = vsel %vm1734, %v1460, %v1862
      %v1991 = vsel %vm1735, %v1638, %v1863
      %v1992 = vsel %vm1736, %v1106, %v1864
      %v1993 = vsel %vm1737, %v1284, %v1865
      %v1994 = vsel %vm1738, %v1462, %v1866
      %v1995 = vsel %vm1739, %v1640, %v1867
      %v1996 = vsel %vm1740, %v1109, %v1868
      %v1997 = vsel %vm1741, %v1287, %v1869
      %v1998 = vsel %vm1742, %v1465, %v1870
      %v1999 = vsel %vm1743, %v1643, %v1871
      %v2000 = vsel %vm1744, %v1111, %v1872
      %v2001 = vsel %vm1745, %v1289, %v1873
      %v2002 = vsel %vm1746, %v1467, %v1874
      %v2003 = vsel %vm1747, %v1645, %v1875
      %v2004 = vsel %vm1748, %v1114, %v1876
      %v2005 = vsel %vm1749, %v1292, %v1877
      %v2006 = vsel %vm1750, %v1470, %v1878
      %v2007 = vsel %vm1751, %v1648, %v1879
      %v2008 = vsel %vm1752, %v1116, %v1880
      %v2009 = vsel %vm1753, %v1294, %v1881
      %v2010 = vsel %vm1754, %v1472, %v1882
      %v2011 = vsel %vm1755, %v1650, %v1883
      %v2012 = vsel %vm1756, %v1119, %v1884
      %v2013 = vsel %vm1757, %v1297, %v1885
      %v2014 = vsel %vm1758, %v1475, %v1886
      %v2015 = vsel %vm1759, %v1653, %v1887
      %v2016 = vsel %vm1760, %v1121, %v1888
      %v2017 = vsel %vm1761, %v1299, %v1889
      %v2018 = vsel %vm1762, %v1477, %v1890
      %v2019 = vsel %vm1763, %v1655, %v1891
      %v2020 = vsel %vm1764, %v1124, %v1892
      %v2021 = vsel %vm1765, %v1302, %v1893
      %v2022 = vsel %vm1766, %v1480, %v1894
      %v2023 = vsel %vm1767, %v1658, %v1895
      %v2024 = vsel %vm1768, %v1126, %v1896
      %v2025 = vsel %vm1769, %v1304, %v1897
      %v2026 = vsel %vm1770, %v1482, %v1898
      %v2027 = vsel %vm1771, %v1660, %v1899
      %v2028 = vsel %vm1772, %v1129, %v1900
      %v2029 = vsel %vm1773, %v1307, %v1901
      %v2030 = vsel %vm1774, %v1485, %v1902
      %v2031 = vsel %vm1775, %v1663, %v1903
      %v2032 = vsel %vm1776, %v1131, %v1904
      %v2033 = vsel %vm1777, %v1309, %v1905
      %v2034 = vsel %vm1778, %v1487, %v1906
      %v2035 = vsel %vm1779, %v1665, %v1907
      %v2036 = vsel %vm1780, %v1134, %v1908
      %v2037 = vsel %vm1781, %v1312, %v1909
      %v2038 = vsel %vm1782, %v1490, %v1910
      %v2039 = vsel %vm1783, %v1668, %v1911
      %v2040 = vsel %vm1784, %v1136, %v1912
      %v2041 = vsel %vm1785, %v1314, %v1913
      %v2042 = vsel %vm1786, %v1492, %v1914
      %v2043 = vsel %vm1787, %v1670, %v1915
      %v2044 = vsel %vm1788, %v1139, %v1916
      %v2045 = vsel %vm1789, %v1317, %v1917
      %v2046 = vsel %vm1790, %v1495, %v1918
      %v2047 = vsel %vm1791, %v1673, %v1919
      %v2048 = vsel %vm1792, %v1141, %v1920
      %v2049 = vsel %vm1793, %v1319, %v1921
      %v2050 = vsel %vm1794, %v1497, %v1922
      %v2051 = vsel %vm1795, %v1675, %v1923
      %v2052 = vsel %vm1796, %v1144, %v1924
      %v2053 = vsel %vm1797, %v1322, %v1925
      %v2054 = vsel %vm1798, %v1500, %v1926
      %v2055 = vsel %vm1799, %v1678, %v1927
      %v2056 = vsel %vm1800, %v1146, %v1928
      %v2057 = vsel %vm1801, %v1324, %v1929
      %v2058 = vsel %vm1802, %v1502, %v1930
      %v2059 = vsel %vm1803, %v1680, %v1931
      %v2060 = vsel %vm1804, %v1149, %v1932
      %v2061 = vsel %vm1805, %v1327, %v1933
      %v2062 = vsel %vm1806, %v1505, %v1934
      %v2063 = vsel %vm1807, %v1683, %v1935
      %v2064 = vsel %vm1808, %v1151, %v1936
      %v2065 = vsel %vm1809, %v1329, %v1937
      %v2066 = vsel %vm1810, %v1507, %v1938
      %v2067 = vsel %vm1811, %v1685, %v1939
      %v2068 = vsel %vm1812, %v1154, %v1940
      %v2069 = vsel %vm1813, %v1332, %v1941
      %v2070 = vsel %vm1814, %v1510, %v1942
      %v2071 = vsel %vm1815, %v1688, %v1943
      %v2072 = vsel %vm1816, %v1156, %v1944
      %v2073 = vsel %vm1817, %v1334, %v1945
      %v2074 = vsel %vm1818, %v1512, %v1946
      %v2075 = vsel %vm1819, %v1690, %v1947
      %v2076 = vpack.c.bf16 %v1952, %v1948
      %v2077 = vpack.c.bf16 %v1953, %v1949
      %v2078 = vpack.c.bf16 %v1954, %v1950
      %v2079 = vpack.c.bf16 %v1955, %v1951
      %v2080 = vpack.c.bf16 %v1960, %v1956
      %v2081 = vpack.c.bf16 %v1961, %v1957
      %v2082 = vpack.c.bf16 %v1962, %v1958
      %v2083 = vpack.c.bf16 %v1963, %v1959
      %v2084 = vpack.c.bf16 %v1968, %v1964
      %v2085 = vpack.c.bf16 %v1969, %v1965
      %v2086 = vpack.c.bf16 %v1970, %v1966
      %v2087 = vpack.c.bf16 %v1971, %v1967
      %v2088 = vpack.c.bf16 %v1976, %v1972
      %v2089 = vpack.c.bf16 %v1977, %v1973
      %v2090 = vpack.c.bf16 %v1978, %v1974
      %v2091 = vpack.c.bf16 %v1979, %v1975
      %v2092 = vpack.c.bf16 %v1984, %v1980
      %v2093 = vpack.c.bf16 %v1985, %v1981
      %v2094 = vpack.c.bf16 %v1986, %v1982
      %v2095 = vpack.c.bf16 %v1987, %v1983
      %v2096 = vpack.c.bf16 %v1992, %v1988
      %v2097 = vpack.c.bf16 %v1993, %v1989
      %v2098 = vpack.c.bf16 %v1994, %v1990
      %v2099 = vpack.c.bf16 %v1995, %v1991
      %v2100 = vpack.c.bf16 %v2000, %v1996
      %v2101 = vpack.c.bf16 %v2001, %v1997
      %v2102 = vpack.c.bf16 %v2002, %v1998
      %v2103 = vpack.c.bf16 %v2003, %v1999
      %v2104 = vpack.c.bf16 %v2008, %v2004
      %v2105 = vpack.c.bf16 %v2009, %v2005
      %v2106 = vpack.c.bf16 %v2010, %v2006
      %v2107 = vpack.c.bf16 %v2011, %v2007
      %v2108 = vpack.c.bf16 %v2016, %v2012
      %v2109 = vpack.c.bf16 %v2017, %v2013
      %v2110 = vpack.c.bf16 %v2018, %v2014
      %v2111 = vpack.c.bf16 %v2019, %v2015
      %v2112 = vpack.c.bf16 %v2024, %v2020
      %v2113 = vpack.c.bf16 %v2025, %v2021
      %v2114 = vpack.c.bf16 %v2026, %v2022
      %v2115 = vpack.c.bf16 %v2027, %v2023
      %v2116 = vpack.c.bf16 %v2032, %v2028
      %v2117 = vpack.c.bf16 %v2033, %v2029
      %v2118 = vpack.c.bf16 %v2034, %v2030
      %v2119 = vpack.c.bf16 %v2035, %v2031
      %v2120 = vpack.c.bf16 %v2040, %v2036
      %v2121 = vpack.c.bf16 %v2041, %v2037
      %v2122 = vpack.c.bf16 %v2042, %v2038
      %v2123 = vpack.c.bf16 %v2043, %v2039
      %v2124 = vpack.c.bf16 %v2048, %v2044
      %v2125 = vpack.c.bf16 %v2049, %v2045
      %v2126 = vpack.c.bf16 %v2050, %v2046
      %v2127 = vpack.c.bf16 %v2051, %v2047
      %v2128 = vpack.c.bf16 %v2056, %v2052
      %v2129 = vpack.c.bf16 %v2057, %v2053
      %v2130 = vpack.c.bf16 %v2058, %v2054
      %v2131 = vpack.c.bf16 %v2059, %v2055
      %v2132 = vpack.c.bf16 %v2064, %v2060
      %v2133 = vpack.c.bf16 %v2065, %v2061
      %v2134 = vpack.c.bf16 %v2066, %v2062
      %v2135 = vpack.c.bf16 %v2067, %v2063
      %v2136 = vpack.c.bf16 %v2072, %v2068
      %v2137 = vpack.c.bf16 %v2073, %v2069
      %v2138 = vpack.c.bf16 %v2074, %v2070
      %v2139 = vpack.c.bf16 %v2075, %v2071
      %v2140 = vld [vmem:[%s3] sm:$0xff]
      %v2141 = vld [vmem:[%s3 + $0x8] sm:$0xff]
      %v2142 = vld [vmem:[%s3 + $0x10] sm:$0xff]
      %v2143 = vld [vmem:[%s3 + $0x18] sm:$0xff]
      %v2144 = vld [vmem:[%s3 + $0x20] sm:$0xff]
      %v2145 = vld [vmem:[%s3 + $0x28] sm:$0xff]
      %v2146 = vld [vmem:[%s3 + $0x30] sm:$0xff]
      %v2147 = vld [vmem:[%s3 + $0x38] sm:$0xff]
      %v2148 = vld [vmem:[%s3 + $0x40] sm:$0xff]
      %v2149 = vld [vmem:[%s3 + $0x48] sm:$0xff]
      %v2150 = vld [vmem:[%s3 + $0x50] sm:$0xff]
      %v2151 = vld [vmem:[%s3 + $0x58] sm:$0xff]
      %v2152 = vld [vmem:[%s3 + $0x60] sm:$0xff]
      %v2153 = vld [vmem:[%s3 + $0x68] sm:$0xff]
      %v2154 = vld [vmem:[%s3 + $0x70] sm:$0xff]
      %v2155 = vld [vmem:[%s3 + $0x78] sm:$0xff]
      %v2156 = vld [vmem:[%s3 + $0x80] sm:$0xff]
      %v2157 = vld [vmem:[%s3 + $0x88] sm:$0xff]
      %v2158 = vld [vmem:[%s3 + $0x90] sm:$0xff]
      %v2159 = vld [vmem:[%s3 + $0x98] sm:$0xff]
      %v2160 = vld [vmem:[%s3 + $0xa0] sm:$0xff]
      %v2161 = vld [vmem:[%s3 + $0xa8] sm:$0xff]
      %v2162 = vld [vmem:[%s3 + $0xb0] sm:$0xff]
      %v2163 = vld [vmem:[%s3 + $0xb8] sm:$0xff]
      %v2164 = vld [vmem:[%s3 + $0xc0] sm:$0xff]
      %v2165 = vld [vmem:[%s3 + $0xc8] sm:$0xff]
      %v2166 = vld [vmem:[%s3 + $0xd0] sm:$0xff]
      %v2167 = vld [vmem:[%s3 + $0xd8] sm:$0xff]
      %v2168 = vld [vmem:[%s3 + $0xe0] sm:$0xff]
      %v2169 = vld [vmem:[%s3 + $0xe8] sm:$0xff]
      %v2170 = vld [vmem:[%s3 + $0xf0] sm:$0xff]
      %v2171 = vld [vmem:[%s3 + $0xf8] sm:$0xff]
      %v2172 = vld [vmem:[%s3 + $0x100] sm:$0xff]
      %v2173 = vld [vmem:[%s3 + $0x108] sm:$0xff]
      %v2174 = vld [vmem:[%s3 + $0x110] sm:$0xff]
      %v2175 = vld [vmem:[%s3 + $0x118] sm:$0xff]
      %v2176 = vld [vmem:[%s3 + $0x120] sm:$0xff]
      %v2177 = vld [vmem:[%s3 + $0x128] sm:$0xff]
      %v2178 = vld [vmem:[%s3 + $0x130] sm:$0xff]
      %v2179 = vld [vmem:[%s3 + $0x138] sm:$0xff]
      %v2180 = vld [vmem:[%s3 + $0x140] sm:$0xff]
      %v2181 = vld [vmem:[%s3 + $0x148] sm:$0xff]
      %v2182 = vld [vmem:[%s3 + $0x150] sm:$0xff]
      %v2183 = vld [vmem:[%s3 + $0x158] sm:$0xff]
      %v2184 = vld [vmem:[%s3 + $0x160] sm:$0xff]
      %v2185 = vld [vmem:[%s3 + $0x168] sm:$0xff]
      %v2186 = vld [vmem:[%s3 + $0x170] sm:$0xff]
      %v2187 = vld [vmem:[%s3 + $0x178] sm:$0xff]
      %v2188 = vld [vmem:[%s3 + $0x180] sm:$0xff]
      %v2189 = vld [vmem:[%s3 + $0x188] sm:$0xff]
      %v2190 = vld [vmem:[%s3 + $0x190] sm:$0xff]
      %v2191 = vld [vmem:[%s3 + $0x198] sm:$0xff]
      %v2192 = vld [vmem:[%s3 + $0x1a0] sm:$0xff]
      %v2193 = vld [vmem:[%s3 + $0x1a8] sm:$0xff]
      %v2194 = vld [vmem:[%s3 + $0x1b0] sm:$0xff]
      %v2195 = vld [vmem:[%s3 + $0x1b8] sm:$0xff]
      %v2196 = vld [vmem:[%s3 + $0x1c0] sm:$0xff]
      %v2197 = vld [vmem:[%s3 + $0x1c8] sm:$0xff]
      %v2198 = vld [vmem:[%s3 + $0x1d0] sm:$0xff]
      %v2199 = vld [vmem:[%s3 + $0x1d8] sm:$0xff]
      %v2200 = vld [vmem:[%s3 + $0x1e0] sm:$0xff]
      %v2201 = vld [vmem:[%s3 + $0x1e8] sm:$0xff]
      %v2202 = vld [vmem:[%s3 + $0x1f0] sm:$0xff]
      %v2203 = vld [vmem:[%s3 + $0x1f8] sm:$0xff]
      %v2204 = vld [vmem:[%s4] sm:$0x3]
      %v2206 = vperm.slane %v2204, 0
      %v2207 = vperm.slane %v2204, 1
      %v2274 = vunpack.c.l.b16 %v2140
      %v2275 = vunpack.c.h.b16 %v2140
      %v2276 = vunpack.c.l.b16 %v2141
      %v2277 = vunpack.c.h.b16 %v2141
      %v2278 = vunpack.c.l.b16 %v2142
      %v2279 = vunpack.c.h.b16 %v2142
      %v2280 = vunpack.c.l.b16 %v2143
      %v2281 = vunpack.c.h.b16 %v2143
      %v2282 = vunpack.c.l.b16 %v2144
      %v2283 = vunpack.c.h.b16 %v2144
      %v2284 = vunpack.c.l.b16 %v2145
      %v2285 = vunpack.c.h.b16 %v2145
      %v2286 = vunpack.c.l.b16 %v2146
      %v2287 = vunpack.c.h.b16 %v2146
      %v2288 = vunpack.c.l.b16 %v2147
      %v2289 = vunpack.c.h.b16 %v2147
      %v2290 = vunpack.c.l.b16 %v2148
      %v2291 = vunpack.c.h.b16 %v2148
      %v2292 = vunpack.c.l.b16 %v2149
      %v2293 = vunpack.c.h.b16 %v2149
      %v2294 = vunpack.c.l.b16 %v2150
      %v2295 = vunpack.c.h.b16 %v2150
      %v2296 = vunpack.c.l.b16 %v2151
      %v2297 = vunpack.c.h.b16 %v2151
      %v2298 = vunpack.c.l.b16 %v2152
      %v2299 = vunpack.c.h.b16 %v2152
      %v2300 = vunpack.c.l.b16 %v2153
      %v2301 = vunpack.c.h.b16 %v2153
      %v2302 = vunpack.c.l.b16 %v2154
      %v2303 = vunpack.c.h.b16 %v2154
      %v2304 = vunpack.c.l.b16 %v2155
      %v2305 = vunpack.c.h.b16 %v2155
      %v2306 = vunpack.c.l.b16 %v2156
      %v2307 = vunpack.c.h.b16 %v2156
      %v2308 = vunpack.c.l.b16 %v2157
      %v2309 = vunpack.c.h.b16 %v2157
      %v2310 = vunpack.c.l.b16 %v2158
      %v2311 = vunpack.c.h.b16 %v2158
      %v2312 = vunpack.c.l.b16 %v2159
      %v2313 = vunpack.c.h.b16 %v2159
      %v2314 = vunpack.c.l.b16 %v2160
      %v2315 = vunpack.c.h.b16 %v2160
      %v2316 = vunpack.c.l.b16 %v2161
      %v2317 = vunpack.c.h.b16 %v2161
      %v2318 = vunpack.c.l.b16 %v2162
      %v2319 = vunpack.c.h.b16 %v2162
      %v2320 = vunpack.c.l.b16 %v2163
      %v2321 = vunpack.c.h.b16 %v2163
      %v2322 = vunpack.c.l.b16 %v2164
      %v2323 = vunpack.c.h.b16 %v2164
      %v2324 = vunpack.c.l.b16 %v2165
      %v2325 = vunpack.c.h.b16 %v2165
      %v2326 = vunpack.c.l.b16 %v2166
      %v2327 = vunpack.c.h.b16 %v2166
      %v2328 = vunpack.c.l.b16 %v2167
      %v2329 = vunpack.c.h.b16 %v2167
      %v2330 = vunpack.c.l.b16 %v2168
      %v2331 = vunpack.c.h.b16 %v2168
      %v2332 = vunpack.c.l.b16 %v2169
      %v2333 = vunpack.c.h.b16 %v2169
      %v2334 = vunpack.c.l.b16 %v2170
      %v2335 = vunpack.c.h.b16 %v2170
      %v2336 = vunpack.c.l.b16 %v2171
      %v2337 = vunpack.c.h.b16 %v2171
      %v2338 = vunpack.c.l.b16 %v2172
      %v2339 = vunpack.c.h.b16 %v2172
      %v2340 = vunpack.c.l.b16 %v2173
      %v2341 = vunpack.c.h.b16 %v2173
      %v2342 = vunpack.c.l.b16 %v2174
      %v2343 = vunpack.c.h.b16 %v2174
      %v2344 = vunpack.c.l.b16 %v2175
      %v2345 = vunpack.c.h.b16 %v2175
      %v2346 = vunpack.c.l.b16 %v2176
      %v2347 = vunpack.c.h.b16 %v2176
      %v2348 = vunpack.c.l.b16 %v2177
      %v2349 = vunpack.c.h.b16 %v2177
      %v2350 = vunpack.c.l.b16 %v2178
      %v2351 = vunpack.c.h.b16 %v2178
      %v2352 = vunpack.c.l.b16 %v2179
      %v2353 = vunpack.c.h.b16 %v2179
      %v2354 = vunpack.c.l.b16 %v2180
      %v2355 = vunpack.c.h.b16 %v2180
      %v2356 = vunpack.c.l.b16 %v2181
      %v2357 = vunpack.c.h.b16 %v2181
      %v2358 = vunpack.c.l.b16 %v2182
      %v2359 = vunpack.c.h.b16 %v2182
      %v2360 = vunpack.c.l.b16 %v2183
      %v2361 = vunpack.c.h.b16 %v2183
      %v2362 = vunpack.c.l.b16 %v2184
      %v2363 = vunpack.c.h.b16 %v2184
      %v2364 = vunpack.c.l.b16 %v2185
      %v2365 = vunpack.c.h.b16 %v2185
      %v2366 = vunpack.c.l.b16 %v2186
      %v2367 = vunpack.c.h.b16 %v2186
      %v2368 = vunpack.c.l.b16 %v2187
      %v2369 = vunpack.c.h.b16 %v2187
      %v2370 = vunpack.c.l.b16 %v2188
      %v2371 = vunpack.c.h.b16 %v2188
      %v2372 = vunpack.c.l.b16 %v2189
      %v2373 = vunpack.c.h.b16 %v2189
      %v2374 = vunpack.c.l.b16 %v2190
      %v2375 = vunpack.c.h.b16 %v2190
      %v2376 = vunpack.c.l.b16 %v2191
      %v2377 = vunpack.c.h.b16 %v2191
      %v2378 = vunpack.c.l.b16 %v2192
      %v2379 = vunpack.c.h.b16 %v2192
      %v2380 = vunpack.c.l.b16 %v2193
      %v2381 = vunpack.c.h.b16 %v2193
      %v2382 = vunpack.c.l.b16 %v2194
      %v2383 = vunpack.c.h.b16 %v2194
      %v2384 = vunpack.c.l.b16 %v2195
      %v2385 = vunpack.c.h.b16 %v2195
      %v2386 = vunpack.c.l.b16 %v2196
      %v2387 = vunpack.c.h.b16 %v2196
      %v2388 = vunpack.c.l.b16 %v2197
      %v2389 = vunpack.c.h.b16 %v2197
      %v2390 = vunpack.c.l.b16 %v2198
      %v2391 = vunpack.c.h.b16 %v2198
      %v2392 = vunpack.c.l.b16 %v2199
      %v2393 = vunpack.c.h.b16 %v2199
      %v2394 = vunpack.c.l.b16 %v2200
      %v2395 = vunpack.c.h.b16 %v2200
      %v2396 = vunpack.c.l.b16 %v2201
      %v2397 = vunpack.c.h.b16 %v2201
      %v2398 = vunpack.c.l.b16 %v2202
      %v2399 = vunpack.c.h.b16 %v2202
      %v2400 = vunpack.c.l.b16 %v2203
      %v2401 = vunpack.c.h.b16 %v2203
      %v2402 = vpack.c.b16 %v2276, %v2274
      %v2403 = vpack.c.b16 %v2277, %v2275
      %v2404 = vpack.c.b16 %v2280, %v2278
      %v2405 = vpack.c.b16 %v2281, %v2279
      %v2406 = vpack.c.b16 %v2284, %v2282
      %v2407 = vpack.c.b16 %v2285, %v2283
      %v2408 = vpack.c.b16 %v2288, %v2286
      %v2409 = vpack.c.b16 %v2289, %v2287
      %v2410 = vpack.c.b16 %v2292, %v2290
      %v2411 = vpack.c.b16 %v2293, %v2291
      %v2412 = vpack.c.b16 %v2296, %v2294
      %v2413 = vpack.c.b16 %v2297, %v2295
      %v2414 = vpack.c.b16 %v2300, %v2298
      %v2415 = vpack.c.b16 %v2301, %v2299
      %v2416 = vpack.c.b16 %v2304, %v2302
      %v2417 = vpack.c.b16 %v2305, %v2303
      %v2418 = vpack.c.b16 %v2308, %v2306
      %v2419 = vpack.c.b16 %v2309, %v2307
      %v2420 = vpack.c.b16 %v2312, %v2310
      %v2421 = vpack.c.b16 %v2313, %v2311
      %v2422 = vpack.c.b16 %v2316, %v2314
      %v2423 = vpack.c.b16 %v2317, %v2315
      %v2424 = vpack.c.b16 %v2320, %v2318
      %v2425 = vpack.c.b16 %v2321, %v2319
      %v2426 = vpack.c.b16 %v2324, %v2322
      %v2427 = vpack.c.b16 %v2325, %v2323
      %v2428 = vpack.c.b16 %v2328, %v2326
      %v2429 = vpack.c.b16 %v2329, %v2327
      %v2430 = vpack.c.b16 %v2332, %v2330
      %v2431 = vpack.c.b16 %v2333, %v2331
      %v2432 = vpack.c.b16 %v2336, %v2334
      %v2433 = vpack.c.b16 %v2337, %v2335
      %v2434 = vpack.c.b16 %v2340, %v2338
      %v2435 = vpack.c.b16 %v2341, %v2339
      %v2436 = vpack.c.b16 %v2344, %v2342
      %v2437 = vpack.c.b16 %v2345, %v2343
      %v2438 = vpack.c.b16 %v2348, %v2346
      %v2439 = vpack.c.b16 %v2349, %v2347
      %v2440 = vpack.c.b16 %v2352, %v2350
      %v2441 = vpack.c.b16 %v2353, %v2351
      %v2442 = vpack.c.b16 %v2356, %v2354
      %v2443 = vpack.c.b16 %v2357, %v2355
      %v2444 = vpack.c.b16 %v2360, %v2358
      %v2445 = vpack.c.b16 %v2361, %v2359
      %v2446 = vpack.c.b16 %v2364, %v2362
      %v2447 = vpack.c.b16 %v2365, %v2363
      %v2448 = vpack.c.b16 %v2368, %v2366
      %v2449 = vpack.c.b16 %v2369, %v2367
      %v2450 = vpack.c.b16 %v2372, %v2370
      %v2451 = vpack.c.b16 %v2373, %v2371
      %v2452 = vpack.c.b16 %v2376, %v2374
      %v2453 = vpack.c.b16 %v2377, %v2375
      %v2454 = vpack.c.b16 %v2380, %v2378
      %v2455 = vpack.c.b16 %v2381, %v2379
      %v2456 = vpack.c.b16 %v2384, %v2382
      %v2457 = vpack.c.b16 %v2385, %v2383
      %v2458 = vpack.c.b16 %v2388, %v2386
      %v2459 = vpack.c.b16 %v2389, %v2387
      %v2460 = vpack.c.b16 %v2392, %v2390
      %v2461 = vpack.c.b16 %v2393, %v2391
      %v2462 = vpack.c.b16 %v2396, %v2394
      %v2463 = vpack.c.b16 %v2397, %v2395
      %v2464 = vpack.c.b16 %v2400, %v2398
      %v2465 = vpack.c.b16 %v2401, %v2399
      %2530 = vmatpush.bf16.msra.mxu0 %v2416
      %2531 = vmatpush.bf16.msra.mxu0 %v2414
      %2532 = vmatpush.bf16.msra.mxu0 %v2412
      %2533 = vmatpush.bf16.msra.mxu0 %v2410
      %2534 = vmatpush.bf16.msra.mxu0 %v2408
      %2535 = vmatpush.bf16.msra.mxu0 %v2406
      %2536 = vmatpush.bf16.msra.mxu0 %v2404
      %2537 = vmatpush.bf16.msra.mxu0 %v2402
      %2538 = vmatmul.bf16.gmra.mxu0 %v2076
      %v2539 = vpop.f32.mrf.mxu0
      %v2540 = vadd.f32 %v2206, %v2539
      %v2541 = vpop.f32.mrf.mxu0
      %v2542 = vadd.f32 %v2206, %v2541
      %2543 = vmatmul.bf16.gmra.mxu0 %v2080
      %v2544 = vpop.f32.mrf.mxu0
      %v2545 = vadd.f32 %v2206, %v2544
      %v2546 = vpop.f32.mrf.mxu0
      %v2547 = vadd.f32 %v2206, %v2546
      %2548 = vmatmul.bf16.gmra.mxu0 %v2084
      %v2549 = vpop.f32.mrf.mxu0
      %v2550 = vadd.f32 %v2206, %v2549
      %v2551 = vpop.f32.mrf.mxu0
      %v2552 = vadd.f32 %v2206, %v2551
      %2553 = vmatmul.bf16.gmra.mxu0 %v2088
      %v2554 = vpop.f32.mrf.mxu0
      %v2555 = vadd.f32 %v2206, %v2554
      %v2556 = vpop.f32.mrf.mxu0
      %v2557 = vadd.f32 %v2206, %v2556
      %2558 = vmatmul.bf16.gmra.mxu0 %v2092
      %v2559 = vpop.f32.mrf.mxu0
      %v2560 = vadd.f32 %v2206, %v2559
      %v2561 = vpop.f32.mrf.mxu0
      %v2562 = vadd.f32 %v2206, %v2561
      %2563 = vmatmul.bf16.gmra.mxu0 %v2096
      %v2564 = vpop.f32.mrf.mxu0
      %v2565 = vadd.f32 %v2206, %v2564
      %v2566 = vpop.f32.mrf.mxu0
      %v2567 = vadd.f32 %v2206, %v2566
      %2568 = vmatmul.bf16.gmra.mxu0 %v2100
      %v2569 = vpop.f32.mrf.mxu0
      %v2570 = vadd.f32 %v2206, %v2569
      %v2571 = vpop.f32.mrf.mxu0
      %v2572 = vadd.f32 %v2206, %v2571
      %2573 = vmatmul.bf16.gmra.mxu0 %v2104
      %v2574 = vpop.f32.mrf.mxu0
      %v2575 = vadd.f32 %v2206, %v2574
      %v2576 = vpop.f32.mrf.mxu0
      %v2577 = vadd.f32 %v2206, %v2576
      %2578 = vmatmul.bf16.gmra.mxu0 %v2108
      %v2579 = vpop.f32.mrf.mxu0
      %v2580 = vadd.f32 %v2206, %v2579
      %v2581 = vpop.f32.mrf.mxu0
      %v2582 = vadd.f32 %v2206, %v2581
      %2583 = vmatmul.bf16.gmra.mxu0 %v2112
      %v2584 = vpop.f32.mrf.mxu0
      %v2585 = vadd.f32 %v2206, %v2584
      %v2586 = vpop.f32.mrf.mxu0
      %v2587 = vadd.f32 %v2206, %v2586
      %2588 = vmatmul.bf16.gmra.mxu0 %v2116
      %v2589 = vpop.f32.mrf.mxu0
      %v2590 = vadd.f32 %v2206, %v2589
      %v2591 = vpop.f32.mrf.mxu0
      %v2592 = vadd.f32 %v2206, %v2591
      %2593 = vmatmul.bf16.gmra.mxu0 %v2120
      %v2594 = vpop.f32.mrf.mxu0
      %v2595 = vadd.f32 %v2206, %v2594
      %v2596 = vpop.f32.mrf.mxu0
      %v2597 = vadd.f32 %v2206, %v2596
      %2598 = vmatmul.bf16.gmra.mxu0 %v2124
      %v2599 = vpop.f32.mrf.mxu0
      %v2600 = vadd.f32 %v2206, %v2599
      %v2601 = vpop.f32.mrf.mxu0
      %v2602 = vadd.f32 %v2206, %v2601
      %2603 = vmatmul.bf16.gmra.mxu0 %v2128
      %v2604 = vpop.f32.mrf.mxu0
      %v2605 = vadd.f32 %v2206, %v2604
      %v2606 = vpop.f32.mrf.mxu0
      %v2607 = vadd.f32 %v2206, %v2606
      %2608 = vmatmul.bf16.gmra.mxu0 %v2132
      %v2609 = vpop.f32.mrf.mxu0
      %v2610 = vadd.f32 %v2206, %v2609
      %v2611 = vpop.f32.mrf.mxu0
      %v2612 = vadd.f32 %v2206, %v2611
      %2613 = vmatmul.bf16.gmra.mxu0 %v2136
      %v2614 = vpop.f32.mrf.mxu0
      %v2615 = vadd.f32 %v2206, %v2614
      %v2616 = vpop.f32.mrf.mxu0
      %v2617 = vadd.f32 %v2206, %v2616
      %2618 = vdwg.mxu0
      %2619 = vmatpush.bf16.msra.mxu0 %v2432
      %2620 = vmatpush.bf16.msra.mxu0 %v2430
      %2621 = vmatpush.bf16.msra.mxu0 %v2428
      %2622 = vmatpush.bf16.msra.mxu0 %v2426
      %2623 = vmatpush.bf16.msra.mxu0 %v2424
      %2624 = vmatpush.bf16.msra.mxu0 %v2422
      %2625 = vmatpush.bf16.msra.mxu0 %v2420
      %2626 = vmatpush.bf16.msra.mxu0 %v2418
      %2627 = vmatmul.bf16.gmra.mxu0 %v2077
      %v2628 = vpop.f32.mrf.mxu0
      %v2629 = vadd.f32 %v2540, %v2628
      %v2630 = vpop.f32.mrf.mxu0
      %v2631 = vadd.f32 %v2542, %v2630
      %2632 = vmatmul.bf16.gmra.mxu0 %v2081
      %v2633 = vpop.f32.mrf.mxu0
      %v2634 = vadd.f32 %v2545, %v2633
      %v2635 = vpop.f32.mrf.mxu0
      %v2636 = vadd.f32 %v2547, %v2635
      %2637 = vmatmul.bf16.gmra.mxu0 %v2085
      %v2638 = vpop.f32.mrf.mxu0
      %v2639 = vadd.f32 %v2550, %v2638
      %v2640 = vpop.f32.mrf.mxu0
      %v2641 = vadd.f32 %v2552, %v2640
      %2642 = vmatmul.bf16.gmra.mxu0 %v2089
      %v2643 = vpop.f32.mrf.mxu0
      %v2644 = vadd.f32 %v2555, %v2643
      %v2645 = vpop.f32.mrf.mxu0
      %v2646 = vadd.f32 %v2557, %v2645
      %2647 = vmatmul.bf16.gmra.mxu0 %v2093
      %v2648 = vpop.f32.mrf.mxu0
      %v2649 = vadd.f32 %v2560, %v2648
      %v2650 = vpop.f32.mrf.mxu0
      %v2651 = vadd.f32 %v2562, %v2650
      %2652 = vmatmul.bf16.gmra.mxu0 %v2097
      %v2653 = vpop.f32.mrf.mxu0
      %v2654 = vadd.f32 %v2565, %v2653
      %v2655 = vpop.f32.mrf.mxu0
      %v2656 = vadd.f32 %v2567, %v2655
      %2657 = vmatmul.bf16.gmra.mxu0 %v2101
      %v2658 = vpop.f32.mrf.mxu0
      %v2659 = vadd.f32 %v2570, %v2658
      %v2660 = vpop.f32.mrf.mxu0
      %v2661 = vadd.f32 %v2572, %v2660
      %2662 = vmatmul.bf16.gmra.mxu0 %v2105
      %v2663 = vpop.f32.mrf.mxu0
      %v2664 = vadd.f32 %v2575, %v2663
      %v2665 = vpop.f32.mrf.mxu0
      %v2666 = vadd.f32 %v2577, %v2665
      %2667 = vmatmul.bf16.gmra.mxu0 %v2109
      %v2668 = vpop.f32.mrf.mxu0
      %v2669 = vadd.f32 %v2580, %v2668
      %v2670 = vpop.f32.mrf.mxu0
      %v2671 = vadd.f32 %v2582, %v2670
      %2672 = vmatmul.bf16.gmra.mxu0 %v2113
      %v2673 = vpop.f32.mrf.mxu0
      %v2674 = vadd.f32 %v2585, %v2673
      %v2675 = vpop.f32.mrf.mxu0
      %v2676 = vadd.f32 %v2587, %v2675
      %2677 = vmatmul.bf16.gmra.mxu0 %v2117
      %v2678 = vpop.f32.mrf.mxu0
      %v2679 = vadd.f32 %v2590, %v2678
      %v2680 = vpop.f32.mrf.mxu0
      %v2681 = vadd.f32 %v2592, %v2680
      %2682 = vmatmul.bf16.gmra.mxu0 %v2121
      %v2683 = vpop.f32.mrf.mxu0
      %v2684 = vadd.f32 %v2595, %v2683
      %v2685 = vpop.f32.mrf.mxu0
      %v2686 = vadd.f32 %v2597, %v2685
      %2687 = vmatmul.bf16.gmra.mxu0 %v2125
      %v2688 = vpop.f32.mrf.mxu0
      %v2689 = vadd.f32 %v2600, %v2688
      %v2690 = vpop.f32.mrf.mxu0
      %v2691 = vadd.f32 %v2602, %v2690
      %2692 = vmatmul.bf16.gmra.mxu0 %v2129
      %v2693 = vpop.f32.mrf.mxu0
      %v2694 = vadd.f32 %v2605, %v2693
      %v2695 = vpop.f32.mrf.mxu0
      %v2696 = vadd.f32 %v2607, %v2695
      %2697 = vmatmul.bf16.gmra.mxu0 %v2133
      %v2698 = vpop.f32.mrf.mxu0
      %v2699 = vadd.f32 %v2610, %v2698
      %v2700 = vpop.f32.mrf.mxu0
      %v2701 = vadd.f32 %v2612, %v2700
      %2702 = vmatmul.bf16.gmra.mxu0 %v2137
      %v2703 = vpop.f32.mrf.mxu0
      %v2704 = vadd.f32 %v2615, %v2703
      %v2705 = vpop.f32.mrf.mxu0
      %v2706 = vadd.f32 %v2617, %v2705
      %2707 = vdwg.mxu0
      %2708 = vmatpush.bf16.msra.mxu0 %v2448
      %2709 = vmatpush.bf16.msra.mxu0 %v2446
      %2710 = vmatpush.bf16.msra.mxu0 %v2444
      %2711 = vmatpush.bf16.msra.mxu0 %v2442
      %2712 = vmatpush.bf16.msra.mxu0 %v2440
      %2713 = vmatpush.bf16.msra.mxu0 %v2438
      %2714 = vmatpush.bf16.msra.mxu0 %v2436
      %2715 = vmatpush.bf16.msra.mxu0 %v2434
      %2716 = vmatmul.bf16.gmra.mxu0 %v2078
      %v2717 = vpop.f32.mrf.mxu0
      %v2718 = vadd.f32 %v2629, %v2717
      %v2719 = vpop.f32.mrf.mxu0
      %v2720 = vadd.f32 %v2631, %v2719
      %2721 = vmatmul.bf16.gmra.mxu0 %v2082
      %v2722 = vpop.f32.mrf.mxu0
      %v2723 = vadd.f32 %v2634, %v2722
      %v2724 = vpop.f32.mrf.mxu0
      %v2725 = vadd.f32 %v2636, %v2724
      %2726 = vmatmul.bf16.gmra.mxu0 %v2086
      %v2727 = vpop.f32.mrf.mxu0
      %v2728 = vadd.f32 %v2639, %v2727
      %v2729 = vpop.f32.mrf.mxu0
      %v2730 = vadd.f32 %v2641, %v2729
      %2731 = vmatmul.bf16.gmra.mxu0 %v2090
      %v2732 = vpop.f32.mrf.mxu0
      %v2733 = vadd.f32 %v2644, %v2732
      %v2734 = vpop.f32.mrf.mxu0
      %v2735 = vadd.f32 %v2646, %v2734
      %2736 = vmatmul.bf16.gmra.mxu0 %v2094
      %v2737 = vpop.f32.mrf.mxu0
      %v2738 = vadd.f32 %v2649, %v2737
      %v2739 = vpop.f32.mrf.mxu0
      %v2740 = vadd.f32 %v2651, %v2739
      %2741 = vmatmul.bf16.gmra.mxu0 %v2098
      %v2742 = vpop.f32.mrf.mxu0
      %v2743 = vadd.f32 %v2654, %v2742
      %v2744 = vpop.f32.mrf.mxu0
      %v2745 = vadd.f32 %v2656, %v2744
      %2746 = vmatmul.bf16.gmra.mxu0 %v2102
      %v2747 = vpop.f32.mrf.mxu0
      %v2748 = vadd.f32 %v2659, %v2747
      %v2749 = vpop.f32.mrf.mxu0
      %v2750 = vadd.f32 %v2661, %v2749
      %2751 = vmatmul.bf16.gmra.mxu0 %v2106
      %v2752 = vpop.f32.mrf.mxu0
      %v2753 = vadd.f32 %v2664, %v2752
      %v2754 = vpop.f32.mrf.mxu0
      %v2755 = vadd.f32 %v2666, %v2754
      %2756 = vmatmul.bf16.gmra.mxu0 %v2110
      %v2757 = vpop.f32.mrf.mxu0
      %v2758 = vadd.f32 %v2669, %v2757
      %v2759 = vpop.f32.mrf.mxu0
      %v2760 = vadd.f32 %v2671, %v2759
      %2761 = vmatmul.bf16.gmra.mxu0 %v2114
      %v2762 = vpop.f32.mrf.mxu0
      %v2763 = vadd.f32 %v2674, %v2762
      %v2764 = vpop.f32.mrf.mxu0
      %v2765 = vadd.f32 %v2676, %v2764
      %2766 = vmatmul.bf16.gmra.mxu0 %v2118
      %v2767 = vpop.f32.mrf.mxu0
      %v2768 = vadd.f32 %v2679, %v2767
      %v2769 = vpop.f32.mrf.mxu0
      %v2770 = vadd.f32 %v2681, %v2769
      %2771 = vmatmul.bf16.gmra.mxu0 %v2122
      %v2772 = vpop.f32.mrf.mxu0
      %v2773 = vadd.f32 %v2684, %v2772
      %v2774 = vpop.f32.mrf.mxu0
      %v2775 = vadd.f32 %v2686, %v2774
      %2776 = vmatmul.bf16.gmra.mxu0 %v2126
      %v2777 = vpop.f32.mrf.mxu0
      %v2778 = vadd.f32 %v2689, %v2777
      %v2779 = vpop.f32.mrf.mxu0
      %v2780 = vadd.f32 %v2691, %v2779
      %2781 = vmatmul.bf16.gmra.mxu0 %v2130
      %v2782 = vpop.f32.mrf.mxu0
      %v2783 = vadd.f32 %v2694, %v2782
      %v2784 = vpop.f32.mrf.mxu0
      %v2785 = vadd.f32 %v2696, %v2784
      %2786 = vmatmul.bf16.gmra.mxu0 %v2134
      %v2787 = vpop.f32.mrf.mxu0
      %v2788 = vadd.f32 %v2699, %v2787
      %v2789 = vpop.f32.mrf.mxu0
      %v2790 = vadd.f32 %v2701, %v2789
      %2791 = vmatmul.bf16.gmra.mxu0 %v2138
      %v2792 = vpop.f32.mrf.mxu0
      %v2793 = vadd.f32 %v2704, %v2792
      %v2794 = vpop.f32.mrf.mxu0
      %v2795 = vadd.f32 %v2706, %v2794
      %2796 = vdwg.mxu0
      %2797 = vmatpush.bf16.msra.mxu0 %v2464
      %2798 = vmatpush.bf16.msra.mxu0 %v2462
      %2799 = vmatpush.bf16.msra.mxu0 %v2460
      %2800 = vmatpush.bf16.msra.mxu0 %v2458
      %2801 = vmatpush.bf16.msra.mxu0 %v2456
      %2802 = vmatpush.bf16.msra.mxu0 %v2454
      %2803 = vmatpush.bf16.msra.mxu0 %v2452
      %2804 = vmatpush.bf16.msra.mxu0 %v2450
      %2805 = vmatmul.bf16.gmra.mxu0 %v2079
      %v2806 = vpop.f32.mrf.mxu0
      %v2807 = vadd.f32 %v2718, %v2806
      %v2808 = vpop.f32.mrf.mxu0
      %v2809 = vadd.f32 %v2720, %v2808
      %2810 = vmatmul.bf16.gmra.mxu0 %v2083
      %v2811 = vpop.f32.mrf.mxu0
      %v2812 = vadd.f32 %v2723, %v2811
      %v2813 = vpop.f32.mrf.mxu0
      %v2814 = vadd.f32 %v2725, %v2813
      %2815 = vmatmul.bf16.gmra.mxu0 %v2087
      %v2816 = vpop.f32.mrf.mxu0
      %v2817 = vadd.f32 %v2728, %v2816
      %v2818 = vpop.f32.mrf.mxu0
      %v2819 = vadd.f32 %v2730, %v2818
      %2820 = vmatmul.bf16.gmra.mxu0 %v2091
      %v2821 = vpop.f32.mrf.mxu0
      %v2822 = vadd.f32 %v2733, %v2821
      %v2823 = vpop.f32.mrf.mxu0
      %v2824 = vadd.f32 %v2735, %v2823
      %2825 = vmatmul.bf16.gmra.mxu0 %v2095
      %v2826 = vpop.f32.mrf.mxu0
      %v2827 = vadd.f32 %v2738, %v2826
      %v2828 = vpop.f32.mrf.mxu0
      %v2829 = vadd.f32 %v2740, %v2828
      %2830 = vmatmul.bf16.gmra.mxu0 %v2099
      %v2831 = vpop.f32.mrf.mxu0
      %v2832 = vadd.f32 %v2743, %v2831
      %v2833 = vpop.f32.mrf.mxu0
      %v2834 = vadd.f32 %v2745, %v2833
      %2835 = vmatmul.bf16.gmra.mxu0 %v2103
      %v2836 = vpop.f32.mrf.mxu0
      %v2837 = vadd.f32 %v2748, %v2836
      %v2838 = vpop.f32.mrf.mxu0
      %v2839 = vadd.f32 %v2750, %v2838
      %2840 = vmatmul.bf16.gmra.mxu0 %v2107
      %v2841 = vpop.f32.mrf.mxu0
      %v2842 = vadd.f32 %v2753, %v2841
      %v2843 = vpop.f32.mrf.mxu0
      %v2844 = vadd.f32 %v2755, %v2843
      %2845 = vmatmul.bf16.gmra.mxu0 %v2111
      %v2846 = vpop.f32.mrf.mxu0
      %v2847 = vadd.f32 %v2758, %v2846
      %v2848 = vpop.f32.mrf.mxu0
      %v2849 = vadd.f32 %v2760, %v2848
      %2850 = vmatmul.bf16.gmra.mxu0 %v2115
      %v2851 = vpop.f32.mrf.mxu0
      %v2852 = vadd.f32 %v2763, %v2851
      %v2853 = vpop.f32.mrf.mxu0
      %v2854 = vadd.f32 %v2765, %v2853
      %2855 = vmatmul.bf16.gmra.mxu0 %v2119
      %v2856 = vpop.f32.mrf.mxu0
      %v2857 = vadd.f32 %v2768, %v2856
      %v2858 = vpop.f32.mrf.mxu0
      %v2859 = vadd.f32 %v2770, %v2858
      %2860 = vmatmul.bf16.gmra.mxu0 %v2123
      %v2861 = vpop.f32.mrf.mxu0
      %v2862 = vadd.f32 %v2773, %v2861
      %v2863 = vpop.f32.mrf.mxu0
      %v2864 = vadd.f32 %v2775, %v2863
      %2865 = vmatmul.bf16.gmra.mxu0 %v2127
      %v2866 = vpop.f32.mrf.mxu0
      %v2867 = vadd.f32 %v2778, %v2866
      %v2868 = vpop.f32.mrf.mxu0
      %v2869 = vadd.f32 %v2780, %v2868
      %2870 = vmatmul.bf16.gmra.mxu0 %v2131
      %v2871 = vpop.f32.mrf.mxu0
      %v2872 = vadd.f32 %v2783, %v2871
      %v2873 = vpop.f32.mrf.mxu0
      %v2874 = vadd.f32 %v2785, %v2873
      %2875 = vmatmul.bf16.gmra.mxu0 %v2135
      %v2876 = vpop.f32.mrf.mxu0
      %v2877 = vadd.f32 %v2788, %v2876
      %v2878 = vpop.f32.mrf.mxu0
      %v2879 = vadd.f32 %v2790, %v2878
      %2880 = vmatmul.bf16.gmra.mxu0 %v2139
      %v2881 = vpop.f32.mrf.mxu0
      %v2882 = vadd.f32 %v2793, %v2881
      %v2883 = vpop.f32.mrf.mxu0
      %v2884 = vadd.f32 %v2795, %v2883
      %2885 = vdwg.mxu0
      %2886 = vmatpush.bf16.msra.mxu0 %v2417
      %2887 = vmatpush.bf16.msra.mxu0 %v2415
      %2888 = vmatpush.bf16.msra.mxu0 %v2413
      %2889 = vmatpush.bf16.msra.mxu0 %v2411
      %2890 = vmatpush.bf16.msra.mxu0 %v2409
      %2891 = vmatpush.bf16.msra.mxu0 %v2407
      %2892 = vmatpush.bf16.msra.mxu0 %v2405
      %2893 = vmatpush.bf16.msra.mxu0 %v2403
      %2894 = vmatmul.bf16.gmra.mxu0 %v2076
      %v2895 = vpop.f32.mrf.mxu0
      %v2896 = vadd.f32 %v2207, %v2895
      %v2897 = vpop.f32.mrf.mxu0
      %v2898 = vadd.f32 %v2207, %v2897
      %2899 = vmatmul.bf16.gmra.mxu0 %v2080
      %v2900 = vpop.f32.mrf.mxu0
      %v2901 = vadd.f32 %v2207, %v2900
      %v2902 = vpop.f32.mrf.mxu0
      %v2903 = vadd.f32 %v2207, %v2902
      %2904 = vmatmul.bf16.gmra.mxu0 %v2084
      %v2905 = vpop.f32.mrf.mxu0
      %v2906 = vadd.f32 %v2207, %v2905
      %v2907 = vpop.f32.mrf.mxu0
      %v2908 = vadd.f32 %v2207, %v2907
      %2909 = vmatmul.bf16.gmra.mxu0 %v2088
      %v2910 = vpop.f32.mrf.mxu0
      %v2911 = vadd.f32 %v2207, %v2910
      %v2912 = vpop.f32.mrf.mxu0
      %v2913 = vadd.f32 %v2207, %v2912
      %2914 = vmatmul.bf16.gmra.mxu0 %v2092
      %v2915 = vpop.f32.mrf.mxu0
      %v2916 = vadd.f32 %v2207, %v2915
      %v2917 = vpop.f32.mrf.mxu0
      %v2918 = vadd.f32 %v2207, %v2917
      %2919 = vmatmul.bf16.gmra.mxu0 %v2096
      %v2920 = vpop.f32.mrf.mxu0
      %v2921 = vadd.f32 %v2207, %v2920
      %v2922 = vpop.f32.mrf.mxu0
      %v2923 = vadd.f32 %v2207, %v2922
      %2924 = vmatmul.bf16.gmra.mxu0 %v2100
      %v2925 = vpop.f32.mrf.mxu0
      %v2926 = vadd.f32 %v2207, %v2925
      %v2927 = vpop.f32.mrf.mxu0
      %v2928 = vadd.f32 %v2207, %v2927
      %2929 = vmatmul.bf16.gmra.mxu0 %v2104
      %v2930 = vpop.f32.mrf.mxu0
      %v2931 = vadd.f32 %v2207, %v2930
      %v2932 = vpop.f32.mrf.mxu0
      %v2933 = vadd.f32 %v2207, %v2932
      %2934 = vmatmul.bf16.gmra.mxu0 %v2108
      %v2935 = vpop.f32.mrf.mxu0
      %v2936 = vadd.f32 %v2207, %v2935
      %v2937 = vpop.f32.mrf.mxu0
      %v2938 = vadd.f32 %v2207, %v2937
      %2939 = vmatmul.bf16.gmra.mxu0 %v2112
      %v2940 = vpop.f32.mrf.mxu0
      %v2941 = vadd.f32 %v2207, %v2940
      %v2942 = vpop.f32.mrf.mxu0
      %v2943 = vadd.f32 %v2207, %v2942
      %2944 = vmatmul.bf16.gmra.mxu0 %v2116
      %v2945 = vpop.f32.mrf.mxu0
      %v2946 = vadd.f32 %v2207, %v2945
      %v2947 = vpop.f32.mrf.mxu0
      %v2948 = vadd.f32 %v2207, %v2947
      %2949 = vmatmul.bf16.gmra.mxu0 %v2120
      %v2950 = vpop.f32.mrf.mxu0
      %v2951 = vadd.f32 %v2207, %v2950
      %v2952 = vpop.f32.mrf.mxu0
      %v2953 = vadd.f32 %v2207, %v2952
      %2954 = vmatmul.bf16.gmra.mxu0 %v2124
      %v2955 = vpop.f32.mrf.mxu0
      %v2956 = vadd.f32 %v2207, %v2955
      %v2957 = vpop.f32.mrf.mxu0
      %v2958 = vadd.f32 %v2207, %v2957
      %2959 = vmatmul.bf16.gmra.mxu0 %v2128
      %v2960 = vpop.f32.mrf.mxu0
      %v2961 = vadd.f32 %v2207, %v2960
      %v2962 = vpop.f32.mrf.mxu0
      %v2963 = vadd.f32 %v2207, %v2962
      %2964 = vmatmul.bf16.gmra.mxu0 %v2132
      %v2965 = vpop.f32.mrf.mxu0
      %v2966 = vadd.f32 %v2207, %v2965
      %v2967 = vpop.f32.mrf.mxu0
      %v2968 = vadd.f32 %v2207, %v2967
      %2969 = vmatmul.bf16.gmra.mxu0 %v2136
      %v2970 = vpop.f32.mrf.mxu0
      %v2971 = vadd.f32 %v2207, %v2970
      %v2972 = vpop.f32.mrf.mxu0
      %v2973 = vadd.f32 %v2207, %v2972
      %2974 = vdwg.mxu0
      %2975 = vmatpush.bf16.msra.mxu0 %v2433
      %2976 = vmatpush.bf16.msra.mxu0 %v2431
      %2977 = vmatpush.bf16.msra.mxu0 %v2429
      %2978 = vmatpush.bf16.msra.mxu0 %v2427
      %2979 = vmatpush.bf16.msra.mxu0 %v2425
      %2980 = vmatpush.bf16.msra.mxu0 %v2423
      %2981 = vmatpush.bf16.msra.mxu0 %v2421
      %2982 = vmatpush.bf16.msra.mxu0 %v2419
      %2983 = vmatmul.bf16.gmra.mxu0 %v2077
      %v2984 = vpop.f32.mrf.mxu0
      %v2985 = vadd.f32 %v2896, %v2984
      %v2986 = vpop.f32.mrf.mxu0
      %v2987 = vadd.f32 %v2898, %v2986
      %2988 = vmatmul.bf16.gmra.mxu0 %v2081
      %v2989 = vpop.f32.mrf.mxu0
      %v2990 = vadd.f32 %v2901, %v2989
      %v2991 = vpop.f32.mrf.mxu0
      %v2992 = vadd.f32 %v2903, %v2991
      %2993 = vmatmul.bf16.gmra.mxu0 %v2085
      %v2994 = vpop.f32.mrf.mxu0
      %v2995 = vadd.f32 %v2906, %v2994
      %v2996 = vpop.f32.mrf.mxu0
      %v2997 = vadd.f32 %v2908, %v2996
      %2998 = vmatmul.bf16.gmra.mxu0 %v2089
      %v2999 = vpop.f32.mrf.mxu0
      %v3000 = vadd.f32 %v2911, %v2999
      %v3001 = vpop.f32.mrf.mxu0
      %v3002 = vadd.f32 %v2913, %v3001
      %3003 = vmatmul.bf16.gmra.mxu0 %v2093
      %v3004 = vpop.f32.mrf.mxu0
      %v3005 = vadd.f32 %v2916, %v3004
      %v3006 = vpop.f32.mrf.mxu0
      %v3007 = vadd.f32 %v2918, %v3006
      %3008 = vmatmul.bf16.gmra.mxu0 %v2097
      %v3009 = vpop.f32.mrf.mxu0
      %v3010 = vadd.f32 %v2921, %v3009
      %v3011 = vpop.f32.mrf.mxu0
      %v3012 = vadd.f32 %v2923, %v3011
      %3013 = vmatmul.bf16.gmra.mxu0 %v2101
      %v3014 = vpop.f32.mrf.mxu0
      %v3015 = vadd.f32 %v2926, %v3014
      %v3016 = vpop.f32.mrf.mxu0
      %v3017 = vadd.f32 %v2928, %v3016
      %3018 = vmatmul.bf16.gmra.mxu0 %v2105
      %v3019 = vpop.f32.mrf.mxu0
      %v3020 = vadd.f32 %v2931, %v3019
      %v3021 = vpop.f32.mrf.mxu0
      %v3022 = vadd.f32 %v2933, %v3021
      %3023 = vmatmul.bf16.gmra.mxu0 %v2109
      %v3024 = vpop.f32.mrf.mxu0
      %v3025 = vadd.f32 %v2936, %v3024
      %v3026 = vpop.f32.mrf.mxu0
      %v3027 = vadd.f32 %v2938, %v3026
      %3028 = vmatmul.bf16.gmra.mxu0 %v2113
      %v3029 = vpop.f32.mrf.mxu0
      %v3030 = vadd.f32 %v2941, %v3029
      %v3031 = vpop.f32.mrf.mxu0
      %v3032 = vadd.f32 %v2943, %v3031
      %3033 = vmatmul.bf16.gmra.mxu0 %v2117
      %v3034 = vpop.f32.mrf.mxu0
      %v3035 = vadd.f32 %v2946, %v3034
      %v3036 = vpop.f32.mrf.mxu0
      %v3037 = vadd.f32 %v2948, %v3036
      %3038 = vmatmul.bf16.gmra.mxu0 %v2121
      %v3039 = vpop.f32.mrf.mxu0
      %v3040 = vadd.f32 %v2951, %v3039
      %v3041 = vpop.f32.mrf.mxu0
      %v3042 = vadd.f32 %v2953, %v3041
      %3043 = vmatmul.bf16.gmra.mxu0 %v2125
      %v3044 = vpop.f32.mrf.mxu0
      %v3045 = vadd.f32 %v2956, %v3044
      %v3046 = vpop.f32.mrf.mxu0
      %v3047 = vadd.f32 %v2958, %v3046
      %3048 = vmatmul.bf16.gmra.mxu0 %v2129
      %v3049 = vpop.f32.mrf.mxu0
      %v3050 = vadd.f32 %v2961, %v3049
      %v3051 = vpop.f32.mrf.mxu0
      %v3052 = vadd.f32 %v2963, %v3051
      %3053 = vmatmul.bf16.gmra.mxu0 %v2133
      %v3054 = vpop.f32.mrf.mxu0
      %v3055 = vadd.f32 %v2966, %v3054
      %v3056 = vpop.f32.mrf.mxu0
      %v3057 = vadd.f32 %v2968, %v3056
      %3058 = vmatmul.bf16.gmra.mxu0 %v2137
      %v3059 = vpop.f32.mrf.mxu0
      %v3060 = vadd.f32 %v2971, %v3059
      %v3061 = vpop.f32.mrf.mxu0
      %v3062 = vadd.f32 %v2973, %v3061
      %3063 = vdwg.mxu0
      %3064 = vmatpush.bf16.msra.mxu0 %v2449
      %3065 = vmatpush.bf16.msra.mxu0 %v2447
      %3066 = vmatpush.bf16.msra.mxu0 %v2445
      %3067 = vmatpush.bf16.msra.mxu0 %v2443
      %3068 = vmatpush.bf16.msra.mxu0 %v2441
      %3069 = vmatpush.bf16.msra.mxu0 %v2439
      %3070 = vmatpush.bf16.msra.mxu0 %v2437
      %3071 = vmatpush.bf16.msra.mxu0 %v2435
      %3072 = vmatmul.bf16.gmra.mxu0 %v2078
      %v3073 = vpop.f32.mrf.mxu0
      %v3074 = vadd.f32 %v2985, %v3073
      %v3075 = vpop.f32.mrf.mxu0
      %v3076 = vadd.f32 %v2987, %v3075
      %3077 = vmatmul.bf16.gmra.mxu0 %v2082
      %v3078 = vpop.f32.mrf.mxu0
      %v3079 = vadd.f32 %v2990, %v3078
      %v3080 = vpop.f32.mrf.mxu0
      %v3081 = vadd.f32 %v2992, %v3080
      %3082 = vmatmul.bf16.gmra.mxu0 %v2086
      %v3083 = vpop.f32.mrf.mxu0
      %v3084 = vadd.f32 %v2995, %v3083
      %v3085 = vpop.f32.mrf.mxu0
      %v3086 = vadd.f32 %v2997, %v3085
      %3087 = vmatmul.bf16.gmra.mxu0 %v2090
      %v3088 = vpop.f32.mrf.mxu0
      %v3089 = vadd.f32 %v3000, %v3088
      %v3090 = vpop.f32.mrf.mxu0
      %v3091 = vadd.f32 %v3002, %v3090
      %3092 = vmatmul.bf16.gmra.mxu0 %v2094
      %v3093 = vpop.f32.mrf.mxu0
      %v3094 = vadd.f32 %v3005, %v3093
      %v3095 = vpop.f32.mrf.mxu0
      %v3096 = vadd.f32 %v3007, %v3095
      %3097 = vmatmul.bf16.gmra.mxu0 %v2098
      %v3098 = vpop.f32.mrf.mxu0
      %v3099 = vadd.f32 %v3010, %v3098
      %v3100 = vpop.f32.mrf.mxu0
      %v3101 = vadd.f32 %v3012, %v3100
      %3102 = vmatmul.bf16.gmra.mxu0 %v2102
      %v3103 = vpop.f32.mrf.mxu0
      %v3104 = vadd.f32 %v3015, %v3103
      %v3105 = vpop.f32.mrf.mxu0
      %v3106 = vadd.f32 %v3017, %v3105
      %3107 = vmatmul.bf16.gmra.mxu0 %v2106
      %v3108 = vpop.f32.mrf.mxu0
      %v3109 = vadd.f32 %v3020, %v3108
      %v3110 = vpop.f32.mrf.mxu0
      %v3111 = vadd.f32 %v3022, %v3110
      %3112 = vmatmul.bf16.gmra.mxu0 %v2110
      %v3113 = vpop.f32.mrf.mxu0
      %v3114 = vadd.f32 %v3025, %v3113
      %v3115 = vpop.f32.mrf.mxu0
      %v3116 = vadd.f32 %v3027, %v3115
      %3117 = vmatmul.bf16.gmra.mxu0 %v2114
      %v3118 = vpop.f32.mrf.mxu0
      %v3119 = vadd.f32 %v3030, %v3118
      %v3120 = vpop.f32.mrf.mxu0
      %v3121 = vadd.f32 %v3032, %v3120
      %3122 = vmatmul.bf16.gmra.mxu0 %v2118
      %v3123 = vpop.f32.mrf.mxu0
      %v3124 = vadd.f32 %v3035, %v3123
      %v3125 = vpop.f32.mrf.mxu0
      %v3126 = vadd.f32 %v3037, %v3125
      %3127 = vmatmul.bf16.gmra.mxu0 %v2122
      %v3128 = vpop.f32.mrf.mxu0
      %v3129 = vadd.f32 %v3040, %v3128
      %v3130 = vpop.f32.mrf.mxu0
      %v3131 = vadd.f32 %v3042, %v3130
      %3132 = vmatmul.bf16.gmra.mxu0 %v2126
      %v3133 = vpop.f32.mrf.mxu0
      %v3134 = vadd.f32 %v3045, %v3133
      %v3135 = vpop.f32.mrf.mxu0
      %v3136 = vadd.f32 %v3047, %v3135
      %3137 = vmatmul.bf16.gmra.mxu0 %v2130
      %v3138 = vpop.f32.mrf.mxu0
      %v3139 = vadd.f32 %v3050, %v3138
      %v3140 = vpop.f32.mrf.mxu0
      %v3141 = vadd.f32 %v3052, %v3140
      %3142 = vmatmul.bf16.gmra.mxu0 %v2134
      %v3143 = vpop.f32.mrf.mxu0
      %v3144 = vadd.f32 %v3055, %v3143
      %v3145 = vpop.f32.mrf.mxu0
      %v3146 = vadd.f32 %v3057, %v3145
      %3147 = vmatmul.bf16.gmra.mxu0 %v2138
      %v3148 = vpop.f32.mrf.mxu0
      %v3149 = vadd.f32 %v3060, %v3148
      %v3150 = vpop.f32.mrf.mxu0
      %v3151 = vadd.f32 %v3062, %v3150
      %3152 = vdwg.mxu0
      %3153 = vmatpush.bf16.msra.mxu0 %v2465
      %3154 = vmatpush.bf16.msra.mxu0 %v2463
      %3155 = vmatpush.bf16.msra.mxu0 %v2461
      %3156 = vmatpush.bf16.msra.mxu0 %v2459
      %3157 = vmatpush.bf16.msra.mxu0 %v2457
      %3158 = vmatpush.bf16.msra.mxu0 %v2455
      %3159 = vmatpush.bf16.msra.mxu0 %v2453
      %3160 = vmatpush.bf16.msra.mxu0 %v2451
      %3161 = vmatmul.bf16.gmra.mxu0 %v2079
      %v3162 = vpop.f32.mrf.mxu0
      %v3163 = vadd.f32 %v3074, %v3162
      %v3164 = vpop.f32.mrf.mxu0
      %v3165 = vadd.f32 %v3076, %v3164
      %3166 = vmatmul.bf16.gmra.mxu0 %v2083
      %v3167 = vpop.f32.mrf.mxu0
      %v3168 = vadd.f32 %v3079, %v3167
      %v3169 = vpop.f32.mrf.mxu0
      %v3170 = vadd.f32 %v3081, %v3169
      %3171 = vmatmul.bf16.gmra.mxu0 %v2087
      %v3172 = vpop.f32.mrf.mxu0
      %v3173 = vadd.f32 %v3084, %v3172
      %v3174 = vpop.f32.mrf.mxu0
      %v3175 = vadd.f32 %v3086, %v3174
      %3176 = vmatmul.bf16.gmra.mxu0 %v2091
      %v3177 = vpop.f32.mrf.mxu0
      %v3178 = vadd.f32 %v3089, %v3177
      %v3179 = vpop.f32.mrf.mxu0
      %v3180 = vadd.f32 %v3091, %v3179
      %3181 = vmatmul.bf16.gmra.mxu0 %v2095
      %v3182 = vpop.f32.mrf.mxu0
      %v3183 = vadd.f32 %v3094, %v3182
      %v3184 = vpop.f32.mrf.mxu0
      %v3185 = vadd.f32 %v3096, %v3184
      %3186 = vmatmul.bf16.gmra.mxu0 %v2099
      %v3187 = vpop.f32.mrf.mxu0
      %v3188 = vadd.f32 %v3099, %v3187
      %v3189 = vpop.f32.mrf.mxu0
      %v3190 = vadd.f32 %v3101, %v3189
      %3191 = vmatmul.bf16.gmra.mxu0 %v2103
      %v3192 = vpop.f32.mrf.mxu0
      %v3193 = vadd.f32 %v3104, %v3192
      %v3194 = vpop.f32.mrf.mxu0
      %v3195 = vadd.f32 %v3106, %v3194
      %3196 = vmatmul.bf16.gmra.mxu0 %v2107
      %v3197 = vpop.f32.mrf.mxu0
      %v3198 = vadd.f32 %v3109, %v3197
      %v3199 = vpop.f32.mrf.mxu0
      %v3200 = vadd.f32 %v3111, %v3199
      %3201 = vmatmul.bf16.gmra.mxu0 %v2111
      %v3202 = vpop.f32.mrf.mxu0
      %v3203 = vadd.f32 %v3114, %v3202
      %v3204 = vpop.f32.mrf.mxu0
      %v3205 = vadd.f32 %v3116, %v3204
      %3206 = vmatmul.bf16.gmra.mxu0 %v2115
      %v3207 = vpop.f32.mrf.mxu0
      %v3208 = vadd.f32 %v3119, %v3207
      %v3209 = vpop.f32.mrf.mxu0
      %v3210 = vadd.f32 %v3121, %v3209
      %3211 = vmatmul.bf16.gmra.mxu0 %v2119
      %v3212 = vpop.f32.mrf.mxu0
      %v3213 = vadd.f32 %v3124, %v3212
      %v3214 = vpop.f32.mrf.mxu0
      %v3215 = vadd.f32 %v3126, %v3214
      %3216 = vmatmul.bf16.gmra.mxu0 %v2123
      %v3217 = vpop.f32.mrf.mxu0
      %v3218 = vadd.f32 %v3129, %v3217
      %v3219 = vpop.f32.mrf.mxu0
      %v3220 = vadd.f32 %v3131, %v3219
      %3221 = vmatmul.bf16.gmra.mxu0 %v2127
      %v3222 = vpop.f32.mrf.mxu0
      %v3223 = vadd.f32 %v3134, %v3222
      %v3224 = vpop.f32.mrf.mxu0
      %v3225 = vadd.f32 %v3136, %v3224
      %3226 = vmatmul.bf16.gmra.mxu0 %v2131
      %v3227 = vpop.f32.mrf.mxu0
      %v3228 = vadd.f32 %v3139, %v3227
      %v3229 = vpop.f32.mrf.mxu0
      %v3230 = vadd.f32 %v3141, %v3229
      %3231 = vmatmul.bf16.gmra.mxu0 %v2135
      %v3232 = vpop.f32.mrf.mxu0
      %v3233 = vadd.f32 %v3144, %v3232
      %v3234 = vpop.f32.mrf.mxu0
      %v3235 = vadd.f32 %v3146, %v3234
      %3236 = vmatmul.bf16.gmra.mxu0 %v2139
      %v3237 = vpop.f32.mrf.mxu0
      %v3238 = vadd.f32 %v3149, %v3237
      %v3239 = vpop.f32.mrf.mxu0
      %v3240 = vadd.f32 %v3151, %v3239
      %3241 = vdwg.mxu0
      %vm3242 = vcmp.ge.f32.partialorder %v2807, 0.0
      %vm3243 = vcmp.ge.f32.partialorder %v3163, 0.0
      %vm3244 = vcmp.ge.f32.partialorder %v2809, 0.0
      %vm3245 = vcmp.ge.f32.partialorder %v3165, 0.0
      %vm3246 = vcmp.ge.f32.partialorder %v2812, 0.0
      %vm3247 = vcmp.ge.f32.partialorder %v3168, 0.0
      %vm3248 = vcmp.ge.f32.partialorder %v2814, 0.0
      %vm3249 = vcmp.ge.f32.partialorder %v3170, 0.0
      %vm3250 = vcmp.ge.f32.partialorder %v2817, 0.0
      %vm3251 = vcmp.ge.f32.partialorder %v3173, 0.0
      %vm3252 = vcmp.ge.f32.partialorder %v2819, 0.0
      %vm3253 = vcmp.ge.f32.partialorder %v3175, 0.0
      %vm3254 = vcmp.ge.f32.partialorder %v2822, 0.0
      %vm3255 = vcmp.ge.f32.partialorder %v3178, 0.0
      %vm3256 = vcmp.ge.f32.partialorder %v2824, 0.0
      %vm3257 = vcmp.ge.f32.partialorder %v3180, 0.0
      %vm3258 = vcmp.ge.f32.partialorder %v2827, 0.0
      %vm3259 = vcmp.ge.f32.partialorder %v3183, 0.0
      %vm3260 = vcmp.ge.f32.partialorder %v2829, 0.0
      %vm3261 = vcmp.ge.f32.partialorder %v3185, 0.0
      %vm3262 = vcmp.ge.f32.partialorder %v2832, 0.0
      %vm3263 = vcmp.ge.f32.partialorder %v3188, 0.0
      %vm3264 = vcmp.ge.f32.partialorder %v2834, 0.0
      %vm3265 = vcmp.ge.f32.partialorder %v3190, 0.0
      %vm3266 = vcmp.ge.f32.partialorder %v2837, 0.0
      %vm3267 = vcmp.ge.f32.partialorder %v3193, 0.0
      %vm3268 = vcmp.ge.f32.partialorder %v2839, 0.0
      %vm3269 = vcmp.ge.f32.partialorder %v3195, 0.0
      %vm3270 = vcmp.ge.f32.partialorder %v2842, 0.0
      %vm3271 = vcmp.ge.f32.partialorder %v3198, 0.0
      %vm3272 = vcmp.ge.f32.partialorder %v2844, 0.0
      %vm3273 = vcmp.ge.f32.partialorder %v3200, 0.0
      %vm3274 = vcmp.ge.f32.partialorder %v2847, 0.0
      %vm3275 = vcmp.ge.f32.partialorder %v3203, 0.0
      %vm3276 = vcmp.ge.f32.partialorder %v2849, 0.0
      %vm3277 = vcmp.ge.f32.partialorder %v3205, 0.0
      %vm3278 = vcmp.ge.f32.partialorder %v2852, 0.0
      %vm3279 = vcmp.ge.f32.partialorder %v3208, 0.0
      %vm3280 = vcmp.ge.f32.partialorder %v2854, 0.0
      %vm3281 = vcmp.ge.f32.partialorder %v3210, 0.0
      %vm3282 = vcmp.ge.f32.partialorder %v2857, 0.0
      %vm3283 = vcmp.ge.f32.partialorder %v3213, 0.0
      %vm3284 = vcmp.ge.f32.partialorder %v2859, 0.0
      %vm3285 = vcmp.ge.f32.partialorder %v3215, 0.0
      %vm3286 = vcmp.ge.f32.partialorder %v2862, 0.0
      %vm3287 = vcmp.ge.f32.partialorder %v3218, 0.0
      %vm3288 = vcmp.ge.f32.partialorder %v2864, 0.0
      %vm3289 = vcmp.ge.f32.partialorder %v3220, 0.0
      %vm3290 = vcmp.ge.f32.partialorder %v2867, 0.0
      %vm3291 = vcmp.ge.f32.partialorder %v3223, 0.0
      %vm3292 = vcmp.ge.f32.partialorder %v2869, 0.0
      %vm3293 = vcmp.ge.f32.partialorder %v3225, 0.0
      %vm3294 = vcmp.ge.f32.partialorder %v2872, 0.0
      %vm3295 = vcmp.ge.f32.partialorder %v3228, 0.0
      %vm3296 = vcmp.ge.f32.partialorder %v2874, 0.0
      %vm3297 = vcmp.ge.f32.partialorder %v3230, 0.0
      %vm3298 = vcmp.ge.f32.partialorder %v2877, 0.0
      %vm3299 = vcmp.ge.f32.partialorder %v3233, 0.0
      %vm3300 = vcmp.ge.f32.partialorder %v2879, 0.0
      %vm3301 = vcmp.ge.f32.partialorder %v3235, 0.0
      %vm3302 = vcmp.ge.f32.partialorder %v2882, 0.0
      %vm3303 = vcmp.ge.f32.partialorder %v3238, 0.0
      %vm3304 = vcmp.ge.f32.partialorder %v2884, 0.0
      %vm3305 = vcmp.ge.f32.partialorder %v3240, 0.0
      %v3306 = vmul.f32 %v2807, 0.1
      %v3307 = vmul.f32 %v3163, 0.1
      %v3308 = vmul.f32 %v2809, 0.1
      %v3309 = vmul.f32 %v3165, 0.1
      %v3310 = vmul.f32 %v2812, 0.1
      %v3311 = vmul.f32 %v3168, 0.1
      %v3312 = vmul.f32 %v2814, 0.1
      %v3313 = vmul.f32 %v3170, 0.1
      %v3314 = vmul.f32 %v2817, 0.1
      %v3315 = vmul.f32 %v3173, 0.1
      %v3316 = vmul.f32 %v2819, 0.1
      %v3317 = vmul.f32 %v3175, 0.1
      %v3318 = vmul.f32 %v2822, 0.1
      %v3319 = vmul.f32 %v3178, 0.1
      %v3320 = vmul.f32 %v2824, 0.1
      %v3321 = vmul.f32 %v3180, 0.1
      %v3322 = vmul.f32 %v2827, 0.1
      %v3323 = vmul.f32 %v3183, 0.1
      %v3324 = vmul.f32 %v2829, 0.1
      %v3325 = vmul.f32 %v3185, 0.1
      %v3326 = vmul.f32 %v2832, 0.1
      %v3327 = vmul.f32 %v3188, 0.1
      %v3328 = vmul.f32 %v2834, 0.1
      %v3329 = vmul.f32 %v3190, 0.1
      %v3330 = vmul.f32 %v2837, 0.1
      %v3331 = vmul.f32 %v3193, 0.1
      %v3332 = vmul.f32 %v2839, 0.1
      %v3333 = vmul.f32 %v3195, 0.1
      %v3334 = vmul.f32 %v2842, 0.1
      %v3335 = vmul.f32 %v3198, 0.1
      %v3336 = vmul.f32 %v2844, 0.1
      %v3337 = vmul.f32 %v3200, 0.1
      %v3338 = vmul.f32 %v2847, 0.1
      %v3339 = vmul.f32 %v3203, 0.1
      %v3340 = vmul.f32 %v2849, 0.1
      %v3341 = vmul.f32 %v3205, 0.1
      %v3342 = vmul.f32 %v2852, 0.1
      %v3343 = vmul.f32 %v3208, 0.1
      %v3344 = vmul.f32 %v2854, 0.1
      %v3345 = vmul.f32 %v3210, 0.1
      %v3346 = vmul.f32 %v2857, 0.1
      %v3347 = vmul.f32 %v3213, 0.1
      %v3348 = vmul.f32 %v2859, 0.1
      %v3349 = vmul.f32 %v3215, 0.1
      %v3350 = vmul.f32 %v2862, 0.1
      %v3351 = vmul.f32 %v3218, 0.1
      %v3352 = vmul.f32 %v2864, 0.1
      %v3353 = vmul.f32 %v3220, 0.1
      %v3354 = vmul.f32 %v2867, 0.1
      %v3355 = vmul.f32 %v3223, 0.1
      %v3356 = vmul.f32 %v2869, 0.1
      %v3357 = vmul.f32 %v3225, 0.1
      %v3358 = vmul.f32 %v2872, 0.1
      %v3359 = vmul.f32 %v3228, 0.1
      %v3360 = vmul.f32 %v2874, 0.1
      %v3361 = vmul.f32 %v3230, 0.1
      %v3362 = vmul.f32 %v2877, 0.1
      %v3363 = vmul.f32 %v3233, 0.1
      %v3364 = vmul.f32 %v2879, 0.1
      %v3365 = vmul.f32 %v3235, 0.1
      %v3366 = vmul.f32 %v2882, 0.1
      %v3367 = vmul.f32 %v3238, 0.1
      %v3368 = vmul.f32 %v2884, 0.1
      %v3369 = vmul.f32 %v3240, 0.1
      %v3370 = vsel %vm3242, %v2807, %v3306
      %v3371 = vsel %vm3243, %v3163, %v3307
      %v3372 = vsel %vm3244, %v2809, %v3308
      %v3373 = vsel %vm3245, %v3165, %v3309
      %v3374 = vsel %vm3246, %v2812, %v3310
      %v3375 = vsel %vm3247, %v3168, %v3311
      %v3376 = vsel %vm3248, %v2814, %v3312
      %v3377 = vsel %vm3249, %v3170, %v3313
      %v3378 = vsel %vm3250, %v2817, %v3314
      %v3379 = vsel %vm3251, %v3173, %v3315
      %v3380 = vsel %vm3252, %v2819, %v3316
      %v3381 = vsel %vm3253, %v3175, %v3317
      %v3382 = vsel %vm3254, %v2822, %v3318
      %v3383 = vsel %vm3255, %v3178, %v3319
      %v3384 = vsel %vm3256, %v2824, %v3320
      %v3385 = vsel %vm3257, %v3180, %v3321
      %v3386 = vsel %vm3258, %v2827, %v3322
      %v3387 = vsel %vm3259, %v3183, %v3323
      %v3388 = vsel %vm3260, %v2829, %v3324
      %v3389 = vsel %vm3261, %v3185, %v3325
      %v3390 = vsel %vm3262, %v2832, %v3326
      %v3391 = vsel %vm3263, %v3188, %v3327
      %v3392 = vsel %vm3264, %v2834, %v3328
      %v3393 = vsel %vm3265, %v3190, %v3329
      %v3394 = vsel %vm3266, %v2837, %v3330
      %v3395 = vsel %vm3267, %v3193, %v3331
      %v3396 = vsel %vm3268, %v2839, %v3332
      %v3397 = vsel %vm3269, %v3195, %v3333
      %v3398 = vsel %vm3270, %v2842, %v3334
      %v3399 = vsel %vm3271, %v3198, %v3335
      %v3400 = vsel %vm3272, %v2844, %v3336
      %v3401 = vsel %vm3273, %v3200, %v3337
      %v3402 = vsel %vm3274, %v2847, %v3338
      %v3403 = vsel %vm3275, %v3203, %v3339
      %v3404 = vsel %vm3276, %v2849, %v3340
      %v3405 = vsel %vm3277, %v3205, %v3341
      %v3406 = vsel %vm3278, %v2852, %v3342
      %v3407 = vsel %vm3279, %v3208, %v3343
      %v3408 = vsel %vm3280, %v2854, %v3344
      %v3409 = vsel %vm3281, %v3210, %v3345
      %v3410 = vsel %vm3282, %v2857, %v3346
      %v3411 = vsel %vm3283, %v3213, %v3347
      %v3412 = vsel %vm3284, %v2859, %v3348
      %v3413 = vsel %vm3285, %v3215, %v3349
      %v3414 = vsel %vm3286, %v2862, %v3350
      %v3415 = vsel %vm3287, %v3218, %v3351
      %v3416 = vsel %vm3288, %v2864, %v3352
      %v3417 = vsel %vm3289, %v3220, %v3353
      %v3418 = vsel %vm3290, %v2867, %v3354
      %v3419 = vsel %vm3291, %v3223, %v3355
      %v3420 = vsel %vm3292, %v2869, %v3356
      %v3421 = vsel %vm3293, %v3225, %v3357
      %v3422 = vsel %vm3294, %v2872, %v3358
      %v3423 = vsel %vm3295, %v3228, %v3359
      %v3424 = vsel %vm3296, %v2874, %v3360
      %v3425 = vsel %vm3297, %v3230, %v3361
      %v3426 = vsel %vm3298, %v2877, %v3362
      %v3427 = vsel %vm3299, %v3233, %v3363
      %v3428 = vsel %vm3300, %v2879, %v3364
      %v3429 = vsel %vm3301, %v3235, %v3365
      %v3430 = vsel %vm3302, %v2882, %v3366
      %v3431 = vsel %vm3303, %v3238, %v3367
      %v3432 = vsel %vm3304, %v2884, %v3368
      %v3433 = vsel %vm3305, %v3240, %v3369
      %v3434 = vpack.c.bf16 %v3372, %v3370
      %v3435 = vpack.c.bf16 %v3373, %v3371
      %v3436 = vpack.c.bf16 %v3376, %v3374
      %v3437 = vpack.c.bf16 %v3377, %v3375
      %v3438 = vpack.c.bf16 %v3380, %v3378
      %v3439 = vpack.c.bf16 %v3381, %v3379
      %v3440 = vpack.c.bf16 %v3384, %v3382
      %v3441 = vpack.c.bf16 %v3385, %v3383
      %v3442 = vpack.c.bf16 %v3388, %v3386
      %v3443 = vpack.c.bf16 %v3389, %v3387
      %v3444 = vpack.c.bf16 %v3392, %v3390
      %v3445 = vpack.c.bf16 %v3393, %v3391
      %v3446 = vpack.c.bf16 %v3396, %v3394
      %v3447 = vpack.c.bf16 %v3397, %v3395
      %v3448 = vpack.c.bf16 %v3400, %v3398
      %v3449 = vpack.c.bf16 %v3401, %v3399
      %v3450 = vpack.c.bf16 %v3404, %v3402
      %v3451 = vpack.c.bf16 %v3405, %v3403
      %v3452 = vpack.c.bf16 %v3408, %v3406
      %v3453 = vpack.c.bf16 %v3409, %v3407
      %v3454 = vpack.c.bf16 %v3412, %v3410
      %v3455 = vpack.c.bf16 %v3413, %v3411
      %v3456 = vpack.c.bf16 %v3416, %v3414
      %v3457 = vpack.c.bf16 %v3417, %v3415
      %v3458 = vpack.c.bf16 %v3420, %v3418
      %v3459 = vpack.c.bf16 %v3421, %v3419
      %v3460 = vpack.c.bf16 %v3424, %v3422
      %v3461 = vpack.c.bf16 %v3425, %v3423
      %v3462 = vpack.c.bf16 %v3428, %v3426
      %v3463 = vpack.c.bf16 %v3429, %v3427
      %v3464 = vpack.c.bf16 %v3432, %v3430
      %v3465 = vpack.c.bf16 %v3433, %v3431
      %v3466 = vld [vmem:[%s5] sm:$0xf]
      %v3467 = vld [vmem:[%s5 + $0x4] sm:$0xf]
      %v3468 = vld [vmem:[%s5 + $0x8] sm:$0xf]
      %v3469 = vld [vmem:[%s5 + $0xc] sm:$0xf]
      %v3470 = vld [vmem:[%s5 + $0x10] sm:$0xf]
      %v3471 = vld [vmem:[%s5 + $0x14] sm:$0xf]
      %v3472 = vld [vmem:[%s5 + $0x18] sm:$0xf]
      %v3473 = vld [vmem:[%s5 + $0x1c] sm:$0xf]
      %v3474 = vld [vmem:[%s5 + $0x20] sm:$0xf]
      %v3475 = vld [vmem:[%s5 + $0x24] sm:$0xf]
      %v3476 = vld [vmem:[%s5 + $0x28] sm:$0xf]
      %v3477 = vld [vmem:[%s5 + $0x2c] sm:$0xf]
      %v3478 = vld [vmem:[%s5 + $0x30] sm:$0xf]
      %v3479 = vld [vmem:[%s5 + $0x34] sm:$0xf]
      %v3480 = vld [vmem:[%s5 + $0x38] sm:$0xf]
      %v3481 = vld [vmem:[%s5 + $0x3c] sm:$0xf]
      %v3482 = vld [vmem:[%s5 + $0x40] sm:$0xf]
      %v3483 = vld [vmem:[%s5 + $0x44] sm:$0xf]
      %v3484 = vld [vmem:[%s5 + $0x48] sm:$0xf]
      %v3485 = vld [vmem:[%s5 + $0x4c] sm:$0xf]
      %v3486 = vld [vmem:[%s5 + $0x50] sm:$0xf]
      %v3487 = vld [vmem:[%s5 + $0x54] sm:$0xf]
      %v3488 = vld [vmem:[%s5 + $0x58] sm:$0xf]
      %v3489 = vld [vmem:[%s5 + $0x5c] sm:$0xf]
      %v3490 = vld [vmem:[%s5 + $0x60] sm:$0xf]
      %v3491 = vld [vmem:[%s5 + $0x64] sm:$0xf]
      %v3492 = vld [vmem:[%s5 + $0x68] sm:$0xf]
      %v3493 = vld [vmem:[%s5 + $0x6c] sm:$0xf]
      %v3494 = vld [vmem:[%s5 + $0x70] sm:$0xf]
      %v3495 = vld [vmem:[%s5 + $0x74] sm:$0xf]
      %v3496 = vld [vmem:[%s5 + $0x78] sm:$0xf]
      %v3497 = vld [vmem:[%s5 + $0x7c] sm:$0xf]
      %v3498 = vld [vmem:[%s6] sm:$0x1]
      %v3500 = vperm.slane %v3498, 0
      %v3534 = vunpack.c.l.b16 %v3466
      %v3535 = vunpack.c.l.b16 %v3467
      %v3536 = vunpack.c.l.b16 %v3468
      %v3537 = vunpack.c.l.b16 %v3469
      %v3538 = vunpack.c.l.b16 %v3470
      %v3539 = vunpack.c.l.b16 %v3471
      %v3540 = vunpack.c.l.b16 %v3472
      %v3541 = vunpack.c.l.b16 %v3473
      %v3542 = vunpack.c.l.b16 %v3474
      %v3543 = vunpack.c.l.b16 %v3475
      %v3544 = vunpack.c.l.b16 %v3476
      %v3545 = vunpack.c.l.b16 %v3477
      %v3546 = vunpack.c.l.b16 %v3478
      %v3547 = vunpack.c.l.b16 %v3479
      %v3548 = vunpack.c.l.b16 %v3480
      %v3549 = vunpack.c.l.b16 %v3481
      %v3550 = vunpack.c.l.b16 %v3482
      %v3551 = vunpack.c.l.b16 %v3483
      %v3552 = vunpack.c.l.b16 %v3484
      %v3553 = vunpack.c.l.b16 %v3485
      %v3554 = vunpack.c.l.b16 %v3486
      %v3555 = vunpack.c.l.b16 %v3487
      %v3556 = vunpack.c.l.b16 %v3488
      %v3557 = vunpack.c.l.b16 %v3489
      %v3558 = vunpack.c.l.b16 %v3490
      %v3559 = vunpack.c.l.b16 %v3491
      %v3560 = vunpack.c.l.b16 %v3492
      %v3561 = vunpack.c.l.b16 %v3493
      %v3562 = vunpack.c.l.b16 %v3494
      %v3563 = vunpack.c.l.b16 %v3495
      %v3564 = vunpack.c.l.b16 %v3496
      %v3565 = vunpack.c.l.b16 %v3497
      %v3566 = vpack.c.b16 %v3535, %v3534
      %v3567 = vpack.c.b16 %v3537, %v3536
      %v3568 = vpack.c.b16 %v3539, %v3538
      %v3569 = vpack.c.b16 %v3541, %v3540
      %v3570 = vpack.c.b16 %v3543, %v3542
      %v3571 = vpack.c.b16 %v3545, %v3544
      %v3572 = vpack.c.b16 %v3547, %v3546
      %v3573 = vpack.c.b16 %v3549, %v3548
      %v3574 = vpack.c.b16 %v3551, %v3550
      %v3575 = vpack.c.b16 %v3553, %v3552
      %v3576 = vpack.c.b16 %v3555, %v3554
      %v3577 = vpack.c.b16 %v3557, %v3556
      %v3578 = vpack.c.b16 %v3559, %v3558
      %v3579 = vpack.c.b16 %v3561, %v3560
      %v3580 = vpack.c.b16 %v3563, %v3562
      %v3581 = vpack.c.b16 %v3565, %v3564
      %3598 = vmatpush.bf16.msra.mxu0 %v3573
      %3599 = vmatpush.bf16.msra.mxu0 %v3572
      %3600 = vmatpush.bf16.msra.mxu0 %v3571
      %3601 = vmatpush.bf16.msra.mxu0 %v3570
      %3602 = vmatpush.bf16.msra.mxu0 %v3569
      %3603 = vmatpush.bf16.msra.mxu0 %v3568
      %3604 = vmatpush.bf16.msra.mxu0 %v3567
      %3605 = vmatpush.bf16.msra.mxu0 %v3566
      %3606 = vmatmul.bf16.gmra.mxu0 %v3434
      %v3607 = vpop.f32.mrf.mxu0
      %v3608 = vadd.f32 %v3500, %v3607
      %v3609 = vpop.f32.mrf.mxu0
      %v3610 = vadd.f32 %v3500, %v3609
      %3611 = vmatmul.bf16.gmra.mxu0 %v3436
      %v3612 = vpop.f32.mrf.mxu0
      %v3613 = vadd.f32 %v3500, %v3612
      %v3614 = vpop.f32.mrf.mxu0
      %v3615 = vadd.f32 %v3500, %v3614
      %3616 = vmatmul.bf16.gmra.mxu0 %v3438
      %v3617 = vpop.f32.mrf.mxu0
      %v3618 = vadd.f32 %v3500, %v3617
      %v3619 = vpop.f32.mrf.mxu0
      %v3620 = vadd.f32 %v3500, %v3619
      %3621 = vmatmul.bf16.gmra.mxu0 %v3440
      %v3622 = vpop.f32.mrf.mxu0
      %v3623 = vadd.f32 %v3500, %v3622
      %v3624 = vpop.f32.mrf.mxu0
      %v3625 = vadd.f32 %v3500, %v3624
      %3626 = vmatmul.bf16.gmra.mxu0 %v3442
      %v3627 = vpop.f32.mrf.mxu0
      %v3628 = vadd.f32 %v3500, %v3627
      %v3629 = vpop.f32.mrf.mxu0
      %v3630 = vadd.f32 %v3500, %v3629
      %3631 = vmatmul.bf16.gmra.mxu0 %v3444
      %v3632 = vpop.f32.mrf.mxu0
      %v3633 = vadd.f32 %v3500, %v3632
      %v3634 = vpop.f32.mrf.mxu0
      %v3635 = vadd.f32 %v3500, %v3634
      %3636 = vmatmul.bf16.gmra.mxu0 %v3446
      %v3637 = vpop.f32.mrf.mxu0
      %v3638 = vadd.f32 %v3500, %v3637
      %v3639 = vpop.f32.mrf.mxu0
      %v3640 = vadd.f32 %v3500, %v3639
      %3641 = vmatmul.bf16.gmra.mxu0 %v3448
      %v3642 = vpop.f32.mrf.mxu0
      %v3643 = vadd.f32 %v3500, %v3642
      %v3644 = vpop.f32.mrf.mxu0
      %v3645 = vadd.f32 %v3500, %v3644
      %3646 = vmatmul.bf16.gmra.mxu0 %v3450
      %v3647 = vpop.f32.mrf.mxu0
      %v3648 = vadd.f32 %v3500, %v3647
      %v3649 = vpop.f32.mrf.mxu0
      %v3650 = vadd.f32 %v3500, %v3649
      %3651 = vmatmul.bf16.gmra.mxu0 %v3452
      %v3652 = vpop.f32.mrf.mxu0
      %v3653 = vadd.f32 %v3500, %v3652
      %v3654 = vpop.f32.mrf.mxu0
      %v3655 = vadd.f32 %v3500, %v3654
      %3656 = vmatmul.bf16.gmra.mxu0 %v3454
      %v3657 = vpop.f32.mrf.mxu0
      %v3658 = vadd.f32 %v3500, %v3657
      %v3659 = vpop.f32.mrf.mxu0
      %v3660 = vadd.f32 %v3500, %v3659
      %3661 = vmatmul.bf16.gmra.mxu0 %v3456
      %v3662 = vpop.f32.mrf.mxu0
      %v3663 = vadd.f32 %v3500, %v3662
      %v3664 = vpop.f32.mrf.mxu0
      %v3665 = vadd.f32 %v3500, %v3664
      %3666 = vmatmul.bf16.gmra.mxu0 %v3458
      %v3667 = vpop.f32.mrf.mxu0
      %v3668 = vadd.f32 %v3500, %v3667
      %v3669 = vpop.f32.mrf.mxu0
      %v3670 = vadd.f32 %v3500, %v3669
      %3671 = vmatmul.bf16.gmra.mxu0 %v3460
      %v3672 = vpop.f32.mrf.mxu0
      %v3673 = vadd.f32 %v3500, %v3672
      %v3674 = vpop.f32.mrf.mxu0
      %v3675 = vadd.f32 %v3500, %v3674
      %3676 = vmatmul.bf16.gmra.mxu0 %v3462
      %v3677 = vpop.f32.mrf.mxu0
      %v3678 = vadd.f32 %v3500, %v3677
      %v3679 = vpop.f32.mrf.mxu0
      %v3680 = vadd.f32 %v3500, %v3679
      %3681 = vmatmul.bf16.gmra.mxu0 %v3464
      %v3682 = vpop.f32.mrf.mxu0
      %v3683 = vadd.f32 %v3500, %v3682
      %v3684 = vpop.f32.mrf.mxu0
      %v3685 = vadd.f32 %v3500, %v3684
      %3686 = vdwg.mxu0
      %3687 = vmatpush.bf16.msra.mxu0 %v3581
      %3688 = vmatpush.bf16.msra.mxu0 %v3580
      %3689 = vmatpush.bf16.msra.mxu0 %v3579
      %3690 = vmatpush.bf16.msra.mxu0 %v3578
      %3691 = vmatpush.bf16.msra.mxu0 %v3577
      %3692 = vmatpush.bf16.msra.mxu0 %v3576
      %3693 = vmatpush.bf16.msra.mxu0 %v3575
      %3694 = vmatpush.bf16.msra.mxu0 %v3574
      %3695 = vmatmul.bf16.gmra.mxu0 %v3435
      %v3696 = vpop.f32.mrf.mxu0
      %v3697 = vadd.f32 %v3608, %v3696
      %v3698 = vpop.f32.mrf.mxu0
      %v3699 = vadd.f32 %v3610, %v3698
      %3700 = vmatmul.bf16.gmra.mxu0 %v3437
      %v3701 = vpop.f32.mrf.mxu0
      %v3702 = vadd.f32 %v3613, %v3701
      %v3703 = vpop.f32.mrf.mxu0
      %v3704 = vadd.f32 %v3615, %v3703
      %3705 = vmatmul.bf16.gmra.mxu0 %v3439
      %v3706 = vpop.f32.mrf.mxu0
      %v3707 = vadd.f32 %v3618, %v3706
      %v3708 = vpop.f32.mrf.mxu0
      %v3709 = vadd.f32 %v3620, %v3708
      %3710 = vmatmul.bf16.gmra.mxu0 %v3441
      %v3711 = vpop.f32.mrf.mxu0
      %v3712 = vadd.f32 %v3623, %v3711
      %v3713 = vpop.f32.mrf.mxu0
      %v3714 = vadd.f32 %v3625, %v3713
      %3715 = vmatmul.bf16.gmra.mxu0 %v3443
      %v3716 = vpop.f32.mrf.mxu0
      %v3717 = vadd.f32 %v3628, %v3716
      %v3718 = vpop.f32.mrf.mxu0
      %v3719 = vadd.f32 %v3630, %v3718
      %3720 = vmatmul.bf16.gmra.mxu0 %v3445
      %v3721 = vpop.f32.mrf.mxu0
      %v3722 = vadd.f32 %v3633, %v3721
      %v3723 = vpop.f32.mrf.mxu0
      %v3724 = vadd.f32 %v3635, %v3723
      %3725 = vmatmul.bf16.gmra.mxu0 %v3447
      %v3726 = vpop.f32.mrf.mxu0
      %v3727 = vadd.f32 %v3638, %v3726
      %v3728 = vpop.f32.mrf.mxu0
      %v3729 = vadd.f32 %v3640, %v3728
      %3730 = vmatmul.bf16.gmra.mxu0 %v3449
      %v3731 = vpop.f32.mrf.mxu0
      %v3732 = vadd.f32 %v3643, %v3731
      %v3733 = vpop.f32.mrf.mxu0
      %v3734 = vadd.f32 %v3645, %v3733
      %3735 = vmatmul.bf16.gmra.mxu0 %v3451
      %v3736 = vpop.f32.mrf.mxu0
      %v3737 = vadd.f32 %v3648, %v3736
      %v3738 = vpop.f32.mrf.mxu0
      %v3739 = vadd.f32 %v3650, %v3738
      %3740 = vmatmul.bf16.gmra.mxu0 %v3453
      %v3741 = vpop.f32.mrf.mxu0
      %v3742 = vadd.f32 %v3653, %v3741
      %v3743 = vpop.f32.mrf.mxu0
      %v3744 = vadd.f32 %v3655, %v3743
      %3745 = vmatmul.bf16.gmra.mxu0 %v3455
      %v3746 = vpop.f32.mrf.mxu0
      %v3747 = vadd.f32 %v3658, %v3746
      %v3748 = vpop.f32.mrf.mxu0
      %v3749 = vadd.f32 %v3660, %v3748
      %3750 = vmatmul.bf16.gmra.mxu0 %v3457
      %v3751 = vpop.f32.mrf.mxu0
      %v3752 = vadd.f32 %v3663, %v3751
      %v3753 = vpop.f32.mrf.mxu0
      %v3754 = vadd.f32 %v3665, %v3753
      %3755 = vmatmul.bf16.gmra.mxu0 %v3459
      %v3756 = vpop.f32.mrf.mxu0
      %v3757 = vadd.f32 %v3668, %v3756
      %v3758 = vpop.f32.mrf.mxu0
      %v3759 = vadd.f32 %v3670, %v3758
      %3760 = vmatmul.bf16.gmra.mxu0 %v3461
      %v3761 = vpop.f32.mrf.mxu0
      %v3762 = vadd.f32 %v3673, %v3761
      %v3763 = vpop.f32.mrf.mxu0
      %v3764 = vadd.f32 %v3675, %v3763
      %3765 = vmatmul.bf16.gmra.mxu0 %v3463
      %v3766 = vpop.f32.mrf.mxu0
      %v3767 = vadd.f32 %v3678, %v3766
      %v3768 = vpop.f32.mrf.mxu0
      %v3769 = vadd.f32 %v3680, %v3768
      %3770 = vmatmul.bf16.gmra.mxu0 %v3465
      %v3771 = vpop.f32.mrf.mxu0
      %v3772 = vadd.f32 %v3683, %v3771
      %v3773 = vpop.f32.mrf.mxu0
      %v3774 = vadd.f32 %v3685, %v3773
      %3775 = vdwg.mxu0
      %vm3776 = vcmp.ge.f32.partialorder %v3697, 0.0
      %vm3777 = vcmp.ge.f32.partialorder %v3699, 0.0
      %vm3778 = vcmp.ge.f32.partialorder %v3702, 0.0
      %vm3779 = vcmp.ge.f32.partialorder %v3704, 0.0
      %vm3780 = vcmp.ge.f32.partialorder %v3707, 0.0
      %vm3781 = vcmp.ge.f32.partialorder %v3709, 0.0
      %vm3782 = vcmp.ge.f32.partialorder %v3712, 0.0
      %vm3783 = vcmp.ge.f32.partialorder %v3714, 0.0
      %vm3784 = vcmp.ge.f32.partialorder %v3717, 0.0
      %vm3785 = vcmp.ge.f32.partialorder %v3719, 0.0
      %vm3786 = vcmp.ge.f32.partialorder %v3722, 0.0
      %vm3787 = vcmp.ge.f32.partialorder %v3724, 0.0
      %vm3788 = vcmp.ge.f32.partialorder %v3727, 0.0
      %vm3789 = vcmp.ge.f32.partialorder %v3729, 0.0
      %vm3790 = vcmp.ge.f32.partialorder %v3732, 0.0
      %vm3791 = vcmp.ge.f32.partialorder %v3734, 0.0
      %vm3792 = vcmp.ge.f32.partialorder %v3737, 0.0
      %vm3793 = vcmp.ge.f32.partialorder %v3739, 0.0
      %vm3794 = vcmp.ge.f32.partialorder %v3742, 0.0
      %vm3795 = vcmp.ge.f32.partialorder %v3744, 0.0
      %vm3796 = vcmp.ge.f32.partialorder %v3747, 0.0
      %vm3797 = vcmp.ge.f32.partialorder %v3749, 0.0
      %vm3798 = vcmp.ge.f32.partialorder %v3752, 0.0
      %vm3799 = vcmp.ge.f32.partialorder %v3754, 0.0
      %vm3800 = vcmp.ge.f32.partialorder %v3757, 0.0
      %vm3801 = vcmp.ge.f32.partialorder %v3759, 0.0
      %vm3802 = vcmp.ge.f32.partialorder %v3762, 0.0
      %vm3803 = vcmp.ge.f32.partialorder %v3764, 0.0
      %vm3804 = vcmp.ge.f32.partialorder %v3767, 0.0
      %vm3805 = vcmp.ge.f32.partialorder %v3769, 0.0
      %vm3806 = vcmp.ge.f32.partialorder %v3772, 0.0
      %vm3807 = vcmp.ge.f32.partialorder %v3774, 0.0
      %v3808 = vmul.f32 %v3697, 0.1
      %v3809 = vmul.f32 %v3699, 0.1
      %v3810 = vmul.f32 %v3702, 0.1
      %v3811 = vmul.f32 %v3704, 0.1
      %v3812 = vmul.f32 %v3707, 0.1
      %v3813 = vmul.f32 %v3709, 0.1
      %v3814 = vmul.f32 %v3712, 0.1
      %v3815 = vmul.f32 %v3714, 0.1
      %v3816 = vmul.f32 %v3717, 0.1
      %v3817 = vmul.f32 %v3719, 0.1
      %v3818 = vmul.f32 %v3722, 0.1
      %v3819 = vmul.f32 %v3724, 0.1
      %v3820 = vmul.f32 %v3727, 0.1
      %v3821 = vmul.f32 %v3729, 0.1
      %v3822 = vmul.f32 %v3732, 0.1
      %v3823 = vmul.f32 %v3734, 0.1
      %v3824 = vmul.f32 %v3737, 0.1
      %v3825 = vmul.f32 %v3739, 0.1
      %v3826 = vmul.f32 %v3742, 0.1
      %v3827 = vmul.f32 %v3744, 0.1
      %v3828 = vmul.f32 %v3747, 0.1
      %v3829 = vmul.f32 %v3749, 0.1
      %v3830 = vmul.f32 %v3752, 0.1
      %v3831 = vmul.f32 %v3754, 0.1
      %v3832 = vmul.f32 %v3757, 0.1
      %v3833 = vmul.f32 %v3759, 0.1
      %v3834 = vmul.f32 %v3762, 0.1
      %v3835 = vmul.f32 %v3764, 0.1
      %v3836 = vmul.f32 %v3767, 0.1
      %v3837 = vmul.f32 %v3769, 0.1
      %v3838 = vmul.f32 %v3772, 0.1
      %v3839 = vmul.f32 %v3774, 0.1
      %v3840 = vsel %vm3776, %v3697, %v3808
      %v3841 = vsel %vm3777, %v3699, %v3809
      %v3842 = vsel %vm3778, %v3702, %v3810
      %v3843 = vsel %vm3779, %v3704, %v3811
      %v3844 = vsel %vm3780, %v3707, %v3812
      %v3845 = vsel %vm3781, %v3709, %v3813
      %v3846 = vsel %vm3782, %v3712, %v3814
      %v3847 = vsel %vm3783, %v3714, %v3815
      %v3848 = vsel %vm3784, %v3717, %v3816
      %v3849 = vsel %vm3785, %v3719, %v3817
      %v3850 = vsel %vm3786, %v3722, %v3818
      %v3851 = vsel %vm3787, %v3724, %v3819
      %v3852 = vsel %vm3788, %v3727, %v3820
      %v3853 = vsel %vm3789, %v3729, %v3821
      %v3854 = vsel %vm3790, %v3732, %v3822
      %v3855 = vsel %vm3791, %v3734, %v3823
      %v3856 = vsel %vm3792, %v3737, %v3824
      %v3857 = vsel %vm3793, %v3739, %v3825
      %v3858 = vsel %vm3794, %v3742, %v3826
      %v3859 = vsel %vm3795, %v3744, %v3827
      %v3860 = vsel %vm3796, %v3747, %v3828
      %v3861 = vsel %vm3797, %v3749, %v3829
      %v3862 = vsel %vm3798, %v3752, %v3830
      %v3863 = vsel %vm3799, %v3754, %v3831
      %v3864 = vsel %vm3800, %v3757, %v3832
      %v3865 = vsel %vm3801, %v3759, %v3833
      %v3866 = vsel %vm3802, %v3762, %v3834
      %v3867 = vsel %vm3803, %v3764, %v3835
      %v3868 = vsel %vm3804, %v3767, %v3836
      %v3869 = vsel %vm3805, %v3769, %v3837
      %v3870 = vsel %vm3806, %v3772, %v3838
      %v3871 = vsel %vm3807, %v3774, %v3839
      %v3872 = vpack.c.bf16 %v3841, %v3840
      %v3873 = vpack.c.bf16 %v3843, %v3842
      %v3874 = vpack.c.bf16 %v3845, %v3844
      %v3875 = vpack.c.bf16 %v3847, %v3846
      %v3876 = vpack.c.bf16 %v3849, %v3848
      %v3877 = vpack.c.bf16 %v3851, %v3850
      %v3878 = vpack.c.bf16 %v3853, %v3852
      %v3879 = vpack.c.bf16 %v3855, %v3854
      %v3880 = vpack.c.bf16 %v3857, %v3856
      %v3881 = vpack.c.bf16 %v3859, %v3858
      %v3882 = vpack.c.bf16 %v3861, %v3860
      %v3883 = vpack.c.bf16 %v3863, %v3862
      %v3884 = vpack.c.bf16 %v3865, %v3864
      %v3885 = vpack.c.bf16 %v3867, %v3866
      %v3886 = vpack.c.bf16 %v3869, %v3868
      %v3887 = vpack.c.bf16 %v3871, %v3870
      %v3888 = vld [vmem:[%s7] sm:$0xf]
      %v3889 = vld [vmem:[%s7 + $0x4] sm:$0xf]
      %v3890 = vld [vmem:[%s7 + $0x8] sm:$0xf]
      %v3891 = vld [vmem:[%s7 + $0xc] sm:$0xf]
      %v3892 = vld [vmem:[%s7 + $0x10] sm:$0xf]
      %v3893 = vld [vmem:[%s7 + $0x14] sm:$0xf]
      %v3894 = vld [vmem:[%s7 + $0x18] sm:$0xf]
      %v3895 = vld [vmem:[%s7 + $0x1c] sm:$0xf]
      %v3896 = vld [vmem:[%s7 + $0x20] sm:$0xf]
      %v3897 = vld [vmem:[%s7 + $0x24] sm:$0xf]
      %v3898 = vld [vmem:[%s7 + $0x28] sm:$0xf]
      %v3899 = vld [vmem:[%s7 + $0x2c] sm:$0xf]
      %v3900 = vld [vmem:[%s7 + $0x30] sm:$0xf]
      %v3901 = vld [vmem:[%s7 + $0x34] sm:$0xf]
      %v3902 = vld [vmem:[%s7 + $0x38] sm:$0xf]
      %v3903 = vld [vmem:[%s7 + $0x3c] sm:$0xf]
      %v3904 = vld [vmem:[%s8] sm:$0x1]
      %v3906 = vperm.slane %v3904, 0
      %v3924 = vunpack.c.l.b16 %v3888
      %v3925 = vunpack.c.l.b16 %v3889
      %v3926 = vunpack.c.l.b16 %v3890
      %v3927 = vunpack.c.l.b16 %v3891
      %v3928 = vunpack.c.l.b16 %v3892
      %v3929 = vunpack.c.l.b16 %v3893
      %v3930 = vunpack.c.l.b16 %v3894
      %v3931 = vunpack.c.l.b16 %v3895
      %v3932 = vunpack.c.l.b16 %v3896
      %v3933 = vunpack.c.l.b16 %v3897
      %v3934 = vunpack.c.l.b16 %v3898
      %v3935 = vunpack.c.l.b16 %v3899
      %v3936 = vunpack.c.l.b16 %v3900
      %v3937 = vunpack.c.l.b16 %v3901
      %v3938 = vunpack.c.l.b16 %v3902
      %v3939 = vunpack.c.l.b16 %v3903
      %v3940 = vpack.c.b16 %v3925, %v3924
      %v3941 = vpack.c.b16 %v3927, %v3926
      %v3942 = vpack.c.b16 %v3929, %v3928
      %v3943 = vpack.c.b16 %v3931, %v3930
      %v3944 = vpack.c.b16 %v3933, %v3932
      %v3945 = vpack.c.b16 %v3935, %v3934
      %v3946 = vpack.c.b16 %v3937, %v3936
      %v3947 = vpack.c.b16 %v3939, %v3938
      %3956 = vmatpush.bf16.msra.mxu0 %v3947
      %3957 = vmatpush.bf16.msra.mxu0 %v3946
      %3958 = vmatpush.bf16.msra.mxu0 %v3945
      %3959 = vmatpush.bf16.msra.mxu0 %v3944
      %3960 = vmatpush.bf16.msra.mxu0 %v3943
      %3961 = vmatpush.bf16.msra.mxu0 %v3942
      %3962 = vmatpush.bf16.msra.mxu0 %v3941
      %3963 = vmatpush.bf16.msra.mxu0 %v3940
      %3964 = vmatmul.bf16.gmra.mxu0 %v3872
      %v3965 = vpop.f32.mrf.mxu0
      %v3966 = vadd.f32 %v3906, %v3965
      %v3967 = vpop.f32.mrf.mxu0
      %v3968 = vadd.f32 %v3906, %v3967
      %3969 = vmatmul.bf16.gmra.mxu0 %v3873
      %v3970 = vpop.f32.mrf.mxu0
      %v3971 = vadd.f32 %v3906, %v3970
      %v3972 = vpop.f32.mrf.mxu0
      %v3973 = vadd.f32 %v3906, %v3972
      %3974 = vmatmul.bf16.gmra.mxu0 %v3874
      %v3975 = vpop.f32.mrf.mxu0
      %v3976 = vadd.f32 %v3906, %v3975
      %v3977 = vpop.f32.mrf.mxu0
      %v3978 = vadd.f32 %v3906, %v3977
      %3979 = vmatmul.bf16.gmra.mxu0 %v3875
      %v3980 = vpop.f32.mrf.mxu0
      %v3981 = vadd.f32 %v3906, %v3980
      %v3982 = vpop.f32.mrf.mxu0
      %v3983 = vadd.f32 %v3906, %v3982
      %3984 = vmatmul.bf16.gmra.mxu0 %v3876
      %v3985 = vpop.f32.mrf.mxu0
      %v3986 = vadd.f32 %v3906, %v3985
      %v3987 = vpop.f32.mrf.mxu0
      %v3988 = vadd.f32 %v3906, %v3987
      %3989 = vmatmul.bf16.gmra.mxu0 %v3877
      %v3990 = vpop.f32.mrf.mxu0
      %v3991 = vadd.f32 %v3906, %v3990
      %v3992 = vpop.f32.mrf.mxu0
      %v3993 = vadd.f32 %v3906, %v3992
      %3994 = vmatmul.bf16.gmra.mxu0 %v3878
      %v3995 = vpop.f32.mrf.mxu0
      %v3996 = vadd.f32 %v3906, %v3995
      %v3997 = vpop.f32.mrf.mxu0
      %v3998 = vadd.f32 %v3906, %v3997
      %3999 = vmatmul.bf16.gmra.mxu0 %v3879
      %v4000 = vpop.f32.mrf.mxu0
      %v4001 = vadd.f32 %v3906, %v4000
      %v4002 = vpop.f32.mrf.mxu0
      %v4003 = vadd.f32 %v3906, %v4002
      %4004 = vmatmul.bf16.gmra.mxu0 %v3880
      %v4005 = vpop.f32.mrf.mxu0
      %v4006 = vadd.f32 %v3906, %v4005
      %v4007 = vpop.f32.mrf.mxu0
      %v4008 = vadd.f32 %v3906, %v4007
      %4009 = vmatmul.bf16.gmra.mxu0 %v3881
      %v4010 = vpop.f32.mrf.mxu0
      %v4011 = vadd.f32 %v3906, %v4010
      %v4012 = vpop.f32.mrf.mxu0
      %v4013 = vadd.f32 %v3906, %v4012
      %4014 = vmatmul.bf16.gmra.mxu0 %v3882
      %v4015 = vpop.f32.mrf.mxu0
      %v4016 = vadd.f32 %v3906, %v4015
      %v4017 = vpop.f32.mrf.mxu0
      %v4018 = vadd.f32 %v3906, %v4017
      %4019 = vmatmul.bf16.gmra.mxu0 %v3883
      %v4020 = vpop.f32.mrf.mxu0
      %v4021 = vadd.f32 %v3906, %v4020
      %v4022 = vpop.f32.mrf.mxu0
      %v4023 = vadd.f32 %v3906, %v4022
      %4024 = vmatmul.bf16.gmra.mxu0 %v3884
      %v4025 = vpop.f32.mrf.mxu0
      %v4026 = vadd.f32 %v3906, %v4025
      %v4027 = vpop.f32.mrf.mxu0
      %v4028 = vadd.f32 %v3906, %v4027
      %4029 = vmatmul.bf16.gmra.mxu0 %v3885
      %v4030 = vpop.f32.mrf.mxu0
      %v4031 = vadd.f32 %v3906, %v4030
      %v4032 = vpop.f32.mrf.mxu0
      %v4033 = vadd.f32 %v3906, %v4032
      %4034 = vmatmul.bf16.gmra.mxu0 %v3886
      %v4035 = vpop.f32.mrf.mxu0
      %v4036 = vadd.f32 %v3906, %v4035
      %v4037 = vpop.f32.mrf.mxu0
      %v4038 = vadd.f32 %v3906, %v4037
      %4039 = vmatmul.bf16.gmra.mxu0 %v3887
      %v4040 = vpop.f32.mrf.mxu0
      %v4041 = vadd.f32 %v3906, %v4040
      %v4042 = vpop.f32.mrf.mxu0
      %v4043 = vadd.f32 %v3906, %v4042
      %4044 = vdwg.mxu0
      %vm4045 = vcmp.ge.f32.partialorder %v3966, 0.0
      %vm4046 = vcmp.ge.f32.partialorder %v3968, 0.0
      %vm4047 = vcmp.ge.f32.partialorder %v3971, 0.0
      %vm4048 = vcmp.ge.f32.partialorder %v3973, 0.0
      %vm4049 = vcmp.ge.f32.partialorder %v3976, 0.0
      %vm4050 = vcmp.ge.f32.partialorder %v3978, 0.0
      %vm4051 = vcmp.ge.f32.partialorder %v3981, 0.0
      %vm4052 = vcmp.ge.f32.partialorder %v3983, 0.0
      %vm4053 = vcmp.ge.f32.partialorder %v3986, 0.0
      %vm4054 = vcmp.ge.f32.partialorder %v3988, 0.0
      %vm4055 = vcmp.ge.f32.partialorder %v3991, 0.0
      %vm4056 = vcmp.ge.f32.partialorder %v3993, 0.0
      %vm4057 = vcmp.ge.f32.partialorder %v3996, 0.0
      %vm4058 = vcmp.ge.f32.partialorder %v3998, 0.0
      %vm4059 = vcmp.ge.f32.partialorder %v4001, 0.0
      %vm4060 = vcmp.ge.f32.partialorder %v4003, 0.0
      %vm4061 = vcmp.ge.f32.partialorder %v4006, 0.0
      %vm4062 = vcmp.ge.f32.partialorder %v4008, 0.0
      %vm4063 = vcmp.ge.f32.partialorder %v4011, 0.0
      %vm4064 = vcmp.ge.f32.partialorder %v4013, 0.0
      %vm4065 = vcmp.ge.f32.partialorder %v4016, 0.0
      %vm4066 = vcmp.ge.f32.partialorder %v4018, 0.0
      %vm4067 = vcmp.ge.f32.partialorder %v4021, 0.0
      %vm4068 = vcmp.ge.f32.partialorder %v4023, 0.0
      %vm4069 = vcmp.ge.f32.partialorder %v4026, 0.0
      %vm4070 = vcmp.ge.f32.partialorder %v4028, 0.0
      %vm4071 = vcmp.ge.f32.partialorder %v4031, 0.0
      %vm4072 = vcmp.ge.f32.partialorder %v4033, 0.0
      %vm4073 = vcmp.ge.f32.partialorder %v4036, 0.0
      %vm4074 = vcmp.ge.f32.partialorder %v4038, 0.0
      %vm4075 = vcmp.ge.f32.partialorder %v4041, 0.0
      %vm4076 = vcmp.ge.f32.partialorder %v4043, 0.0
      %v4077 = vmul.f32 %v3966, 0.1
      %v4078 = vmul.f32 %v3968, 0.1
      %v4079 = vmul.f32 %v3971, 0.1
      %v4080 = vmul.f32 %v3973, 0.1
      %v4081 = vmul.f32 %v3976, 0.1
      %v4082 = vmul.f32 %v3978, 0.1
      %v4083 = vmul.f32 %v3981, 0.1
      %v4084 = vmul.f32 %v3983, 0.1
      %v4085 = vmul.f32 %v3986, 0.1
      %v4086 = vmul.f32 %v3988, 0.1
      %v4087 = vmul.f32 %v3991, 0.1
      %v4088 = vmul.f32 %v3993, 0.1
      %v4089 = vmul.f32 %v3996, 0.1
      %v4090 = vmul.f32 %v3998, 0.1
      %v4091 = vmul.f32 %v4001, 0.1
      %v4092 = vmul.f32 %v4003, 0.1
      %v4093 = vmul.f32 %v4006, 0.1
      %v4094 = vmul.f32 %v4008, 0.1
      %v4095 = vmul.f32 %v4011, 0.1
      %v4096 = vmul.f32 %v4013, 0.1
      %v4097 = vmul.f32 %v4016, 0.1
      %v4098 = vmul.f32 %v4018, 0.1
      %v4099 = vmul.f32 %v4021, 0.1
      %v4100 = vmul.f32 %v4023, 0.1
      %v4101 = vmul.f32 %v4026, 0.1
      %v4102 = vmul.f32 %v4028, 0.1
      %v4103 = vmul.f32 %v4031, 0.1
      %v4104 = vmul.f32 %v4033, 0.1
      %v4105 = vmul.f32 %v4036, 0.1
      %v4106 = vmul.f32 %v4038, 0.1
      %v4107 = vmul.f32 %v4041, 0.1
      %v4108 = vmul.f32 %v4043, 0.1
      %v4109 = vsel %vm4045, %v3966, %v4077
      %v4110 = vsel %vm4046, %v3968, %v4078
      %v4111 = vsel %vm4047, %v3971, %v4079
      %v4112 = vsel %vm4048, %v3973, %v4080
      %v4113 = vsel %vm4049, %v3976, %v4081
      %v4114 = vsel %vm4050, %v3978, %v4082
      %v4115 = vsel %vm4051, %v3981, %v4083
      %v4116 = vsel %vm4052, %v3983, %v4084
      %v4117 = vsel %vm4053, %v3986, %v4085
      %v4118 = vsel %vm4054, %v3988, %v4086
      %v4119 = vsel %vm4055, %v3991, %v4087
      %v4120 = vsel %vm4056, %v3993, %v4088
      %v4121 = vsel %vm4057, %v3996, %v4089
      %v4122 = vsel %vm4058, %v3998, %v4090
      %v4123 = vsel %vm4059, %v4001, %v4091
      %v4124 = vsel %vm4060, %v4003, %v4092
      %v4125 = vsel %vm4061, %v4006, %v4093
      %v4126 = vsel %vm4062, %v4008, %v4094
      %v4127 = vsel %vm4063, %v4011, %v4095
      %v4128 = vsel %vm4064, %v4013, %v4096
      %v4129 = vsel %vm4065, %v4016, %v4097
      %v4130 = vsel %vm4066, %v4018, %v4098
      %v4131 = vsel %vm4067, %v4021, %v4099
      %v4132 = vsel %vm4068, %v4023, %v4100
      %v4133 = vsel %vm4069, %v4026, %v4101
      %v4134 = vsel %vm4070, %v4028, %v4102
      %v4135 = vsel %vm4071, %v4031, %v4103
      %v4136 = vsel %vm4072, %v4033, %v4104
      %v4137 = vsel %vm4073, %v4036, %v4105
      %v4138 = vsel %vm4074, %v4038, %v4106
      %v4139 = vsel %vm4075, %v4041, %v4107
      %v4140 = vsel %vm4076, %v4043, %v4108
      %v4141 = vpack.c.bf16 %v4110, %v4109
      %v4142 = vpack.c.bf16 %v4112, %v4111
      %v4143 = vpack.c.bf16 %v4114, %v4113
      %v4144 = vpack.c.bf16 %v4116, %v4115
      %v4145 = vpack.c.bf16 %v4118, %v4117
      %v4146 = vpack.c.bf16 %v4120, %v4119
      %v4147 = vpack.c.bf16 %v4122, %v4121
      %v4148 = vpack.c.bf16 %v4124, %v4123
      %v4149 = vpack.c.bf16 %v4126, %v4125
      %v4150 = vpack.c.bf16 %v4128, %v4127
      %v4151 = vpack.c.bf16 %v4130, %v4129
      %v4152 = vpack.c.bf16 %v4132, %v4131
      %v4153 = vpack.c.bf16 %v4134, %v4133
      %v4154 = vpack.c.bf16 %v4136, %v4135
      %v4155 = vpack.c.bf16 %v4138, %v4137
      %v4156 = vpack.c.bf16 %v4140, %v4139
      %v4157 = vld [vmem:[%s9] sm:$0xf]
      %v4158 = vld [vmem:[%s9 + $0x4] sm:$0xf]
      %v4159 = vld [vmem:[%s9 + $0x8] sm:$0xf]
      %v4160 = vld [vmem:[%s9 + $0xc] sm:$0xf]
      %v4161 = vld [vmem:[%s9 + $0x10] sm:$0xf]
      %v4162 = vld [vmem:[%s9 + $0x14] sm:$0xf]
      %v4163 = vld [vmem:[%s9 + $0x18] sm:$0xf]
      %v4164 = vld [vmem:[%s9 + $0x1c] sm:$0xf]
      %v4165 = vld [vmem:[%s10] sm:$0x1]
      %v4167 = vperm.slane %v4165, 0
      %v4177 = vunpack.c.l.b16 %v4157
      %v4178 = vunpack.c.l.b16 %v4158
      %v4179 = vunpack.c.l.b16 %v4159
      %v4180 = vunpack.c.l.b16 %v4160
      %v4181 = vunpack.c.l.b16 %v4161
      %v4182 = vunpack.c.l.b16 %v4162
      %v4183 = vunpack.c.l.b16 %v4163
      %v4184 = vunpack.c.l.b16 %v4164
      %v4185 = vpack.c.b16 %v4178, %v4177
      %v4186 = vpack.c.b16 %v4180, %v4179
      %v4187 = vpack.c.b16 %v4182, %v4181
      %v4188 = vpack.c.b16 %v4184, %v4183
      %vm4193 = vcmask 523264
      %v4195 = vsel %vm4193, %v4141, 0
      %v4198 = vsel %vm4193, %v4142, 0
      %v4201 = vsel %vm4193, %v4143, 0
      %v4204 = vsel %vm4193, %v4144, 0
      %v4207 = vsel %vm4193, %v4145, 0
      %v4210 = vsel %vm4193, %v4146, 0
      %v4213 = vsel %vm4193, %v4147, 0
      %v4216 = vsel %vm4193, %v4148, 0
      %v4219 = vsel %vm4193, %v4149, 0
      %v4222 = vsel %vm4193, %v4150, 0
      %v4225 = vsel %vm4193, %v4151, 0
      %v4228 = vsel %vm4193, %v4152, 0
      %v4231 = vsel %vm4193, %v4153, 0
      %v4234 = vsel %vm4193, %v4154, 0
      %v4237 = vsel %vm4193, %v4155, 0
      %v4240 = vsel %vm4193, %v4156, 0
      %4242 = vmatpush.bf16.msra.mxu0 0
      %4243 = vmatpush.bf16.msra.mxu0 0
      %4244 = vmatpush.bf16.msra.mxu0 0
      %4245 = vmatpush.bf16.msra.mxu0 0
      %4246 = vmatpush.bf16.msra.mxu0 %v4188
      %4247 = vmatpush.bf16.msra.mxu0 %v4187
      %4248 = vmatpush.bf16.msra.mxu0 %v4186
      %4249 = vmatpush.bf16.msra.mxu0 %v4185
      %4250 = vmatmul.bf16.gmra.mxu0 %v4195
      %v4251 = vpop.f32.mrf.mxu0
      %v4252 = vadd.f32 %v4167, %v4251
      %v4253 = vpop.f32.mrf.mxu0
      %v4254 = vadd.f32 %v4167, %v4253
      %4255 = vmatmul.bf16.gmra.mxu0 %v4198
      %v4256 = vpop.f32.mrf.mxu0
      %v4257 = vadd.f32 %v4167, %v4256
      %v4258 = vpop.f32.mrf.mxu0
      %v4259 = vadd.f32 %v4167, %v4258
      %4260 = vmatmul.bf16.gmra.mxu0 %v4201
      %v4261 = vpop.f32.mrf.mxu0
      %v4262 = vadd.f32 %v4167, %v4261
      %v4263 = vpop.f32.mrf.mxu0
      %v4264 = vadd.f32 %v4167, %v4263
      %4265 = vmatmul.bf16.gmra.mxu0 %v4204
      %v4266 = vpop.f32.mrf.mxu0
      %v4267 = vadd.f32 %v4167, %v4266
      %v4268 = vpop.f32.mrf.mxu0
      %v4269 = vadd.f32 %v4167, %v4268
      %4270 = vmatmul.bf16.gmra.mxu0 %v4207
      %v4271 = vpop.f32.mrf.mxu0
      %v4272 = vadd.f32 %v4167, %v4271
      %v4273 = vpop.f32.mrf.mxu0
      %v4274 = vadd.f32 %v4167, %v4273
      %4275 = vmatmul.bf16.gmra.mxu0 %v4210
      %v4276 = vpop.f32.mrf.mxu0
      %v4277 = vadd.f32 %v4167, %v4276
      %v4278 = vpop.f32.mrf.mxu0
      %v4279 = vadd.f32 %v4167, %v4278
      %4280 = vmatmul.bf16.gmra.mxu0 %v4213
      %v4281 = vpop.f32.mrf.mxu0
      %v4282 = vadd.f32 %v4167, %v4281
      %v4283 = vpop.f32.mrf.mxu0
      %v4284 = vadd.f32 %v4167, %v4283
      %4285 = vmatmul.bf16.gmra.mxu0 %v4216
      %v4286 = vpop.f32.mrf.mxu0
      %v4287 = vadd.f32 %v4167, %v4286
      %v4288 = vpop.f32.mrf.mxu0
      %v4289 = vadd.f32 %v4167, %v4288
      %4290 = vmatmul.bf16.gmra.mxu0 %v4219
      %v4291 = vpop.f32.mrf.mxu0
      %v4292 = vadd.f32 %v4167, %v4291
      %v4293 = vpop.f32.mrf.mxu0
      %v4294 = vadd.f32 %v4167, %v4293
      %4295 = vmatmul.bf16.gmra.mxu0 %v4222
      %v4296 = vpop.f32.mrf.mxu0
      %v4297 = vadd.f32 %v4167, %v4296
      %v4298 = vpop.f32.mrf.mxu0
      %v4299 = vadd.f32 %v4167, %v4298
      %4300 = vmatmul.bf16.gmra.mxu0 %v4225
      %v4301 = vpop.f32.mrf.mxu0
      %v4302 = vadd.f32 %v4167, %v4301
      %v4303 = vpop.f32.mrf.mxu0
      %v4304 = vadd.f32 %v4167, %v4303
      %4305 = vmatmul.bf16.gmra.mxu0 %v4228
      %v4306 = vpop.f32.mrf.mxu0
      %v4307 = vadd.f32 %v4167, %v4306
      %v4308 = vpop.f32.mrf.mxu0
      %v4309 = vadd.f32 %v4167, %v4308
      %4310 = vmatmul.bf16.gmra.mxu0 %v4231
      %v4311 = vpop.f32.mrf.mxu0
      %v4312 = vadd.f32 %v4167, %v4311
      %v4313 = vpop.f32.mrf.mxu0
      %v4314 = vadd.f32 %v4167, %v4313
      %4315 = vmatmul.bf16.gmra.mxu0 %v4234
      %v4316 = vpop.f32.mrf.mxu0
      %v4317 = vadd.f32 %v4167, %v4316
      %v4318 = vpop.f32.mrf.mxu0
      %v4319 = vadd.f32 %v4167, %v4318
      %4320 = vmatmul.bf16.gmra.mxu0 %v4237
      %v4321 = vpop.f32.mrf.mxu0
      %v4322 = vadd.f32 %v4167, %v4321
      %v4323 = vpop.f32.mrf.mxu0
      %v4324 = vadd.f32 %v4167, %v4323
      %4325 = vmatmul.bf16.gmra.mxu0 %v4240
      %v4326 = vpop.f32.mrf.mxu0
      %v4327 = vadd.f32 %v4167, %v4326
      %v4328 = vpop.f32.mrf.mxu0
      %v4329 = vadd.f32 %v4167, %v4328
      %4330 = vdwg.mxu0
      %v4331 = vxor.u32 %v4252, 2147483648
      %v4332 = vxor.u32 %v4254, 2147483648
      %v4333 = vxor.u32 %v4257, 2147483648
      %v4334 = vxor.u32 %v4259, 2147483648
      %v4335 = vxor.u32 %v4262, 2147483648
      %v4336 = vxor.u32 %v4264, 2147483648
      %v4337 = vxor.u32 %v4267, 2147483648
      %v4338 = vxor.u32 %v4269, 2147483648
      %v4339 = vxor.u32 %v4272, 2147483648
      %v4340 = vxor.u32 %v4274, 2147483648
      %v4341 = vxor.u32 %v4277, 2147483648
      %v4342 = vxor.u32 %v4279, 2147483648
      %v4343 = vxor.u32 %v4282, 2147483648
      %v4344 = vxor.u32 %v4284, 2147483648
      %v4345 = vxor.u32 %v4287, 2147483648
      %v4346 = vxor.u32 %v4289, 2147483648
      %v4347 = vxor.u32 %v4292, 2147483648
      %v4348 = vxor.u32 %v4294, 2147483648
      %v4349 = vxor.u32 %v4297, 2147483648
      %v4350 = vxor.u32 %v4299, 2147483648
      %v4351 = vxor.u32 %v4302, 2147483648
      %v4352 = vxor.u32 %v4304, 2147483648
      %v4353 = vxor.u32 %v4307, 2147483648
      %v4354 = vxor.u32 %v4309, 2147483648
      %v4355 = vxor.u32 %v4312, 2147483648
      %v4356 = vxor.u32 %v4314, 2147483648
      %v4357 = vxor.u32 %v4317, 2147483648
      %v4358 = vxor.u32 %v4319, 2147483648
      %v4359 = vxor.u32 %v4322, 2147483648
      %v4360 = vxor.u32 %v4324, 2147483648
      %v4361 = vxor.u32 %v4327, 2147483648
      %v4362 = vxor.u32 %v4329, 2147483648
      %v4363 = vmul.f32 %v4331, 1.442695
      %v4364 = vpow.pop %v4363
      %v4365 = vmul.f32 %v4332, 1.442695
      %v4366 = vpow.pop %v4365
      %v4367 = vmul.f32 %v4333, 1.442695
      %v4368 = vpow.pop %v4367
      %v4369 = vmul.f32 %v4334, 1.442695
      %v4370 = vpow.pop %v4369
      %v4371 = vmul.f32 %v4335, 1.442695
      %v4372 = vpow.pop %v4371
      %v4373 = vmul.f32 %v4336, 1.442695
      %v4374 = vpow.pop %v4373
      %v4375 = vmul.f32 %v4337, 1.442695
      %v4376 = vpow.pop %v4375
      %v4377 = vmul.f32 %v4338, 1.442695
      %v4378 = vpow.pop %v4377
      %v4379 = vmul.f32 %v4339, 1.442695
      %v4380 = vpow.pop %v4379
      %v4381 = vmul.f32 %v4340, 1.442695
      %v4382 = vpow.pop %v4381
      %v4383 = vmul.f32 %v4341, 1.442695
      %v4384 = vpow.pop %v4383
      %v4385 = vmul.f32 %v4342, 1.442695
      %v4386 = vpow.pop %v4385
      %v4387 = vmul.f32 %v4343, 1.442695
      %v4388 = vpow.pop %v4387
      %v4389 = vmul.f32 %v4344, 1.442695
      %v4390 = vpow.pop %v4389
      %v4391 = vmul.f32 %v4345, 1.442695
      %v4392 = vpow.pop %v4391
      %v4393 = vmul.f32 %v4346, 1.442695
      %v4394 = vpow.pop %v4393
      %v4395 = vmul.f32 %v4347, 1.442695
      %v4396 = vpow.pop %v4395
      %v4397 = vmul.f32 %v4348, 1.442695
      %v4398 = vpow.pop %v4397
      %v4399 = vmul.f32 %v4349, 1.442695
      %v4400 = vpow.pop %v4399
      %v4401 = vmul.f32 %v4350, 1.442695
      %v4402 = vpow.pop %v4401
      %v4403 = vmul.f32 %v4351, 1.442695
      %v4404 = vpow.pop %v4403
      %v4405 = vmul.f32 %v4352, 1.442695
      %v4406 = vpow.pop %v4405
      %v4407 = vmul.f32 %v4353, 1.442695
      %v4408 = vpow.pop %v4407
      %v4409 = vmul.f32 %v4354, 1.442695
      %v4410 = vpow.pop %v4409
      %v4411 = vmul.f32 %v4355, 1.442695
      %v4412 = vpow.pop %v4411
      %v4413 = vmul.f32 %v4356, 1.442695
      %v4414 = vpow.pop %v4413
      %v4415 = vmul.f32 %v4357, 1.442695
      %v4416 = vpow.pop %v4415
      %v4417 = vmul.f32 %v4358, 1.442695
      %v4418 = vpow.pop %v4417
      %v4419 = vmul.f32 %v4359, 1.442695
      %v4420 = vpow.pop %v4419
      %v4421 = vmul.f32 %v4360, 1.442695
      %v4422 = vpow.pop %v4421
      %v4423 = vmul.f32 %v4361, 1.442695
      %v4424 = vpow.pop %v4423
      %v4425 = vmul.f32 %v4362, 1.442695
      %v4426 = vpow.pop %v4425
      %v4427 = vadd.f32 %v4364, 1.0
      %v4428 = vadd.f32 %v4366, 1.0
      %v4429 = vadd.f32 %v4368, 1.0
      %v4430 = vadd.f32 %v4370, 1.0
      %v4431 = vadd.f32 %v4372, 1.0
      %v4432 = vadd.f32 %v4374, 1.0
      %v4433 = vadd.f32 %v4376, 1.0
      %v4434 = vadd.f32 %v4378, 1.0
      %v4435 = vadd.f32 %v4380, 1.0
      %v4436 = vadd.f32 %v4382, 1.0
      %v4437 = vadd.f32 %v4384, 1.0
      %v4438 = vadd.f32 %v4386, 1.0
      %v4439 = vadd.f32 %v4388, 1.0
      %v4440 = vadd.f32 %v4390, 1.0
      %v4441 = vadd.f32 %v4392, 1.0
      %v4442 = vadd.f32 %v4394, 1.0
      %v4443 = vadd.f32 %v4396, 1.0
      %v4444 = vadd.f32 %v4398, 1.0
      %v4445 = vadd.f32 %v4400, 1.0
      %v4446 = vadd.f32 %v4402, 1.0
      %v4447 = vadd.f32 %v4404, 1.0
      %v4448 = vadd.f32 %v4406, 1.0
      %v4449 = vadd.f32 %v4408, 1.0
      %v4450 = vadd.f32 %v4410, 1.0
      %v4451 = vadd.f32 %v4412, 1.0
      %v4452 = vadd.f32 %v4414, 1.0
      %v4453 = vadd.f32 %v4416, 1.0
      %v4454 = vadd.f32 %v4418, 1.0
      %v4455 = vadd.f32 %v4420, 1.0
      %v4456 = vadd.f32 %v4422, 1.0
      %v4457 = vadd.f32 %v4424, 1.0
      %v4458 = vadd.f32 %v4426, 1.0
      %v4459 = vrcp.pop %v4427
      %v4460 = vmul.f32 %v4427, %v4459
      %v4461 = vsub.f32 1.0, %v4460
      %v4462 = vmul.f32 %v4459, %v4461
      %v4463 = vadd.f32 %v4459, %v4462
      %vm4464 = vweird.f32 %v4427
      %vm4465 = vweird.f32 %v4459
      %vm4466 = vmor %vm4464, %vm4465
      %v4467 = vsel %vm4466, %v4459, %v4463
      %v4468 = vand.u32 2147483647, %v4427
      %vm4469 = vcmp.eq.f32.partialorder %v4468, 8.507059e+37
      %v4470 = vand.u32 %v4427, 2147483648
      %v4471 = vor.u32 1.1754944e-38, %v4470
      %v4472 = vsel %vm4469, %v4471, %v4467
      %v4473 = vmul.f32 1.0, %v4472
      %v4474 = vrcp.pop %v4428
      %v4475 = vmul.f32 %v4428, %v4474
      %v4476 = vsub.f32 1.0, %v4475
      %v4477 = vmul.f32 %v4474, %v4476
      %v4478 = vadd.f32 %v4474, %v4477
      %vm4479 = vweird.f32 %v4428
      %vm4480 = vweird.f32 %v4474
      %vm4481 = vmor %vm4479, %vm4480
      %v4482 = vsel %vm4481, %v4474, %v4478
      %v4483 = vand.u32 2147483647, %v4428
      %vm4484 = vcmp.eq.f32.partialorder %v4483, 8.507059e+37
      %v4485 = vand.u32 %v4428, 2147483648
      %v4486 = vor.u32 1.1754944e-38, %v4485
      %v4487 = vsel %vm4484, %v4486, %v4482
      %v4488 = vmul.f32 1.0, %v4487
      %v4489 = vrcp.pop %v4429
      %v4490 = vmul.f32 %v4429, %v4489
      %v4491 = vsub.f32 1.0, %v4490
      %v4492 = vmul.f32 %v4489, %v4491
      %v4493 = vadd.f32 %v4489, %v4492
      %vm4494 = vweird.f32 %v4429
      %vm4495 = vweird.f32 %v4489
      %vm4496 = vmor %vm4494, %vm4495
      %v4497 = vsel %vm4496, %v4489, %v4493
      %v4498 = vand.u32 2147483647, %v4429
      %vm4499 = vcmp.eq.f32.partialorder %v4498, 8.507059e+37
      %v4500 = vand.u32 %v4429, 2147483648
      %v4501 = vor.u32 1.1754944e-38, %v4500
      %v4502 = vsel %vm4499, %v4501, %v4497
      %v4503 = vmul.f32 1.0, %v4502
      %v4504 = vrcp.pop %v4430
      %v4505 = vmul.f32 %v4430, %v4504
      %v4506 = vsub.f32 1.0, %v4505
      %v4507 = vmul.f32 %v4504, %v4506
      %v4508 = vadd.f32 %v4504, %v4507
      %vm4509 = vweird.f32 %v4430
      %vm4510 = vweird.f32 %v4504
      %vm4511 = vmor %vm4509, %vm4510
      %v4512 = vsel %vm4511, %v4504, %v4508
      %v4513 = vand.u32 2147483647, %v4430
      %vm4514 = vcmp.eq.f32.partialorder %v4513, 8.507059e+37
      %v4515 = vand.u32 %v4430, 2147483648
      %v4516 = vor.u32 1.1754944e-38, %v4515
      %v4517 = vsel %vm4514, %v4516, %v4512
      %v4518 = vmul.f32 1.0, %v4517
      %v4519 = vrcp.pop %v4431
      %v4520 = vmul.f32 %v4431, %v4519
      %v4521 = vsub.f32 1.0, %v4520
      %v4522 = vmul.f32 %v4519, %v4521
      %v4523 = vadd.f32 %v4519, %v4522
      %vm4524 = vweird.f32 %v4431
      %vm4525 = vweird.f32 %v4519
      %vm4526 = vmor %vm4524, %vm4525
      %v4527 = vsel %vm4526, %v4519, %v4523
      %v4528 = vand.u32 2147483647, %v4431
      %vm4529 = vcmp.eq.f32.partialorder %v4528, 8.507059e+37
      %v4530 = vand.u32 %v4431, 2147483648
      %v4531 = vor.u32 1.1754944e-38, %v4530
      %v4532 = vsel %vm4529, %v4531, %v4527
      %v4533 = vmul.f32 1.0, %v4532
      %v4534 = vrcp.pop %v4432
      %v4535 = vmul.f32 %v4432, %v4534
      %v4536 = vsub.f32 1.0, %v4535
      %v4537 = vmul.f32 %v4534, %v4536
      %v4538 = vadd.f32 %v4534, %v4537
      %vm4539 = vweird.f32 %v4432
      %vm4540 = vweird.f32 %v4534
      %vm4541 = vmor %vm4539, %vm4540
      %v4542 = vsel %vm4541, %v4534, %v4538
      %v4543 = vand.u32 2147483647, %v4432
      %vm4544 = vcmp.eq.f32.partialorder %v4543, 8.507059e+37
      %v4545 = vand.u32 %v4432, 2147483648
      %v4546 = vor.u32 1.1754944e-38, %v4545
      %v4547 = vsel %vm4544, %v4546, %v4542
      %v4548 = vmul.f32 1.0, %v4547
      %v4549 = vrcp.pop %v4433
      %v4550 = vmul.f32 %v4433, %v4549
      %v4551 = vsub.f32 1.0, %v4550
      %v4552 = vmul.f32 %v4549, %v4551
      %v4553 = vadd.f32 %v4549, %v4552
      %vm4554 = vweird.f32 %v4433
      %vm4555 = vweird.f32 %v4549
      %vm4556 = vmor %vm4554, %vm4555
      %v4557 = vsel %vm4556, %v4549, %v4553
      %v4558 = vand.u32 2147483647, %v4433
      %vm4559 = vcmp.eq.f32.partialorder %v4558, 8.507059e+37
      %v4560 = vand.u32 %v4433, 2147483648
      %v4561 = vor.u32 1.1754944e-38, %v4560
      %v4562 = vsel %vm4559, %v4561, %v4557
      %v4563 = vmul.f32 1.0, %v4562
      %v4564 = vrcp.pop %v4434
      %v4565 = vmul.f32 %v4434, %v4564
      %v4566 = vsub.f32 1.0, %v4565
      %v4567 = vmul.f32 %v4564, %v4566
      %v4568 = vadd.f32 %v4564, %v4567
      %vm4569 = vweird.f32 %v4434
      %vm4570 = vweird.f32 %v4564
      %vm4571 = vmor %vm4569, %vm4570
      %v4572 = vsel %vm4571, %v4564, %v4568
      %v4573 = vand.u32 2147483647, %v4434
      %vm4574 = vcmp.eq.f32.partialorder %v4573, 8.507059e+37
      %v4575 = vand.u32 %v4434, 2147483648
      %v4576 = vor.u32 1.1754944e-38, %v4575
      %v4577 = vsel %vm4574, %v4576, %v4572
      %v4578 = vmul.f32 1.0, %v4577
      %v4579 = vrcp.pop %v4435
      %v4580 = vmul.f32 %v4435, %v4579
      %v4581 = vsub.f32 1.0, %v4580
      %v4582 = vmul.f32 %v4579, %v4581
      %v4583 = vadd.f32 %v4579, %v4582
      %vm4584 = vweird.f32 %v4435
      %vm4585 = vweird.f32 %v4579
      %vm4586 = vmor %vm4584, %vm4585
      %v4587 = vsel %vm4586, %v4579, %v4583
      %v4588 = vand.u32 2147483647, %v4435
      %vm4589 = vcmp.eq.f32.partialorder %v4588, 8.507059e+37
      %v4590 = vand.u32 %v4435, 2147483648
      %v4591 = vor.u32 1.1754944e-38, %v4590
      %v4592 = vsel %vm4589, %v4591, %v4587
      %v4593 = vmul.f32 1.0, %v4592
      %v4594 = vrcp.pop %v4436
      %v4595 = vmul.f32 %v4436, %v4594
      %v4596 = vsub.f32 1.0, %v4595
      %v4597 = vmul.f32 %v4594, %v4596
      %v4598 = vadd.f32 %v4594, %v4597
      %vm4599 = vweird.f32 %v4436
      %vm4600 = vweird.f32 %v4594
      %vm4601 = vmor %vm4599, %vm4600
      %v4602 = vsel %vm4601, %v4594, %v4598
      %v4603 = vand.u32 2147483647, %v4436
      %vm4604 = vcmp.eq.f32.partialorder %v4603, 8.507059e+37
      %v4605 = vand.u32 %v4436, 2147483648
      %v4606 = vor.u32 1.1754944e-38, %v4605
      %v4607 = vsel %vm4604, %v4606, %v4602
      %v4608 = vmul.f32 1.0, %v4607
      %v4609 = vrcp.pop %v4437
      %v4610 = vmul.f32 %v4437, %v4609
      %v4611 = vsub.f32 1.0, %v4610
      %v4612 = vmul.f32 %v4609, %v4611
      %v4613 = vadd.f32 %v4609, %v4612
      %vm4614 = vweird.f32 %v4437
      %vm4615 = vweird.f32 %v4609
      %vm4616 = vmor %vm4614, %vm4615
      %v4617 = vsel %vm4616, %v4609, %v4613
      %v4618 = vand.u32 2147483647, %v4437
      %vm4619 = vcmp.eq.f32.partialorder %v4618, 8.507059e+37
      %v4620 = vand.u32 %v4437, 2147483648
      %v4621 = vor.u32 1.1754944e-38, %v4620
      %v4622 = vsel %vm4619, %v4621, %v4617
      %v4623 = vmul.f32 1.0, %v4622
      %v4624 = vrcp.pop %v4438
      %v4625 = vmul.f32 %v4438, %v4624
      %v4626 = vsub.f32 1.0, %v4625
      %v4627 = vmul.f32 %v4624, %v4626
      %v4628 = vadd.f32 %v4624, %v4627
      %vm4629 = vweird.f32 %v4438
      %vm4630 = vweird.f32 %v4624
      %vm4631 = vmor %vm4629, %vm4630
      %v4632 = vsel %vm4631, %v4624, %v4628
      %v4633 = vand.u32 2147483647, %v4438
      %vm4634 = vcmp.eq.f32.partialorder %v4633, 8.507059e+37
      %v4635 = vand.u32 %v4438, 2147483648
      %v4636 = vor.u32 1.1754944e-38, %v4635
      %v4637 = vsel %vm4634, %v4636, %v4632
      %v4638 = vmul.f32 1.0, %v4637
      %v4639 = vrcp.pop %v4439
      %v4640 = vmul.f32 %v4439, %v4639
      %v4641 = vsub.f32 1.0, %v4640
      %v4642 = vmul.f32 %v4639, %v4641
      %v4643 = vadd.f32 %v4639, %v4642
      %vm4644 = vweird.f32 %v4439
      %vm4645 = vweird.f32 %v4639
      %vm4646 = vmor %vm4644, %vm4645
      %v4647 = vsel %vm4646, %v4639, %v4643
      %v4648 = vand.u32 2147483647, %v4439
      %vm4649 = vcmp.eq.f32.partialorder %v4648, 8.507059e+37
      %v4650 = vand.u32 %v4439, 2147483648
      %v4651 = vor.u32 1.1754944e-38, %v4650
      %v4652 = vsel %vm4649, %v4651, %v4647
      %v4653 = vmul.f32 1.0, %v4652
      %v4654 = vrcp.pop %v4440
      %v4655 = vmul.f32 %v4440, %v4654
      %v4656 = vsub.f32 1.0, %v4655
      %v4657 = vmul.f32 %v4654, %v4656
      %v4658 = vadd.f32 %v4654, %v4657
      %vm4659 = vweird.f32 %v4440
      %vm4660 = vweird.f32 %v4654
      %vm4661 = vmor %vm4659, %vm4660
      %v4662 = vsel %vm4661, %v4654, %v4658
      %v4663 = vand.u32 2147483647, %v4440
      %vm4664 = vcmp.eq.f32.partialorder %v4663, 8.507059e+37
      %v4665 = vand.u32 %v4440, 2147483648
      %v4666 = vor.u32 1.1754944e-38, %v4665
      %v4667 = vsel %vm4664, %v4666, %v4662
      %v4668 = vmul.f32 1.0, %v4667
      %v4669 = vrcp.pop %v4441
      %v4670 = vmul.f32 %v4441, %v4669
      %v4671 = vsub.f32 1.0, %v4670
      %v4672 = vmul.f32 %v4669, %v4671
      %v4673 = vadd.f32 %v4669, %v4672
      %vm4674 = vweird.f32 %v4441
      %vm4675 = vweird.f32 %v4669
      %vm4676 = vmor %vm4674, %vm4675
      %v4677 = vsel %vm4676, %v4669, %v4673
      %v4678 = vand.u32 2147483647, %v4441
      %vm4679 = vcmp.eq.f32.partialorder %v4678, 8.507059e+37
      %v4680 = vand.u32 %v4441, 2147483648
      %v4681 = vor.u32 1.1754944e-38, %v4680
      %v4682 = vsel %vm4679, %v4681, %v4677
      %v4683 = vmul.f32 1.0, %v4682
      %v4684 = vrcp.pop %v4442
      %v4685 = vmul.f32 %v4442, %v4684
      %v4686 = vsub.f32 1.0, %v4685
      %v4687 = vmul.f32 %v4684, %v4686
      %v4688 = vadd.f32 %v4684, %v4687
      %vm4689 = vweird.f32 %v4442
      %vm4690 = vweird.f32 %v4684
      %vm4691 = vmor %vm4689, %vm4690
      %v4692 = vsel %vm4691, %v4684, %v4688
      %v4693 = vand.u32 2147483647, %v4442
      %vm4694 = vcmp.eq.f32.partialorder %v4693, 8.507059e+37
      %v4695 = vand.u32 %v4442, 2147483648
      %v4696 = vor.u32 1.1754944e-38, %v4695
      %v4697 = vsel %vm4694, %v4696, %v4692
      %v4698 = vmul.f32 1.0, %v4697
      %v4699 = vrcp.pop %v4443
      %v4700 = vmul.f32 %v4443, %v4699
      %v4701 = vsub.f32 1.0, %v4700
      %v4702 = vmul.f32 %v4699, %v4701
      %v4703 = vadd.f32 %v4699, %v4702
      %vm4704 = vweird.f32 %v4443
      %vm4705 = vweird.f32 %v4699
      %vm4706 = vmor %vm4704, %vm4705
      %v4707 = vsel %vm4706, %v4699, %v4703
      %v4708 = vand.u32 2147483647, %v4443
      %vm4709 = vcmp.eq.f32.partialorder %v4708, 8.507059e+37
      %v4710 = vand.u32 %v4443, 2147483648
      %v4711 = vor.u32 1.1754944e-38, %v4710
      %v4712 = vsel %vm4709, %v4711, %v4707
      %v4713 = vmul.f32 1.0, %v4712
      %v4714 = vrcp.pop %v4444
      %v4715 = vmul.f32 %v4444, %v4714
      %v4716 = vsub.f32 1.0, %v4715
      %v4717 = vmul.f32 %v4714, %v4716
      %v4718 = vadd.f32 %v4714, %v4717
      %vm4719 = vweird.f32 %v4444
      %vm4720 = vweird.f32 %v4714
      %vm4721 = vmor %vm4719, %vm4720
      %v4722 = vsel %vm4721, %v4714, %v4718
      %v4723 = vand.u32 2147483647, %v4444
      %vm4724 = vcmp.eq.f32.partialorder %v4723, 8.507059e+37
      %v4725 = vand.u32 %v4444, 2147483648
      %v4726 = vor.u32 1.1754944e-38, %v4725
      %v4727 = vsel %vm4724, %v4726, %v4722
      %v4728 = vmul.f32 1.0, %v4727
      %v4729 = vrcp.pop %v4445
      %v4730 = vmul.f32 %v4445, %v4729
      %v4731 = vsub.f32 1.0, %v4730
      %v4732 = vmul.f32 %v4729, %v4731
      %v4733 = vadd.f32 %v4729, %v4732
      %vm4734 = vweird.f32 %v4445
      %vm4735 = vweird.f32 %v4729
      %vm4736 = vmor %vm4734, %vm4735
      %v4737 = vsel %vm4736, %v4729, %v4733
      %v4738 = vand.u32 2147483647, %v4445
      %vm4739 = vcmp.eq.f32.partialorder %v4738, 8.507059e+37
      %v4740 = vand.u32 %v4445, 2147483648
      %v4741 = vor.u32 1.1754944e-38, %v4740
      %v4742 = vsel %vm4739, %v4741, %v4737
      %v4743 = vmul.f32 1.0, %v4742
      %v4744 = vrcp.pop %v4446
      %v4745 = vmul.f32 %v4446, %v4744
      %v4746 = vsub.f32 1.0, %v4745
      %v4747 = vmul.f32 %v4744, %v4746
      %v4748 = vadd.f32 %v4744, %v4747
      %vm4749 = vweird.f32 %v4446
      %vm4750 = vweird.f32 %v4744
      %vm4751 = vmor %vm4749, %vm4750
      %v4752 = vsel %vm4751, %v4744, %v4748
      %v4753 = vand.u32 2147483647, %v4446
      %vm4754 = vcmp.eq.f32.partialorder %v4753, 8.507059e+37
      %v4755 = vand.u32 %v4446, 2147483648
      %v4756 = vor.u32 1.1754944e-38, %v4755
      %v4757 = vsel %vm4754, %v4756, %v4752
      %v4758 = vmul.f32 1.0, %v4757
      %v4759 = vrcp.pop %v4447
      %v4760 = vmul.f32 %v4447, %v4759
      %v4761 = vsub.f32 1.0, %v4760
      %v4762 = vmul.f32 %v4759, %v4761
      %v4763 = vadd.f32 %v4759, %v4762
      %vm4764 = vweird.f32 %v4447
      %vm4765 = vweird.f32 %v4759
      %vm4766 = vmor %vm4764, %vm4765
      %v4767 = vsel %vm4766, %v4759, %v4763
      %v4768 = vand.u32 2147483647, %v4447
      %vm4769 = vcmp.eq.f32.partialorder %v4768, 8.507059e+37
      %v4770 = vand.u32 %v4447, 2147483648
      %v4771 = vor.u32 1.1754944e-38, %v4770
      %v4772 = vsel %vm4769, %v4771, %v4767
      %v4773 = vmul.f32 1.0, %v4772
      %v4774 = vrcp.pop %v4448
      %v4775 = vmul.f32 %v4448, %v4774
      %v4776 = vsub.f32 1.0, %v4775
      %v4777 = vmul.f32 %v4774, %v4776
      %v4778 = vadd.f32 %v4774, %v4777
      %vm4779 = vweird.f32 %v4448
      %vm4780 = vweird.f32 %v4774
      %vm4781 = vmor %vm4779, %vm4780
      %v4782 = vsel %vm4781, %v4774, %v4778
      %v4783 = vand.u32 2147483647, %v4448
      %vm4784 = vcmp.eq.f32.partialorder %v4783, 8.507059e+37
      %v4785 = vand.u32 %v4448, 2147483648
      %v4786 = vor.u32 1.1754944e-38, %v4785
      %v4787 = vsel %vm4784, %v4786, %v4782
      %v4788 = vmul.f32 1.0, %v4787
      %v4789 = vrcp.pop %v4449
      %v4790 = vmul.f32 %v4449, %v4789
      %v4791 = vsub.f32 1.0, %v4790
      %v4792 = vmul.f32 %v4789, %v4791
      %v4793 = vadd.f32 %v4789, %v4792
      %vm4794 = vweird.f32 %v4449
      %vm4795 = vweird.f32 %v4789
      %vm4796 = vmor %vm4794, %vm4795
      %v4797 = vsel %vm4796, %v4789, %v4793
      %v4798 = vand.u32 2147483647, %v4449
      %vm4799 = vcmp.eq.f32.partialorder %v4798, 8.507059e+37
      %v4800 = vand.u32 %v4449, 2147483648
      %v4801 = vor.u32 1.1754944e-38, %v4800
      %v4802 = vsel %vm4799, %v4801, %v4797
      %v4803 = vmul.f32 1.0, %v4802
      %v4804 = vrcp.pop %v4450
      %v4805 = vmul.f32 %v4450, %v4804
      %v4806 = vsub.f32 1.0, %v4805
      %v4807 = vmul.f32 %v4804, %v4806
      %v4808 = vadd.f32 %v4804, %v4807
      %vm4809 = vweird.f32 %v4450
      %vm4810 = vweird.f32 %v4804
      %vm4811 = vmor %vm4809, %vm4810
      %v4812 = vsel %vm4811, %v4804, %v4808
      %v4813 = vand.u32 2147483647, %v4450
      %vm4814 = vcmp.eq.f32.partialorder %v4813, 8.507059e+37
      %v4815 = vand.u32 %v4450, 2147483648
      %v4816 = vor.u32 1.1754944e-38, %v4815
      %v4817 = vsel %vm4814, %v4816, %v4812
      %v4818 = vmul.f32 1.0, %v4817
      %v4819 = vrcp.pop %v4451
      %v4820 = vmul.f32 %v4451, %v4819
      %v4821 = vsub.f32 1.0, %v4820
      %v4822 = vmul.f32 %v4819, %v4821
      %v4823 = vadd.f32 %v4819, %v4822
      %vm4824 = vweird.f32 %v4451
      %vm4825 = vweird.f32 %v4819
      %vm4826 = vmor %vm4824, %vm4825
      %v4827 = vsel %vm4826, %v4819, %v4823
      %v4828 = vand.u32 2147483647, %v4451
      %vm4829 = vcmp.eq.f32.partialorder %v4828, 8.507059e+37
      %v4830 = vand.u32 %v4451, 2147483648
      %v4831 = vor.u32 1.1754944e-38, %v4830
      %v4832 = vsel %vm4829, %v4831, %v4827
      %v4833 = vmul.f32 1.0, %v4832
      %v4834 = vrcp.pop %v4452
      %v4835 = vmul.f32 %v4452, %v4834
      %v4836 = vsub.f32 1.0, %v4835
      %v4837 = vmul.f32 %v4834, %v4836
      %v4838 = vadd.f32 %v4834, %v4837
      %vm4839 = vweird.f32 %v4452
      %vm4840 = vweird.f32 %v4834
      %vm4841 = vmor %vm4839, %vm4840
      %v4842 = vsel %vm4841, %v4834, %v4838
      %v4843 = vand.u32 2147483647, %v4452
      %vm4844 = vcmp.eq.f32.partialorder %v4843, 8.507059e+37
      %v4845 = vand.u32 %v4452, 2147483648
      %v4846 = vor.u32 1.1754944e-38, %v4845
      %v4847 = vsel %vm4844, %v4846, %v4842
      %v4848 = vmul.f32 1.0, %v4847
      %v4849 = vrcp.pop %v4453
      %v4850 = vmul.f32 %v4453, %v4849
      %v4851 = vsub.f32 1.0, %v4850
      %v4852 = vmul.f32 %v4849, %v4851
      %v4853 = vadd.f32 %v4849, %v4852
      %vm4854 = vweird.f32 %v4453
      %vm4855 = vweird.f32 %v4849
      %vm4856 = vmor %vm4854, %vm4855
      %v4857 = vsel %vm4856, %v4849, %v4853
      %v4858 = vand.u32 2147483647, %v4453
      %vm4859 = vcmp.eq.f32.partialorder %v4858, 8.507059e+37
      %v4860 = vand.u32 %v4453, 2147483648
      %v4861 = vor.u32 1.1754944e-38, %v4860
      %v4862 = vsel %vm4859, %v4861, %v4857
      %v4863 = vmul.f32 1.0, %v4862
      %v4864 = vrcp.pop %v4454
      %v4865 = vmul.f32 %v4454, %v4864
      %v4866 = vsub.f32 1.0, %v4865
      %v4867 = vmul.f32 %v4864, %v4866
      %v4868 = vadd.f32 %v4864, %v4867
      %vm4869 = vweird.f32 %v4454
      %vm4870 = vweird.f32 %v4864
      %vm4871 = vmor %vm4869, %vm4870
      %v4872 = vsel %vm4871, %v4864, %v4868
      %v4873 = vand.u32 2147483647, %v4454
      %vm4874 = vcmp.eq.f32.partialorder %v4873, 8.507059e+37
      %v4875 = vand.u32 %v4454, 2147483648
      %v4876 = vor.u32 1.1754944e-38, %v4875
      %v4877 = vsel %vm4874, %v4876, %v4872
      %v4878 = vmul.f32 1.0, %v4877
      %v4879 = vrcp.pop %v4455
      %v4880 = vmul.f32 %v4455, %v4879
      %v4881 = vsub.f32 1.0, %v4880
      %v4882 = vmul.f32 %v4879, %v4881
      %v4883 = vadd.f32 %v4879, %v4882
      %vm4884 = vweird.f32 %v4455
      %vm4885 = vweird.f32 %v4879
      %vm4886 = vmor %vm4884, %vm4885
      %v4887 = vsel %vm4886, %v4879, %v4883
      %v4888 = vand.u32 2147483647, %v4455
      %vm4889 = vcmp.eq.f32.partialorder %v4888, 8.507059e+37
      %v4890 = vand.u32 %v4455, 2147483648
      %v4891 = vor.u32 1.1754944e-38, %v4890
      %v4892 = vsel %vm4889, %v4891, %v4887
      %v4893 = vmul.f32 1.0, %v4892
      %v4894 = vrcp.pop %v4456
      %v4895 = vmul.f32 %v4456, %v4894
      %v4896 = vsub.f32 1.0, %v4895
      %v4897 = vmul.f32 %v4894, %v4896
      %v4898 = vadd.f32 %v4894, %v4897
      %vm4899 = vweird.f32 %v4456
      %vm4900 = vweird.f32 %v4894
      %vm4901 = vmor %vm4899, %vm4900
      %v4902 = vsel %vm4901, %v4894, %v4898
      %v4903 = vand.u32 2147483647, %v4456
      %vm4904 = vcmp.eq.f32.partialorder %v4903, 8.507059e+37
      %v4905 = vand.u32 %v4456, 2147483648
      %v4906 = vor.u32 1.1754944e-38, %v4905
      %v4907 = vsel %vm4904, %v4906, %v4902
      %v4908 = vmul.f32 1.0, %v4907
      %v4909 = vrcp.pop %v4457
      %v4910 = vmul.f32 %v4457, %v4909
      %v4911 = vsub.f32 1.0, %v4910
      %v4912 = vmul.f32 %v4909, %v4911
      %v4913 = vadd.f32 %v4909, %v4912
      %vm4914 = vweird.f32 %v4457
      %vm4915 = vweird.f32 %v4909
      %vm4916 = vmor %vm4914, %vm4915
      %v4917 = vsel %vm4916, %v4909, %v4913
      %v4918 = vand.u32 2147483647, %v4457
      %vm4919 = vcmp.eq.f32.partialorder %v4918, 8.507059e+37
      %v4920 = vand.u32 %v4457, 2147483648
      %v4921 = vor.u32 1.1754944e-38, %v4920
      %v4922 = vsel %vm4919, %v4921, %v4917
      %v4923 = vmul.f32 1.0, %v4922
      %v4924 = vrcp.pop %v4458
      %v4925 = vmul.f32 %v4458, %v4924
      %v4926 = vsub.f32 1.0, %v4925
      %v4927 = vmul.f32 %v4924, %v4926
      %v4928 = vadd.f32 %v4924, %v4927
      %vm4929 = vweird.f32 %v4458
      %vm4930 = vweird.f32 %v4924
      %vm4931 = vmor %vm4929, %vm4930
      %v4932 = vsel %vm4931, %v4924, %v4928
      %v4933 = vand.u32 2147483647, %v4458
      %vm4934 = vcmp.eq.f32.partialorder %v4933, 8.507059e+37
      %v4935 = vand.u32 %v4458, 2147483648
      %v4936 = vor.u32 1.1754944e-38, %v4935
      %v4937 = vsel %vm4934, %v4936, %v4932
      %v4938 = vmul.f32 1.0, %v4937
      %4939 = vst [vmem:[%s391] sm:$0xff] %v4473
      %4940 = vst [vmem:[%s391 + $0x8] sm:$0xff] %v4488
      %4941 = vst [vmem:[%s391 + $0x10] sm:$0xff] %v4503
      %4942 = vst [vmem:[%s391 + $0x18] sm:$0xff] %v4518
      %4943 = vst [vmem:[%s391 + $0x20] sm:$0xff] %v4533
      %4944 = vst [vmem:[%s391 + $0x28] sm:$0xff] %v4548
      %4945 = vst [vmem:[%s391 + $0x30] sm:$0xff] %v4563
      %4946 = vst [vmem:[%s391 + $0x38] sm:$0xff] %v4578
      %4947 = vst [vmem:[%s391 + $0x40] sm:$0xff] %v4593
      %4948 = vst [vmem:[%s391 + $0x48] sm:$0xff] %v4608
      %4949 = vst [vmem:[%s391 + $0x50] sm:$0xff] %v4623
      %4950 = vst [vmem:[%s391 + $0x58] sm:$0xff] %v4638
      %4951 = vst [vmem:[%s391 + $0x60] sm:$0xff] %v4653
      %4952 = vst [vmem:[%s391 + $0x68] sm:$0xff] %v4668
      %4953 = vst [vmem:[%s391 + $0x70] sm:$0xff] %v4683
      %4954 = vst [vmem:[%s391 + $0x78] sm:$0xff] %v4698
      %4955 = vst [vmem:[%s391 + $0x80] sm:$0xff] %v4713
      %4956 = vst [vmem:[%s391 + $0x88] sm:$0xff] %v4728
      %4957 = vst [vmem:[%s391 + $0x90] sm:$0xff] %v4743
      %4958 = vst [vmem:[%s391 + $0x98] sm:$0xff] %v4758
      %4959 = vst [vmem:[%s391 + $0xa0] sm:$0xff] %v4773
      %4960 = vst [vmem:[%s391 + $0xa8] sm:$0xff] %v4788
      %4961 = vst [vmem:[%s391 + $0xb0] sm:$0xff] %v4803
      %4962 = vst [vmem:[%s391 + $0xb8] sm:$0xff] %v4818
      %4963 = vst [vmem:[%s391 + $0xc0] sm:$0xff] %v4833
      %4964 = vst [vmem:[%s391 + $0xc8] sm:$0xff] %v4848
      %4965 = vst [vmem:[%s391 + $0xd0] sm:$0xff] %v4863
      %4966 = vst [vmem:[%s391 + $0xd8] sm:$0xff] %v4878
      %4967 = vst [vmem:[%s391 + $0xe0] sm:$0xff] %v4893
      %4968 = vst [vmem:[%s391 + $0xe8] sm:$0xff] %v4908
      %4969 = vst [vmem:[%s391 + $0xf0] sm:$0xff] %v4923
      %4970 = vst [vmem:[%s391 + $0xf8] sm:$0xff] %v4938
      %s4971 = smul.u32 32, %s22
      %p4972 = scmp.lt.s32.totalorder %s4971, 63
      %s4973 = scalar_select %p4972, %s4971, 63
      %s4974 = smul.addr %s4973, 8
      %s4975 = scalar_lea.vmem %s11, %s4974
      // Predicated region
      $region65: #{improved_molecular_nn.1} parent=63 // pred_check
        %p4976 = pneg %p276
      $region66: #{improved_molecular_nn.1} parent=63 // pred_check_branch
        %4978 = sbr.rel (%p4976) target = $region68
      $region67: #{improved_molecular_nn.1} parent=63 // pred_region
        %s4979 = smul.u32 32, %s22
      $region68: #{improved_molecular_nn.1} parent=63 // pred_fallthru
        _
    $region64: #{improved_molecular_nn.1} parent=5 // pred_fallthru
      _
    %p4980 = scmp.le.s32.totalorder 2, %s17
    // Predicated region
    $region69: #{improved_molecular_nn.1} parent=5 // pred_check
      %p4981 = pneg %p4980
    $region70: #{improved_molecular_nn.1} parent=5 // pred_check_branch
      %4983 = sbr.rel (%p4981) target = $region72
    $region71: #{improved_molecular_nn.1} parent=5 // pred_region
      %s4984 = ssub.s32 %s17, 2
      // Predicated region
      $region73: #{improved_molecular_nn.1} parent=71 // pred_check
        %p4985 = pneg %p282
      $region74: #{improved_molecular_nn.1} parent=71 // pred_check_branch
        %4987 = sbr.rel (%p4985) target = $region76
      $region75: #{improved_molecular_nn.1} parent=71 // pred_region
        %s4988 = smul.u32 32, %s23
        %p4989 = scmp.lt.s32.totalorder %s4988, 63
        %s4990 = scalar_select %p4989, %s4988, 63
        %s4991 = smul.addr %s4990, 8
        %s4992 = scalar_lea.vmem %s11, %s4991
      $region76: #{improved_molecular_nn.1} parent=71 // pred_fallthru
        _
    $region72: #{improved_molecular_nn.1} parent=5 // pred_fallthru
      _
  $region6: #{improved_molecular_nn.1} parent=0 // loop_footer
    %s21 = sadd.s32 1, %s17
  $region7: #{improved_molecular_nn.1} parent=0 // loop_footer_branch
    %16 = sbr.rel target = $region3
  $region8: #{improved_molecular_nn.1} parent=0 // loop_exit
    _

</llo_original>
